<compile_context>
chip_gen: v7x
topology: tpu7x:2x2x1
jax: 0.10.0
libtpu: 0.0.40
codegen_flags: <defaults>
</compile_context>

<pallas_src>
import jax
import jax.numpy as jnp
from jax.experimental import pallas as pl
from jax.experimental.pallas import tpu as pltpu


H1, H1_PAD = 800, 896      # first hidden width per head, padded to 7*128
H2, H2_PAD = 400, 512      # second hidden width, padded to 4*128
H3, H3_PAD = 300, 384      # third hidden width, padded to 3*128

WEIGHT_ORDER = ("w1", "b1",
                "w11", "b11", "w2", "b2",
                "w41", "b41", "w5", "b5",
                "wf", "bf")


def _cdiv(a, b):
    return (a + b - 1) // b


def _round_up(x, m):
    return ((x + m - 1) // m) * m


# ----------------------------------------------------------------------------
# Kernel
# ----------------------------------------------------------------------------
def _critic_kernel(
    x_ref,
    w1_ref, b1_ref,
    w11_ref, b11_ref, w2_ref, b2_ref,
    w41_ref, b41_ref, w5_ref, b5_ref,
    wf_ref, bf_ref,
    out_ref,
):
    x = x_ref[...].astype(jnp.bfloat16)                      # (tb, in_dim)

    # Fused first layer of BOTH heads: one (K=in_dim, N=2*H1_PAD) matmul.
    # f32 MXU accumulation, then bf16 bias/ReLU so h0 stays bf16.
    pre = jnp.dot(x, w1_ref[...], preferred_element_type=jnp.float32)
    h0 = jnp.maximum(pre.astype(jnp.bfloat16) + b1_ref[...], 0)   # (tb, 1792) bf16
    h1 = h0[:, :H1_PAD]                                           # head-1 hidden
    h2 = h0[:, H1_PAD:]                                           # head-2 hidden

    def linear_relu(h_bf16, w_ref, b_ref):
        y = jnp.dot(h_bf16, w_ref[...], preferred_element_type=jnp.float32)
        return jnp.maximum(y + b_ref[...], 0.0).astype(jnp.bfloat16)

    # ---- Q1 head: 896 -> 512 -> 384 ----
    g = linear_relu(h1, w11_ref, b11_ref)
    g = linear_relu(g, w2_ref, b2_ref)
    # ---- Q2 head: 896 -> 512 -> 384 ----
    f = linear_relu(h2, w41_ref, b41_ref)
    f = linear_relu(f, w5_ref, b5_ref)

    # Fused block-diagonal final layer: (2*H3_PAD, 2) weight, one (tb, 2) store.
    hcat = jnp.concatenate([g, f], axis=1)                    # (tb, 768), 384-lane aligned
    q = jnp.dot(hcat, wf_ref[...], preferred_element_type=jnp.float32) + bf_ref[...]
    out_ref[...] = q.astype(out_ref.dtype)


# ----------------------------------------------------------------------------
# Parameter init (PyTorch nn.Linear layout + default init) and prep
# ----------------------------------------------------------------------------
def init_critic_params(key, state_dim, action_dim):
    """PyTorch-layout params: weight (out, in), bias (out,), uniform(+-1/sqrt(fan_in))."""
    layer_dims = [
        ("l1", state_dim + action_dim, H1),
        ("l1_1", H1, H2),
        ("l2", H2, H3),
        ("l3", H3, 1),
        ("l4", state_dim + action_dim, H1),
        ("l4_1", H1, H2),
        ("l5", H2, H3),
        ("l6", H3, 1),
    ]
    params = {}
    keys = jax.random.split(key, 2 * len(layer_dims))
    for i, (name, fan_in, fan_out) in enumerate(layer_dims):
        bound = 1.0 / float(fan_in) ** 0.5
        w = jax.random.uniform(keys[2 * i], (fan_out, fan_in), jnp.float32, -bound, bound)
        b = jax.random.uniform(keys[2 * i + 1], (fan_out,), jnp.float32, -bound, bound)
        params[name] = (w, b)
    return params


def prepare_critic_params(params):
    """One-time (outside the jitted forward) conversion to kernel layout:
    transpose to (in, out), fuse both heads' first layers into one lane-padded
    (in_dim, 2*H1_PAD) weight, zero-pad all hidden dims to 128 multiples,
    fuse both final layers into one block-diagonal (2*H3_PAD, 2) weight,
    cast weights (and b1) to bf16 (other biases stay f32 row-vectors)."""
    def pad2(wt, rows, cols):
        out = jnp.zeros((rows, cols), jnp.float32)
        return out.at[: wt.shape[0], : wt.shape[1]].set(wt)

    def pad_bias(b, cols):
        out = jnp.zeros((1, cols), jnp.float32)
        return out.at[0, : b.shape[0]].set(jnp.asarray(b, jnp.float32))

    w1, b1 = params["l1"]
    w4, b4 = params["l4"]
    in_dim = w1.shape[1]

    # Fused first layer (both heads), each head's 800 cols padded to 896.
    w1f = jnp.zeros((in_dim, 2 * H1_PAD), jnp.float32)
    w1f = w1f.at[:, :H1].set(jnp.asarray(w1).T)
    w1f = w1f.at[:, H1_PAD:H1_PAD + H1].set(jnp.asarray(w4).T)
    b1f = jnp.zeros((1, 2 * H1_PAD), jnp.float32)
    b1f = b1f.at[0, :H1].set(jnp.asarray(b1))
    b1f = b1f.at[0, H1_PAD:H1_PAD + H1].set(jnp.asarray(b4))

    w11, b11 = params["l1_1"]
    w41, b41 = params["l4_1"]
    w2, b2 = params["l2"]
    w5, b5 = params["l5"]
    w3, b3 = params["l3"]
    w6, b6 = params["l6"]

    # Fused block-diagonal final layer: col 0 = head-1 (l3), col 1 = head-2 (l6).
    wf = jnp.zeros((2 * H3_PAD, 2), jnp.float32)
    wf = wf.at[:H3, 0].set(jnp.asarray(w3).T[:, 0])
    wf = wf.at[H3_PAD:H3_PAD + H3, 1].set(jnp.asarray(w6).T[:, 0])
    bf = jnp.array([[float(b3[0]), float(b6[0])]], jnp.float32)

    return {
        "w1": w1f.astype(jnp.bfloat16),
        "b1": b1f.astype(jnp.bfloat16),          # bf16 bias -> bf16 h0 intermediate
        "w11": pad2(jnp.asarray(w11).T, H1_PAD, H2_PAD).astype(jnp.bfloat16),
        "b11": pad_bias(b11, H2_PAD),
        "w2": pad2(jnp.asarray(w2).T, H2_PAD, H3_PAD).astype(jnp.bfloat16),
        "b2": pad_bias(b2, H3_PAD),
        "w41": pad2(jnp.asarray(w41).T, H1_PAD, H2_PAD).astype(jnp.bfloat16),
        "b41": pad_bias(b41, H2_PAD),
        "w5": pad2(jnp.asarray(w5).T, H2_PAD, H3_PAD).astype(jnp.bfloat16),
        "b5": pad_bias(b5, H3_PAD),
        "wf": wf.astype(jnp.bfloat16),
        "bf": bf,
    }


# ----------------------------------------------------------------------------
# Forward
# ----------------------------------------------------------------------------
def _pick_tile(B, cap=1024):
    """Near-equal batch tiles (mult of 8), <=cap, >=2 grid steps when B > 8."""
    if B <= 8:
        return _round_up(max(B, 1), 8), 1
    target = min(cap, _round_up(_cdiv(B, 2), 8))
    n_tiles = max(2, _cdiv(B, target))
    tile_b = _round_up(_cdiv(B, n_tiles), 8)
    n_tiles = _cdiv(B, tile_b)
    return tile_b, n_tiles


@jax.jit
def critic_forward(state, action, prepped):
    x = jnp.concatenate(
        [state.astype(jnp.float32), action.astype(jnp.float32)], axis=1)
    B, in_dim = x.shape

    tile_b, n_tiles = _pick_tile(B)
    b_pad = tile_b * n_tiles
    if b_pad != B:
        x = jnp.pad(x, ((0, b_pad - B), (0, 0)))

    weight_args = [prepped[k] for k in WEIGHT_ORDER]

    def batch_spec(cols):
        return pl.BlockSpec((tile_b, cols), lambda i: (i, 0))

    def resident_spec(arr):
        # Full-array block, constant index_map: fetched once, VMEM-resident
        # across all grid steps.
        return pl.BlockSpec(arr.shape, lambda i: (0, 0))

    out = pl.pallas_call(
        _critic_kernel,
        out_shape=jax.ShapeDtypeStruct((b_pad, 2), jnp.float32),
        grid=(n_tiles,),
        in_specs=[batch_spec(in_dim)] + [resident_spec(w) for w in weight_args],
        out_specs=batch_spec(2),
        compiler_params=pltpu.CompilerParams(
            dimension_semantics=("parallel",),        # shard batch over v7x TCs
            vmem_limit_bytes=48 * 1024 * 1024,        # safe on v5e/v6e/v7x
        ),
    )(x, *weight_args)

    q = out[:B]
    return q[:, 0:1], q[:, 1:2]


def critic_forward_ref(state, action, params):
    """Pure-JAX f32 reference matching the PyTorch forward."""
    x = jnp.concatenate([state, action], axis=1).astype(jnp.float32)

    def head(x, names):
        h = x
        for i, name in enumerate(names):
            w, b = params[name]
            h = h @ w.T + b
            if i < len(names) - 1:
                h = jnp.maximum(h, 0.0)
        return h

    q1 = head(x, ["l1", "l1_1", "l2", "l3"])
    q2 = head(x, ["l4", "l4_1", "l5", "l6"])
    return q1, q2


if __name__ == "__main__":
    B, state_dim, action_dim = 4, 8, 4

    key = jax.random.PRNGKey(0)
    k_params, k_state, k_action = jax.random.split(key, 3)

    params = init_critic_params(k_params, state_dim, action_dim)
    prepped = prepare_critic_params(params)   # one-time, outside jit

    state = jax.random.normal(k_state, (B, state_dim), jnp.float32)
    action = jax.random.normal(k_action, (B, action_dim), jnp.float32)

    q1, q2 = critic_forward(state, action, prepped)
    q1 = jax.block_until_ready(q1)
    q2 = jax.block_until_ready(q2)

    q1_ref, q2_ref = critic_forward_ref(state, action, params)
    assert q1.shape == (B, 1) and q2.shape == (B, 1)
    # bf16 matmuls with f32 accumulation -> looser tolerances than pure f32.
    assert jnp.allclose(q1, q1_ref, atol=5e-2, rtol=5e-2), (
        "q1 max abs err", float(jnp.max(jnp.abs(q1 - q1_ref))))
    assert jnp.allclose(q2, q2_ref, atol=5e-2, rtol=5e-2), (
        "q2 max abs err", float(jnp.max(jnp.abs(q2 - q2_ref))))

    print("KERNEL_OK")
</pallas_src>

<mosaic_0001>
module attributes {stable_mosaic.version = 11 : i64} {
  func.func @_critic_kernel(%arg0: i32, %arg1: memref<8x12xf32, #tpu.memory_space<vmem>>, %arg2: memref<12x1792xbf16, #tpu.memory_space<vmem>>, %arg3: memref<1x1792xbf16, #tpu.memory_space<vmem>>, %arg4: memref<896x512xbf16, #tpu.memory_space<vmem>>, %arg5: memref<1x512xf32, #tpu.memory_space<vmem>>, %arg6: memref<512x384xbf16, #tpu.memory_space<vmem>>, %arg7: memref<1x384xf32, #tpu.memory_space<vmem>>, %arg8: memref<896x512xbf16, #tpu.memory_space<vmem>>, %arg9: memref<1x512xf32, #tpu.memory_space<vmem>>, %arg10: memref<512x384xbf16, #tpu.memory_space<vmem>>, %arg11: memref<1x384xf32, #tpu.memory_space<vmem>>, %arg12: memref<768x2xbf16, #tpu.memory_space<vmem>>, %arg13: memref<1x2xf32, #tpu.memory_space<vmem>>, %arg14: memref<8x2xf32, #tpu.memory_space<vmem>>) attributes {dimension_semantics = [#tpu.dimension_semantics<parallel>], iteration_bounds = array<i64: 1>, scalar_prefetch = 0 : i64, scratch_operands = 0 : i64, tpu.core_type = #tpu.core_type<tc>, window_params = [{transform_indices = @transform_0, window_bounds = array<i64: 8, 12>}, {pipeline_mode = #tpu.pipeline_mode<synchronous>, transform_indices = @transform_1, window_bounds = array<i64: 12, 1792>}, {pipeline_mode = #tpu.pipeline_mode<synchronous>, transform_indices = @transform_2, window_bounds = array<i64: 1, 1792>}, {pipeline_mode = #tpu.pipeline_mode<synchronous>, transform_indices = @transform_3, window_bounds = array<i64: 896, 512>}, {pipeline_mode = #tpu.pipeline_mode<synchronous>, transform_indices = @transform_4, window_bounds = array<i64: 1, 512>}, {pipeline_mode = #tpu.pipeline_mode<synchronous>, transform_indices = @transform_5, window_bounds = array<i64: 512, 384>}, {pipeline_mode = #tpu.pipeline_mode<synchronous>, transform_indices = @transform_6, window_bounds = array<i64: 1, 384>}, {pipeline_mode = #tpu.pipeline_mode<synchronous>, transform_indices = @transform_7, window_bounds = array<i64: 896, 512>}, {pipeline_mode = #tpu.pipeline_mode<synchronous>, transform_indices = @transform_8, window_bounds = array<i64: 1, 512>}, {pipeline_mode = #tpu.pipeline_mode<synchronous>, transform_indices = @transform_9, window_bounds = array<i64: 512, 384>}, {pipeline_mode = #tpu.pipeline_mode<synchronous>, transform_indices = @transform_10, window_bounds = array<i64: 1, 384>}, {pipeline_mode = #tpu.pipeline_mode<synchronous>, transform_indices = @transform_11, window_bounds = array<i64: 768, 2>}, {pipeline_mode = #tpu.pipeline_mode<synchronous>, transform_indices = @transform_12, window_bounds = array<i64: 1, 2>}, {transform_indices = @transform_13, window_bounds = array<i64: 8, 2>}]} {
    %c0 = arith.constant 0 : index
    %c0_0 = arith.constant 0 : index
    %0 = vector.load %arg1[%c0, %c0_0] : memref<8x12xf32, #tpu.memory_space<vmem>>, vector<8x12xf32>
    %1 = arith.truncf %0 : vector<8x12xf32> to vector<8x12xbf16>
    %c0_1 = arith.constant 0 : index
    %c0_2 = arith.constant 0 : index
    %2 = vector.load %arg2[%c0_1, %c0_2] : memref<12x1792xbf16, #tpu.memory_space<vmem>>, vector<12x1792xbf16>
    %cst = arith.constant dense<0.000000e+00> : vector<8x1792xf32>
    %3 = tpu.matmul %1, %2, %cst {dimension_numbers = #tpu.dot_dimension_numbers<[1], [0], [0], [1], [0, 0, 1, 1], [], []>} : vector<8x12xbf16>, vector<12x1792xbf16>, vector<8x1792xf32> -> vector<8x1792xf32>
    %4 = arith.truncf %3 : vector<8x1792xf32> to vector<8x1792xbf16>
    %c0_3 = arith.constant 0 : index
    %c0_4 = arith.constant 0 : index
    %5 = vector.load %arg3[%c0_3, %c0_4] : memref<1x1792xbf16, #tpu.memory_space<vmem>>, vector<1x1792xbf16>
    %6 = vector.broadcast %5 : vector<1x1792xbf16> to vector<8x1792xbf16>
    %7 = arith.addf %4, %6 : vector<8x1792xbf16>
    %cst_5 = arith.constant 0.000000e+00 : bf16
    %8 = vector.broadcast %cst_5 : bf16 to vector<8x1792xbf16>
    %9 = arith.maximumf %7, %8 : vector<8x1792xbf16>
    %10 = vector.extract_strided_slice %9 {offsets = [0, 0], sizes = [8, 896], strides = [1, 1]} : vector<8x1792xbf16> to vector<8x896xbf16>
    %11 = vector.extract_strided_slice %9 {offsets = [0, 896], sizes = [8, 896], strides = [1, 1]} : vector<8x1792xbf16> to vector<8x896xbf16>
    %c0_6 = arith.constant 0 : index
    %c0_7 = arith.constant 0 : index
    %12 = vector.load %arg4[%c0_6, %c0_7] : memref<896x512xbf16, #tpu.memory_space<vmem>>, vector<896x512xbf16>
    %cst_8 = arith.constant dense<0.000000e+00> : vector<8x512xf32>
    %13 = tpu.matmul %10, %12, %cst_8 {dimension_numbers = #tpu.dot_dimension_numbers<[1], [0], [0], [1], [0, 0, 1, 1], [], []>} : vector<8x896xbf16>, vector<896x512xbf16>, vector<8x512xf32> -> vector<8x512xf32>
    %c0_9 = arith.constant 0 : index
    %c0_10 = arith.constant 0 : index
    %14 = vector.load %arg5[%c0_9, %c0_10] : memref<1x512xf32, #tpu.memory_space<vmem>>, vector<1x512xf32>
    %15 = vector.broadcast %14 : vector<1x512xf32> to vector<8x512xf32>
    %16 = arith.addf %13, %15 : vector<8x512xf32>
    %cst_11 = arith.constant 0.000000e+00 : f32
    %17 = vector.broadcast %cst_11 : f32 to vector<8x512xf32>
    %18 = arith.maximumf %16, %17 : vector<8x512xf32>
    %19 = arith.truncf %18 : vector<8x512xf32> to vector<8x512xbf16>
    %c0_12 = arith.constant 0 : index
    %c0_13 = arith.constant 0 : index
    %20 = vector.load %arg6[%c0_12, %c0_13] : memref<512x384xbf16, #tpu.memory_space<vmem>>, vector<512x384xbf16>
    %cst_14 = arith.constant dense<0.000000e+00> : vector<8x384xf32>
    %21 = tpu.matmul %19, %20, %cst_14 {dimension_numbers = #tpu.dot_dimension_numbers<[1], [0], [0], [1], [0, 0, 1, 1], [], []>} : vector<8x512xbf16>, vector<512x384xbf16>, vector<8x384xf32> -> vector<8x384xf32>
    %c0_15 = arith.constant 0 : index
    %c0_16 = arith.constant 0 : index
    %22 = vector.load %arg7[%c0_15, %c0_16] : memref<1x384xf32, #tpu.memory_space<vmem>>, vector<1x384xf32>
    %23 = vector.broadcast %22 : vector<1x384xf32> to vector<8x384xf32>
    %24 = arith.addf %21, %23 : vector<8x384xf32>
    %cst_17 = arith.constant 0.000000e+00 : f32
    %25 = vector.broadcast %cst_17 : f32 to vector<8x384xf32>
    %26 = arith.maximumf %24, %25 : vector<8x384xf32>
    %27 = arith.truncf %26 : vector<8x384xf32> to vector<8x384xbf16>
    %c0_18 = arith.constant 0 : index
    %c0_19 = arith.constant 0 : index
    %28 = vector.load %arg8[%c0_18, %c0_19] : memref<896x512xbf16, #tpu.memory_space<vmem>>, vector<896x512xbf16>
    %cst_20 = arith.constant dense<0.000000e+00> : vector<8x512xf32>
    %29 = tpu.matmul %11, %28, %cst_20 {dimension_numbers = #tpu.dot_dimension_numbers<[1], [0], [0], [1], [0, 0, 1, 1], [], []>} : vector<8x896xbf16>, vector<896x512xbf16>, vector<8x512xf32> -> vector<8x512xf32>
    %c0_21 = arith.constant 0 : index
    %c0_22 = arith.constant 0 : index
    %30 = vector.load %arg9[%c0_21, %c0_22] : memref<1x512xf32, #tpu.memory_space<vmem>>, vector<1x512xf32>
    %31 = vector.broadcast %30 : vector<1x512xf32> to vector<8x512xf32>
    %32 = arith.addf %29, %31 : vector<8x512xf32>
    %cst_23 = arith.constant 0.000000e+00 : f32
    %33 = vector.broadcast %cst_23 : f32 to vector<8x512xf32>
    %34 = arith.maximumf %32, %33 : vector<8x512xf32>
    %35 = arith.truncf %34 : vector<8x512xf32> to vector<8x512xbf16>
    %c0_24 = arith.constant 0 : index
    %c0_25 = arith.constant 0 : index
    %36 = vector.load %arg10[%c0_24, %c0_25] : memref<512x384xbf16, #tpu.memory_space<vmem>>, vector<512x384xbf16>
    %cst_26 = arith.constant dense<0.000000e+00> : vector<8x384xf32>
    %37 = tpu.matmul %35, %36, %cst_26 {dimension_numbers = #tpu.dot_dimension_numbers<[1], [0], [0], [1], [0, 0, 1, 1], [], []>} : vector<8x512xbf16>, vector<512x384xbf16>, vector<8x384xf32> -> vector<8x384xf32>
    %c0_27 = arith.constant 0 : index
    %c0_28 = arith.constant 0 : index
    %38 = vector.load %arg11[%c0_27, %c0_28] : memref<1x384xf32, #tpu.memory_space<vmem>>, vector<1x384xf32>
    %39 = vector.broadcast %38 : vector<1x384xf32> to vector<8x384xf32>
    %40 = arith.addf %37, %39 : vector<8x384xf32>
    %cst_29 = arith.constant 0.000000e+00 : f32
    %41 = vector.broadcast %cst_29 : f32 to vector<8x384xf32>
    %42 = arith.maximumf %40, %41 : vector<8x384xf32>
    %43 = arith.truncf %42 : vector<8x384xf32> to vector<8x384xbf16>
    %44 = tpu.concatenate %27, %43 in 1 : vector<8x384xbf16>, vector<8x384xbf16> -> vector<8x768xbf16>
    %c0_30 = arith.constant 0 : index
    %c0_31 = arith.constant 0 : index
    %45 = vector.load %arg12[%c0_30, %c0_31] : memref<768x2xbf16, #tpu.memory_space<vmem>>, vector<768x2xbf16>
    %cst_32 = arith.constant dense<0.000000e+00> : vector<8x2xf32>
    %46 = tpu.matmul %44, %45, %cst_32 {dimension_numbers = #tpu.dot_dimension_numbers<[1], [0], [0], [1], [0, 0, 1, 1], [], []>} : vector<8x768xbf16>, vector<768x2xbf16>, vector<8x2xf32> -> vector<8x2xf32>
    %c0_33 = arith.constant 0 : index
    %c0_34 = arith.constant 0 : index
    %47 = vector.load %arg13[%c0_33, %c0_34] : memref<1x2xf32, #tpu.memory_space<vmem>>, vector<1x2xf32>
    %48 = vector.broadcast %47 : vector<1x2xf32> to vector<8x2xf32>
    %49 = arith.addf %46, %48 : vector<8x2xf32>
    %c0_35 = arith.constant 0 : index
    %c0_36 = arith.constant 0 : index
    %50 = vector.load %arg14[%c0_35, %c0_36] : memref<8x2xf32, #tpu.memory_space<vmem>>, vector<8x2xf32>
    tpu.vector_store %arg14[%c0_35, %c0_36], %49 {strides = array<i32>} : memref<8x2xf32, #tpu.memory_space<vmem>>, vector<8x2xf32>,
    return
  }
  func.func @transform_0(%arg0: i32) -> (i32, i32) {
    %c0_i32 = arith.constant 0 : i32
    %c0_i32_0 = arith.constant 0 : i32
    return %arg0, %c0_i32 : i32, i32
  }
  func.func @transform_1(%arg0: i32) -> (i32, i32) {
    %c0_i32 = arith.constant 0 : i32
    %c0_i32_0 = arith.constant 0 : i32
    %c0_i32_1 = arith.constant 0 : i32
    return %c0_i32, %c0_i32_0 : i32, i32
  }
  func.func @transform_2(%arg0: i32) -> (i32, i32) {
    %c0_i32 = arith.constant 0 : i32
    %c0_i32_0 = arith.constant 0 : i32
    %c0_i32_1 = arith.constant 0 : i32
    return %c0_i32, %c0_i32_0 : i32, i32
  }
  func.func @transform_3(%arg0: i32) -> (i32, i32) {
    %c0_i32 = arith.constant 0 : i32
    %c0_i32_0 = arith.constant 0 : i32
    %c0_i32_1 = arith.constant 0 : i32
    return %c0_i32, %c0_i32_0 : i32, i32
  }
  func.func @transform_4(%arg0: i32) -> (i32, i32) {
    %c0_i32 = arith.constant 0 : i32
    %c0_i32_0 = arith.constant 0 : i32
    %c0_i32_1 = arith.constant 0 : i32
    return %c0_i32, %c0_i32_0 : i32, i32
  }
  func.func @transform_5(%arg0: i32) -> (i32, i32) {
    %c0_i32 = arith.constant 0 : i32
    %c0_i32_0 = arith.constant 0 : i32
    %c0_i32_1 = arith.constant 0 : i32
    return %c0_i32, %c0_i32_0 : i32, i32
  }
  func.func @transform_6(%arg0: i32) -> (i32, i32) {
    %c0_i32 = arith.constant 0 : i32
    %c0_i32_0 = arith.constant 0 : i32
    %c0_i32_1 = arith.constant 0 : i32
    return %c0_i32, %c0_i32_0 : i32, i32
  }
  func.func @transform_7(%arg0: i32) -> (i32, i32) {
    %c0_i32 = arith.constant 0 : i32
    %c0_i32_0 = arith.constant 0 : i32
    %c0_i32_1 = arith.constant 0 : i32
    return %c0_i32, %c0_i32_0 : i32, i32
  }
  func.func @transform_8(%arg0: i32) -> (i32, i32) {
    %c0_i32 = arith.constant 0 : i32
    %c0_i32_0 = arith.constant 0 : i32
    %c0_i32_1 = arith.constant 0 : i32
    return %c0_i32, %c0_i32_0 : i32, i32
  }
  func.func @transform_9(%arg0: i32) -> (i32, i32) {
    %c0_i32 = arith.constant 0 : i32
    %c0_i32_0 = arith.constant 0 : i32
    %c0_i32_1 = arith.constant 0 : i32
    return %c0_i32, %c0_i32_0 : i32, i32
  }
  func.func @transform_10(%arg0: i32) -> (i32, i32) {
    %c0_i32 = arith.constant 0 : i32
    %c0_i32_0 = arith.constant 0 : i32
    %c0_i32_1 = arith.constant 0 : i32
    return %c0_i32, %c0_i32_0 : i32, i32
  }
  func.func @transform_11(%arg0: i32) -> (i32, i32) {
    %c0_i32 = arith.constant 0 : i32
    %c0_i32_0 = arith.constant 0 : i32
    %c0_i32_1 = arith.constant 0 : i32
    return %c0_i32, %c0_i32_0 : i32, i32
  }
  func.func @transform_12(%arg0: i32) -> (i32, i32) {
    %c0_i32 = arith.constant 0 : i32
    %c0_i32_0 = arith.constant 0 : i32
    %c0_i32_1 = arith.constant 0 : i32
    return %c0_i32, %c0_i32_0 : i32, i32
  }
  func.func @transform_13(%arg0: i32) -> (i32, i32) {
    %c0_i32 = arith.constant 0 : i32
    %c0_i32_0 = arith.constant 0 : i32
    return %arg0, %c0_i32 : i32, i32
  }
}

</mosaic_0001>

<llo_original>
// kernel: critic_forward.1
$region0: #{critic_forward.1}
  #allocation0 [shape = 'u32[]', space=smem, size = 0x4, offset = 0x4, fixed_abs, tag = 'smem constant byte address 0x4 - core index']
  #allocation1 [shape = 'u32[144,128]{1,0:T(1,128)}', space=vmem, size = 0x12000, scoped, tag = 'internal scratch']
  %s0 = inlined_call_operand.vmem [shape: f32[8,12], index: 0, kind: input, shape index: {}]
  %s1 = inlined_call_operand.vmem [shape: bf16[12,1792], index: 1, kind: input, shape index: {}]
  %s2 = inlined_call_operand.vmem [shape: bf16[1,1792], index: 2, kind: input, shape index: {}]
  %s3 = inlined_call_operand.hbm [shape: bf16[896,512], index: 3, kind: input, shape index: {}]
  %s4 = inlined_call_operand.vmem [shape: f32[1,512], index: 4, kind: input, shape index: {}]
  %s5 = inlined_call_operand.hbm [shape: bf16[512,384], index: 5, kind: input, shape index: {}]
  %s6 = inlined_call_operand.vmem [shape: f32[1,384], index: 6, kind: input, shape index: {}]
  %s7 = inlined_call_operand.hbm [shape: bf16[896,512], index: 7, kind: input, shape index: {}]
  %s8 = inlined_call_operand.vmem [shape: f32[1,512], index: 8, kind: input, shape index: {}]
  %s9 = inlined_call_operand.hbm [shape: bf16[512,384], index: 9, kind: input, shape index: {}]
  %s10 = inlined_call_operand.vmem [shape: f32[1,384], index: 10, kind: input, shape index: {}]
  %s11 = inlined_call_operand.vmem [shape: bf16[768,2], index: 11, kind: input, shape index: {}]
  %s12 = inlined_call_operand.vmem [shape: f32[1,2], index: 12, kind: input, shape index: {}]
  %s13 = inlined_call_operand.vmem [shape: f32[8,2], index: 13, kind: output, shape index: {}]
  %s14 = sld [smem:[#allocation0]]
  $region78: #{critic_forward.1} parent=0
    _
  %s16 = ssub.s32 1, %s14
  %s17 = scalar_select 0, %s16, %s14
  $region1: #{critic_forward.1} parent=0
    #allocation2 [shape = 'u8[917504]{0}', space=vmem, size = 0xe0000, scoped, tag = 'input window, operand 3, single buffered']
    #allocation3 [shape = 's32[1]{0}', space=sflag, size = 0x4, scoped, tag = 'scoped memory for critic_forward.1']
    #allocation4 [shape = 'u8[393216]{0}', space=vmem, size = 0x60000, scoped, tag = 'input window, operand 5, single buffered']
    #allocation5 [shape = 's32[1]{0}', space=sflag, size = 0x4, scoped, tag = 'scoped memory for critic_forward.1']
    #allocation6 [shape = 'u8[917504]{0}', space=vmem, size = 0xe0000, scoped, tag = 'input window, operand 7, single buffered']
    #allocation7 [shape = 'u8[393216]{0}', space=vmem, size = 0x60000, scoped, tag = 'input window, operand 9, single buffered']
    #allocation8 [shape = 's32[1]{0}', space=sflag, size = 0x4, scoped, tag = 'scoped memory for critic_forward.1']
    %18 = vsyncpa [#allocation3], 0
    %19 = vsyncpa [#allocation5], 0
    %20 = vsyncpa [#allocation8], 0
    // Predicated region
    $region2: #{critic_forward.1} parent=1 // pred_check
      _
    $region3: #{critic_forward.1} parent=1 // pred_check_branch
      %22 = sbr.rel (0) target = $region5
    $region4: #{critic_forward.1} parent=1 // pred_region
      _
    $region5: #{critic_forward.1} parent=1 // pred_fallthru
      _
    // Predicated region
    $region6: #{critic_forward.1} parent=1 // pred_check
      _
    $region7: #{critic_forward.1} parent=1 // pred_check_branch
      %24 = sbr.rel (0) target = $region9
    $region8: #{critic_forward.1} parent=1 // pred_region
      _
    $region9: #{critic_forward.1} parent=1 // pred_fallthru
      _
    // Predicated region
    $region10: #{critic_forward.1} parent=1 // pred_check
      _
    $region11: #{critic_forward.1} parent=1 // pred_check_branch
      %26 = sbr.rel (0) target = $region13
    $region12: #{critic_forward.1} parent=1 // pred_region
      _
    $region13: #{critic_forward.1} parent=1 // pred_fallthru
      _
    // Predicated region
    $region14: #{critic_forward.1} parent=1 // pred_check
      _
    $region15: #{critic_forward.1} parent=1 // pred_check_branch
      %28 = sbr.rel (0) target = $region17
    $region16: #{critic_forward.1} parent=1 // pred_region
      %s30 = ssub.s32 28672, 28672
      %31 = vsyncadd [#allocation3], %s30
      %s32 = sshll.u32 [#allocation2], 4
      %s33 = int_to_ptr.vmem [resolvable:$true] %s32
      %38 = dma.hbm_to_vmem [thread:$0]  %s3, 28672, %s33, [#allocation3], 256, 256, 16
    $region17: #{critic_forward.1} parent=1 // pred_fallthru
      _
    // Predicated region
    $region18: #{critic_forward.1} parent=1 // pred_check
      _
    $region19: #{critic_forward.1} parent=1 // pred_check_branch
      %40 = sbr.rel (0) target = $region21
    $region20: #{critic_forward.1} parent=1 // pred_region
      _
    $region21: #{critic_forward.1} parent=1 // pred_fallthru
      _
    // Predicated region
    $region22: #{critic_forward.1} parent=1 // pred_check
      _
    $region23: #{critic_forward.1} parent=1 // pred_check_branch
      %42 = sbr.rel (0) target = $region25
    $region24: #{critic_forward.1} parent=1 // pred_region
      %s44 = ssub.s32 12288, 12288
      %45 = vsyncadd [#allocation5], %s44
      %s46 = sshll.u32 [#allocation4], 4
      %s47 = int_to_ptr.vmem [resolvable:$true] %s46
      %52 = dma.hbm_to_vmem [thread:$0]  %s5, 12288, %s47, [#allocation5], 192, 192, 12
    $region25: #{critic_forward.1} parent=1 // pred_fallthru
      _
    // Predicated region
    $region26: #{critic_forward.1} parent=1 // pred_check
      _
    $region27: #{critic_forward.1} parent=1 // pred_check_branch
      %54 = sbr.rel (0) target = $region29
    $region28: #{critic_forward.1} parent=1 // pred_region
      _
    $region29: #{critic_forward.1} parent=1 // pred_fallthru
      _
    // Predicated region
    $region30: #{critic_forward.1} parent=1 // pred_check
      _
    $region31: #{critic_forward.1} parent=1 // pred_check_branch
      %56 = sbr.rel (0) target = $region33
    $region32: #{critic_forward.1} parent=1 // pred_region
      %s58 = ssub.s32 28672, 28672
      %59 = vsyncadd [#allocation5], %s58
      %s60 = sshll.u32 [#allocation6], 4
      %s61 = int_to_ptr.vmem [resolvable:$true] %s60
      %66 = dma.hbm_to_vmem [thread:$0]  %s7, 28672, %s61, [#allocation5], 256, 256, 16
    $region33: #{critic_forward.1} parent=1 // pred_fallthru
      _
    // Predicated region
    $region34: #{critic_forward.1} parent=1 // pred_check
      _
    $region35: #{critic_forward.1} parent=1 // pred_check_branch
      %68 = sbr.rel (0) target = $region37
    $region36: #{critic_forward.1} parent=1 // pred_region
      _
    $region37: #{critic_forward.1} parent=1 // pred_fallthru
      _
    // Predicated region
    $region38: #{critic_forward.1} parent=1 // pred_check
      _
    $region39: #{critic_forward.1} parent=1 // pred_check_branch
      %70 = sbr.rel (0) target = $region41
    $region40: #{critic_forward.1} parent=1 // pred_region
      %s72 = ssub.s32 12288, 12288
      %73 = vsyncadd [#allocation8], %s72
      %s74 = sshll.u32 [#allocation7], 4
      %s75 = int_to_ptr.vmem [resolvable:$true] %s74
      %80 = dma.hbm_to_vmem [thread:$0]  %s9, 12288, %s75, [#allocation8], 192, 192, 12
    $region41: #{critic_forward.1} parent=1 // pred_fallthru
      _
    // Predicated region
    $region42: #{critic_forward.1} parent=1 // pred_check
      _
    $region43: #{critic_forward.1} parent=1 // pred_check_branch
      %82 = sbr.rel (0) target = $region45
    $region44: #{critic_forward.1} parent=1 // pred_region
      _
    $region45: #{critic_forward.1} parent=1 // pred_fallthru
      _
    // Predicated region
    $region46: #{critic_forward.1} parent=1 // pred_check
      _
    $region47: #{critic_forward.1} parent=1 // pred_check_branch
      %84 = sbr.rel (0) target = $region49
    $region48: #{critic_forward.1} parent=1 // pred_region
      _
    $region49: #{critic_forward.1} parent=1 // pred_fallthru
      _
    // Predicated region
    $region50: #{critic_forward.1} parent=1 // pred_check
      _
    $region51: #{critic_forward.1} parent=1 // pred_check_branch
      %86 = sbr.rel (0) target = $region53
    $region52: #{critic_forward.1} parent=1 // pred_region
      _
    $region53: #{critic_forward.1} parent=1 // pred_fallthru
      _
    // Predicated region
    $region54: #{critic_forward.1} parent=1 // pred_check
      _
    $region55: #{critic_forward.1} parent=1 // pred_check_branch
      %88 = sbr.rel (0) target = $region57
    $region56: #{critic_forward.1} parent=1 // pred_region
      %89 = dma.done [#allocation3], 28672
    $region57: #{critic_forward.1} parent=1 // pred_fallthru
      _
    // Predicated region
    $region58: #{critic_forward.1} parent=1 // pred_check
      _
    $region59: #{critic_forward.1} parent=1 // pred_check_branch
      %91 = sbr.rel (0) target = $region61
    $region60: #{critic_forward.1} parent=1 // pred_region
      %92 = dma.done [#allocation5], 12288
    $region61: #{critic_forward.1} parent=1 // pred_fallthru
      _
    // Predicated region
    $region62: #{critic_forward.1} parent=1 // pred_check
      _
    $region63: #{critic_forward.1} parent=1 // pred_check_branch
      %94 = sbr.rel (0) target = $region65
    $region64: #{critic_forward.1} parent=1 // pred_region
      %95 = dma.done [#allocation5], 28672
    $region65: #{critic_forward.1} parent=1 // pred_fallthru
      _
    // Predicated region
    $region66: #{critic_forward.1} parent=1 // pred_check
      _
    $region67: #{critic_forward.1} parent=1 // pred_check_branch
      %97 = sbr.rel (0) target = $region69
    $region68: #{critic_forward.1} parent=1 // pred_region
      %98 = dma.done [#allocation8], 12288
    $region69: #{critic_forward.1} parent=1 // pred_fallthru
      _
    %v100 = vld [vmem:[%s0] sm:$0xff]
    %v101 = vpack.c.bf16 %v100, %v100
    %v102 = vld [vmem:[%s1] sm:$0xff]
    %v103 = vld [vmem:[%s1 + $0x8] sm:$0xff]
    %v104 = vld [vmem:[%s1 + $0x10] sm:$0xff]
    %v105 = vld [vmem:[%s1 + $0x18] sm:$0xff]
    %v106 = vld [vmem:[%s1 + $0x20] sm:$0xff]
    %v107 = vld [vmem:[%s1 + $0x28] sm:$0xff]
    %v108 = vld [vmem:[%s1 + $0x30] sm:$0xff]
    %v109 = vld [vmem:[%s1 + $0x38] sm:$0x33]
    %v110 = vld [vmem:[%s1 + $0x40] sm:$0x33]
    %v111 = vld [vmem:[%s1 + $0x48] sm:$0x33]
    %v112 = vld [vmem:[%s1 + $0x50] sm:$0x33]
    %v113 = vld [vmem:[%s1 + $0x58] sm:$0x33]
    %v114 = vld [vmem:[%s1 + $0x60] sm:$0x33]
    %v115 = vld [vmem:[%s1 + $0x68] sm:$0x33]
    %v130 = vunpack.c.l.b16 %v102
    %v131 = vunpack.c.h.b16 %v102
    %v132 = vunpack.c.l.b16 %v103
    %v133 = vunpack.c.h.b16 %v103
    %v134 = vunpack.c.l.b16 %v104
    %v135 = vunpack.c.h.b16 %v104
    %v136 = vunpack.c.l.b16 %v105
    %v137 = vunpack.c.h.b16 %v105
    %v138 = vunpack.c.l.b16 %v106
    %v139 = vunpack.c.h.b16 %v106
    %v140 = vunpack.c.l.b16 %v107
    %v141 = vunpack.c.h.b16 %v107
    %v142 = vunpack.c.l.b16 %v108
    %v143 = vunpack.c.h.b16 %v108
    %v144 = vunpack.c.l.b16 %v109
    %v145 = vunpack.c.h.b16 %v109
    %v146 = vunpack.c.l.b16 %v110
    %v147 = vunpack.c.h.b16 %v110
    %v148 = vunpack.c.l.b16 %v111
    %v149 = vunpack.c.h.b16 %v111
    %v150 = vunpack.c.l.b16 %v112
    %v151 = vunpack.c.h.b16 %v112
    %v152 = vunpack.c.l.b16 %v113
    %v153 = vunpack.c.h.b16 %v113
    %v154 = vunpack.c.l.b16 %v114
    %v155 = vunpack.c.h.b16 %v114
    %v156 = vunpack.c.l.b16 %v115
    %v157 = vunpack.c.h.b16 %v115
    %v158 = vpack.c.b16 %v144, %v130
    %v159 = vpack.c.b16 %v145, %v131
    %v160 = vpack.c.b16 %v146, %v132
    %v161 = vpack.c.b16 %v147, %v133
    %v162 = vpack.c.b16 %v148, %v134
    %v163 = vpack.c.b16 %v149, %v135
    %v164 = vpack.c.b16 %v150, %v136
    %v165 = vpack.c.b16 %v151, %v137
    %v166 = vpack.c.b16 %v152, %v138
    %v167 = vpack.c.b16 %v153, %v139
    %v168 = vpack.c.b16 %v154, %v140
    %v169 = vpack.c.b16 %v155, %v141
    %v170 = vpack.c.b16 %v156, %v142
    %v171 = vpack.c.b16 %v157, %v143
    %vm172 = vcmask 97280
    %v174 = vsel %vm172, %v101, 0
    %vm176 = vcmask 1045504
    %v178 = vsel %vm176, %v158, 0
    %v181 = vsel %vm176, %v159, 0
    %v184 = vsel %vm176, %v160, 0
    %v187 = vsel %vm176, %v161, 0
    %v190 = vsel %vm176, %v162, 0
    %v193 = vsel %vm176, %v163, 0
    %v196 = vsel %vm176, %v164, 0
    %v199 = vsel %vm176, %v165, 0
    %v202 = vsel %vm176, %v166, 0
    %v205 = vsel %vm176, %v167, 0
    %v208 = vsel %vm176, %v168, 0
    %v211 = vsel %vm176, %v169, 0
    %v214 = vsel %vm176, %v170, 0
    %v217 = vsel %vm176, %v171, 0
    %219 = vmatprep.subr.bf16.mxu0 %v181
    %220 = vmatpush1.bf16.msra.mxu0 %v178
    %221 = vmatprep.subr.bf16.mxu0 0
    %222 = vmatpush1.bf16.msra.mxu0 0
    %223 = vmatprep.subr.bf16.mxu0 0
    %224 = vmatpush1.bf16.msra.mxu0 0
    %225 = vmatprep.subr.bf16.mxu0 0
    %226 = vmatpush1.bf16.msra.mxu0 0
    %227 = vmatprep.subr.bf16.mxu0 0
    %228 = vmatpush1.bf16.msra.mxu0 0
    %229 = vmatprep.subr.bf16.mxu0 0
    %230 = vmatpush1.bf16.msra.mxu0 0
    %231 = vmatprep.subr.bf16.mxu0 0
    %232 = vmatpush1.bf16.msra.mxu0 0
    %233 = vmatprep.subr.bf16.mxu0 0
    %234 = vmatpush1.bf16.msra.mxu0 0
    %235 = vmatprep.subr.bf16.mxu0 0
    %236 = vmatpush1.bf16.msra.mxu0 0
    %237 = vmatprep.subr.bf16.mxu0 0
    %238 = vmatpush1.bf16.msra.mxu0 0
    %239 = vmatprep.subr.bf16.mxu0 0
    %240 = vmatpush1.bf16.msra.mxu0 0
    %241 = vmatprep.subr.bf16.mxu0 0
    %242 = vmatpush1.bf16.msra.mxu0 0
    %243 = vmatprep.subr.bf16.mxu0 0
    %244 = vmatpush1.bf16.msra.mxu0 0
    %245 = vmatprep.subr.bf16.mxu0 0
    %246 = vmatpush1.bf16.msra.mxu0 0
    %247 = vmatprep.subr.bf16.mxu0 0
    %248 = vmatpush1.bf16.msra.mxu0 0
    %249 = vmatprep.subr.bf16.mxu0 0
    %250 = vmatpush1.bf16.msra.mxu0 0
    %251 = vmatprep.mubr.bf16.mxu0 0
    %252 = vmatmul.mubr.bf16.gmra.mrb[0].mxu0 %v174
    %v253 = vpop.f32.mrb[0].mxu0
    %v254 = vadd.f32 0.0, %v253
    %v255 = vpop.f32.mrb[0].mxu0
    %v256 = vadd.f32 0.0, %v255
    %v257 = vpop.f32.mrb[0].mxu0
    %v258 = vpop.f32.mrb[0].mxu0
    %259 = vdwg.mxu0
    %260 = vmatprep.subr.bf16.mxu0 %v187
    %261 = vmatpush1.bf16.msra.mxu0 %v184
    %262 = vmatprep.subr.bf16.mxu0 0
    %263 = vmatpush1.bf16.msra.mxu0 0
    %264 = vmatprep.subr.bf16.mxu0 0
    %265 = vmatpush1.bf16.msra.mxu0 0
    %266 = vmatprep.subr.bf16.mxu0 0
    %267 = vmatpush1.bf16.msra.mxu0 0
    %268 = vmatprep.subr.bf16.mxu0 0
    %269 = vmatpush1.bf16.msra.mxu0 0
    %270 = vmatprep.subr.bf16.mxu0 0
    %271 = vmatpush1.bf16.msra.mxu0 0
    %272 = vmatprep.subr.bf16.mxu0 0
    %273 = vmatpush1.bf16.msra.mxu0 0
    %274 = vmatprep.subr.bf16.mxu0 0
    %275 = vmatpush1.bf16.msra.mxu0 0
    %276 = vmatprep.subr.bf16.mxu0 0
    %277 = vmatpush1.bf16.msra.mxu0 0
    %278 = vmatprep.subr.bf16.mxu0 0
    %279 = vmatpush1.bf16.msra.mxu0 0
    %280 = vmatprep.subr.bf16.mxu0 0
    %281 = vmatpush1.bf16.msra.mxu0 0
    %282 = vmatprep.subr.bf16.mxu0 0
    %283 = vmatpush1.bf16.msra.mxu0 0
    %284 = vmatprep.subr.bf16.mxu0 0
    %285 = vmatpush1.bf16.msra.mxu0 0
    %286 = vmatprep.subr.bf16.mxu0 0
    %287 = vmatpush1.bf16.msra.mxu0 0
    %288 = vmatprep.subr.bf16.mxu0 0
    %289 = vmatpush1.bf16.msra.mxu0 0
    %290 = vmatprep.subr.bf16.mxu0 0
    %291 = vmatpush1.bf16.msra.mxu0 0
    %292 = vmatprep.mubr.bf16.mxu0 0
    %293 = vmatmul.mubr.bf16.gmra.mrb[0].mxu0 %v174
    %v294 = vpop.f32.mrb[0].mxu0
    %v295 = vadd.f32 0.0, %v294
    %v296 = vpop.f32.mrb[0].mxu0
    %v297 = vadd.f32 0.0, %v296
    %v298 = vpop.f32.mrb[0].mxu0
    %v299 = vpop.f32.mrb[0].mxu0
    %300 = vdwg.mxu0
    %301 = vmatprep.subr.bf16.mxu0 %v193
    %302 = vmatpush1.bf16.msra.mxu0 %v190
    %303 = vmatprep.subr.bf16.mxu0 0
    %304 = vmatpush1.bf16.msra.mxu0 0
    %305 = vmatprep.subr.bf16.mxu0 0
    %306 = vmatpush1.bf16.msra.mxu0 0
    %307 = vmatprep.subr.bf16.mxu0 0
    %308 = vmatpush1.bf16.msra.mxu0 0
    %309 = vmatprep.subr.bf16.mxu0 0
    %310 = vmatpush1.bf16.msra.mxu0 0
    %311 = vmatprep.subr.bf16.mxu0 0
    %312 = vmatpush1.bf16.msra.mxu0 0
    %313 = vmatprep.subr.bf16.mxu0 0
    %314 = vmatpush1.bf16.msra.mxu0 0
    %315 = vmatprep.subr.bf16.mxu0 0
    %316 = vmatpush1.bf16.msra.mxu0 0
    %317 = vmatprep.subr.bf16.mxu0 0
    %318 = vmatpush1.bf16.msra.mxu0 0
    %319 = vmatprep.subr.bf16.mxu0 0
    %320 = vmatpush1.bf16.msra.mxu0 0
    %321 = vmatprep.subr.bf16.mxu0 0
    %322 = vmatpush1.bf16.msra.mxu0 0
    %323 = vmatprep.subr.bf16.mxu0 0
    %324 = vmatpush1.bf16.msra.mxu0 0
    %325 = vmatprep.subr.bf16.mxu0 0
    %326 = vmatpush1.bf16.msra.mxu0 0
    %327 = vmatprep.subr.bf16.mxu0 0
    %328 = vmatpush1.bf16.msra.mxu0 0
    %329 = vmatprep.subr.bf16.mxu0 0
    %330 = vmatpush1.bf16.msra.mxu0 0
    %331 = vmatprep.subr.bf16.mxu0 0
    %332 = vmatpush1.bf16.msra.mxu0 0
    %333 = vmatprep.mubr.bf16.mxu0 0
    %334 = vmatmul.mubr.bf16.gmra.mrb[0].mxu0 %v174
    %v335 = vpop.f32.mrb[0].mxu0
    %v336 = vadd.f32 0.0, %v335
    %v337 = vpop.f32.mrb[0].mxu0
    %v338 = vadd.f32 0.0, %v337
    %v339 = vpop.f32.mrb[0].mxu0
    %v340 = vpop.f32.mrb[0].mxu0
    %341 = vdwg.mxu0
    %342 = vmatprep.subr.bf16.mxu0 %v199
    %343 = vmatpush1.bf16.msra.mxu0 %v196
    %344 = vmatprep.subr.bf16.mxu0 0
    %345 = vmatpush1.bf16.msra.mxu0 0
    %346 = vmatprep.subr.bf16.mxu0 0
    %347 = vmatpush1.bf16.msra.mxu0 0
    %348 = vmatprep.subr.bf16.mxu0 0
    %349 = vmatpush1.bf16.msra.mxu0 0
    %350 = vmatprep.subr.bf16.mxu0 0
    %351 = vmatpush1.bf16.msra.mxu0 0
    %352 = vmatprep.subr.bf16.mxu0 0
    %353 = vmatpush1.bf16.msra.mxu0 0
    %354 = vmatprep.subr.bf16.mxu0 0
    %355 = vmatpush1.bf16.msra.mxu0 0
    %356 = vmatprep.subr.bf16.mxu0 0
    %357 = vmatpush1.bf16.msra.mxu0 0
    %358 = vmatprep.subr.bf16.mxu0 0
    %359 = vmatpush1.bf16.msra.mxu0 0
    %360 = vmatprep.subr.bf16.mxu0 0
    %361 = vmatpush1.bf16.msra.mxu0 0
    %362 = vmatprep.subr.bf16.mxu0 0
    %363 = vmatpush1.bf16.msra.mxu0 0
    %364 = vmatprep.subr.bf16.mxu0 0
    %365 = vmatpush1.bf16.msra.mxu0 0
    %366 = vmatprep.subr.bf16.mxu0 0
    %367 = vmatpush1.bf16.msra.mxu0 0
    %368 = vmatprep.subr.bf16.mxu0 0
    %369 = vmatpush1.bf16.msra.mxu0 0
    %370 = vmatprep.subr.bf16.mxu0 0
    %371 = vmatpush1.bf16.msra.mxu0 0
    %372 = vmatprep.subr.bf16.mxu0 0
    %373 = vmatpush1.bf16.msra.mxu0 0
    %374 = vmatprep.mubr.bf16.mxu0 0
    %375 = vmatmul.mubr.bf16.gmra.mrb[0].mxu0 %v174
    %v376 = vpop.f32.mrb[0].mxu0
    %v377 = vadd.f32 0.0, %v376
    %v378 = vpop.f32.mrb[0].mxu0
    %v379 = vadd.f32 0.0, %v378
    %v380 = vpop.f32.mrb[0].mxu0
    %v381 = vpop.f32.mrb[0].mxu0
    %382 = vdwg.mxu0
    %383 = vmatprep.subr.bf16.mxu0 %v205
    %384 = vmatpush1.bf16.msra.mxu0 %v202
    %385 = vmatprep.subr.bf16.mxu0 0
    %386 = vmatpush1.bf16.msra.mxu0 0
    %387 = vmatprep.subr.bf16.mxu0 0
    %388 = vmatpush1.bf16.msra.mxu0 0
    %389 = vmatprep.subr.bf16.mxu0 0
    %390 = vmatpush1.bf16.msra.mxu0 0
    %391 = vmatprep.subr.bf16.mxu0 0
    %392 = vmatpush1.bf16.msra.mxu0 0
    %393 = vmatprep.subr.bf16.mxu0 0
    %394 = vmatpush1.bf16.msra.mxu0 0
    %395 = vmatprep.subr.bf16.mxu0 0
    %396 = vmatpush1.bf16.msra.mxu0 0
    %397 = vmatprep.subr.bf16.mxu0 0
    %398 = vmatpush1.bf16.msra.mxu0 0
    %399 = vmatprep.subr.bf16.mxu0 0
    %400 = vmatpush1.bf16.msra.mxu0 0
    %401 = vmatprep.subr.bf16.mxu0 0
    %402 = vmatpush1.bf16.msra.mxu0 0
    %403 = vmatprep.subr.bf16.mxu0 0
    %404 = vmatpush1.bf16.msra.mxu0 0
    %405 = vmatprep.subr.bf16.mxu0 0
    %406 = vmatpush1.bf16.msra.mxu0 0
    %407 = vmatprep.subr.bf16.mxu0 0
    %408 = vmatpush1.bf16.msra.mxu0 0
    %409 = vmatprep.subr.bf16.mxu0 0
    %410 = vmatpush1.bf16.msra.mxu0 0
    %411 = vmatprep.subr.bf16.mxu0 0
    %412 = vmatpush1.bf16.msra.mxu0 0
    %413 = vmatprep.subr.bf16.mxu0 0
    %414 = vmatpush1.bf16.msra.mxu0 0
    %415 = vmatprep.mubr.bf16.mxu0 0
    %416 = vmatmul.mubr.bf16.gmra.mrb[0].mxu0 %v174
    %v417 = vpop.f32.mrb[0].mxu0
    %v418 = vadd.f32 0.0, %v417
    %v419 = vpop.f32.mrb[0].mxu0
    %v420 = vadd.f32 0.0, %v419
    %v421 = vpop.f32.mrb[0].mxu0
    %v422 = vpop.f32.mrb[0].mxu0
    %423 = vdwg.mxu0
    %424 = vmatprep.subr.bf16.mxu0 %v211
    %425 = vmatpush1.bf16.msra.mxu0 %v208
    %426 = vmatprep.subr.bf16.mxu0 0
    %427 = vmatpush1.bf16.msra.mxu0 0
    %428 = vmatprep.subr.bf16.mxu0 0
    %429 = vmatpush1.bf16.msra.mxu0 0
    %430 = vmatprep.subr.bf16.mxu0 0
    %431 = vmatpush1.bf16.msra.mxu0 0
    %432 = vmatprep.subr.bf16.mxu0 0
    %433 = vmatpush1.bf16.msra.mxu0 0
    %434 = vmatprep.subr.bf16.mxu0 0
    %435 = vmatpush1.bf16.msra.mxu0 0
    %436 = vmatprep.subr.bf16.mxu0 0
    %437 = vmatpush1.bf16.msra.mxu0 0
    %438 = vmatprep.subr.bf16.mxu0 0
    %439 = vmatpush1.bf16.msra.mxu0 0
    %440 = vmatprep.subr.bf16.mxu0 0
    %441 = vmatpush1.bf16.msra.mxu0 0
    %442 = vmatprep.subr.bf16.mxu0 0
    %443 = vmatpush1.bf16.msra.mxu0 0
    %444 = vmatprep.subr.bf16.mxu0 0
    %445 = vmatpush1.bf16.msra.mxu0 0
    %446 = vmatprep.subr.bf16.mxu0 0
    %447 = vmatpush1.bf16.msra.mxu0 0
    %448 = vmatprep.subr.bf16.mxu0 0
    %449 = vmatpush1.bf16.msra.mxu0 0
    %450 = vmatprep.subr.bf16.mxu0 0
    %451 = vmatpush1.bf16.msra.mxu0 0
    %452 = vmatprep.subr.bf16.mxu0 0
    %453 = vmatpush1.bf16.msra.mxu0 0
    %454 = vmatprep.subr.bf16.mxu0 0
    %455 = vmatpush1.bf16.msra.mxu0 0
    %456 = vmatprep.mubr.bf16.mxu0 0
    %457 = vmatmul.mubr.bf16.gmra.mrb[0].mxu0 %v174
    %v458 = vpop.f32.mrb[0].mxu0
    %v459 = vadd.f32 0.0, %v458
    %v460 = vpop.f32.mrb[0].mxu0
    %v461 = vadd.f32 0.0, %v460
    %v462 = vpop.f32.mrb[0].mxu0
    %v463 = vpop.f32.mrb[0].mxu0
    %464 = vdwg.mxu0
    %465 = vmatprep.subr.bf16.mxu0 %v217
    %466 = vmatpush1.bf16.msra.mxu0 %v214
    %467 = vmatprep.subr.bf16.mxu0 0
    %468 = vmatpush1.bf16.msra.mxu0 0
    %469 = vmatprep.subr.bf16.mxu0 0
    %470 = vmatpush1.bf16.msra.mxu0 0
    %471 = vmatprep.subr.bf16.mxu0 0
    %472 = vmatpush1.bf16.msra.mxu0 0
    %473 = vmatprep.subr.bf16.mxu0 0
    %474 = vmatpush1.bf16.msra.mxu0 0
    %475 = vmatprep.subr.bf16.mxu0 0
    %476 = vmatpush1.bf16.msra.mxu0 0
    %477 = vmatprep.subr.bf16.mxu0 0
    %478 = vmatpush1.bf16.msra.mxu0 0
    %479 = vmatprep.subr.bf16.mxu0 0
    %480 = vmatpush1.bf16.msra.mxu0 0
    %481 = vmatprep.subr.bf16.mxu0 0
    %482 = vmatpush1.bf16.msra.mxu0 0
    %483 = vmatprep.subr.bf16.mxu0 0
    %484 = vmatpush1.bf16.msra.mxu0 0
    %485 = vmatprep.subr.bf16.mxu0 0
    %486 = vmatpush1.bf16.msra.mxu0 0
    %487 = vmatprep.subr.bf16.mxu0 0
    %488 = vmatpush1.bf16.msra.mxu0 0
    %489 = vmatprep.subr.bf16.mxu0 0
    %490 = vmatpush1.bf16.msra.mxu0 0
    %491 = vmatprep.subr.bf16.mxu0 0
    %492 = vmatpush1.bf16.msra.mxu0 0
    %493 = vmatprep.subr.bf16.mxu0 0
    %494 = vmatpush1.bf16.msra.mxu0 0
    %495 = vmatprep.subr.bf16.mxu0 0
    %496 = vmatpush1.bf16.msra.mxu0 0
    %497 = vmatprep.mubr.bf16.mxu0 0
    %498 = vmatmul.mubr.bf16.gmra.mrb[0].mxu0 %v174
    %v499 = vpop.f32.mrb[0].mxu0
    %v500 = vadd.f32 0.0, %v499
    %v501 = vpop.f32.mrb[0].mxu0
    %v502 = vadd.f32 0.0, %v501
    %v503 = vpop.f32.mrb[0].mxu0
    %v504 = vpop.f32.mrb[0].mxu0
    %505 = vdwg.mxu0
    %v506 = vpack.c.bf16 %v254, %v254
    %v507 = vpack.c.bf16 %v256, %v256
    %v508 = vpack.c.bf16 %v295, %v295
    %v509 = vpack.c.bf16 %v297, %v297
    %v510 = vpack.c.bf16 %v336, %v336
    %v511 = vpack.c.bf16 %v338, %v338
    %v512 = vpack.c.bf16 %v377, %v377
    %v513 = vpack.c.bf16 %v379, %v379
    %v514 = vpack.c.bf16 %v418, %v418
    %v515 = vpack.c.bf16 %v420, %v420
    %v516 = vpack.c.bf16 %v459, %v459
    %v517 = vpack.c.bf16 %v461, %v461
    %v518 = vpack.c.bf16 %v500, %v500
    %v519 = vpack.c.bf16 %v502, %v502
    %v520 = vld [vmem:[%s2] sm:$0xff]
    %v521 = vld [vmem:[%s2 + $0x8] sm:$0x3f]
    %v524 = vcombine.high %v520, %v520
    %v526 = vunpack.c.l.s4 1966171168
    %v527 = vunpack.c.0.s8 %v526
    %v528 = vlaneseq
    %v529 = vshrl.u32 %v528, 7
    %v530 = vsub.s32 %v527, %v529
    %v531 = vrot.slane %v520, %v530
    %v533 = vunpack.c.l.s4 1966171168
    %v534 = vunpack.c.0.s8 %v533
    %v535 = vlaneseq
    %v536 = vshrl.u32 %v535, 7
    %v537 = vsub.s32 %v534, %v536
    %v538 = vrot.slane %v524, %v537
    %v539 = vcombine.high %v531, %v531
    %v540 = vcombine.high %v538, %v538
    %v542 = vunpack.c.l.s4 1966171168
    %v543 = vunpack.c.0.s8 %v542
    %v544 = vlaneseq
    %v545 = vshrl.u32 %v544, 7
    %v546 = vsub.s32 %v543, %v545
    %v547 = vrot.slane %v531, %v546
    %v549 = vunpack.c.l.s4 1966171168
    %v550 = vunpack.c.0.s8 %v549
    %v551 = vlaneseq
    %v552 = vshrl.u32 %v551, 7
    %v553 = vsub.s32 %v550, %v552
    %v554 = vrot.slane %v538, %v553
    %v556 = vunpack.c.l.s4 1966171168
    %v557 = vunpack.c.0.s8 %v556
    %v558 = vlaneseq
    %v559 = vshrl.u32 %v558, 7
    %v560 = vsub.s32 %v557, %v559
    %v561 = vrot.slane %v539, %v560
    %v563 = vunpack.c.l.s4 1966171168
    %v564 = vunpack.c.0.s8 %v563
    %v565 = vlaneseq
    %v566 = vshrl.u32 %v565, 7
    %v567 = vsub.s32 %v564, %v566
    %v568 = vrot.slane %v540, %v567
    %v569 = vcombine.high %v547, %v547
    %v570 = vcombine.high %v554, %v554
    %v571 = vcombine.high %v561, %v561
    %v572 = vcombine.high %v568, %v568
    %v573 = vcombine.high %v521, %v521
    %v575 = vunpack.c.l.s4 1966171168
    %v576 = vunpack.c.0.s8 %v575
    %v577 = vlaneseq
    %v578 = vshrl.u32 %v577, 7
    %v579 = vsub.s32 %v576, %v578
    %v580 = vrot.slane %v521, %v579
    %v582 = vunpack.c.l.s4 1966171168
    %v583 = vunpack.c.0.s8 %v582
    %v584 = vlaneseq
    %v585 = vshrl.u32 %v584, 7
    %v586 = vsub.s32 %v583, %v585
    %v587 = vrot.slane %v573, %v586
    %v588 = vcombine.high %v580, %v580
    %v589 = vcombine.high %v587, %v587
    %v591 = vunpack.c.l.s4 1966171168
    %v592 = vunpack.c.0.s8 %v591
    %v593 = vlaneseq
    %v594 = vshrl.u32 %v593, 7
    %v595 = vsub.s32 %v592, %v594
    %v596 = vrot.slane %v580, %v595
    %v598 = vunpack.c.l.s4 1966171168
    %v599 = vunpack.c.0.s8 %v598
    %v600 = vlaneseq
    %v601 = vshrl.u32 %v600, 7
    %v602 = vsub.s32 %v599, %v601
    %v603 = vrot.slane %v587, %v602
    %v605 = vunpack.c.l.s4 1966171168
    %v606 = vunpack.c.0.s8 %v605
    %v607 = vlaneseq
    %v608 = vshrl.u32 %v607, 7
    %v609 = vsub.s32 %v606, %v608
    %v610 = vrot.slane %v588, %v609
    %v612 = vunpack.c.l.s4 1966171168
    %v613 = vunpack.c.0.s8 %v612
    %v614 = vlaneseq
    %v615 = vshrl.u32 %v614, 7
    %v616 = vsub.s32 %v613, %v615
    %v617 = vrot.slane %v589, %v616
    %v618 = vcombine.high %v596, %v596
    %v619 = vcombine.high %v610, %v610
    %v621 = vpack.i.b16 %v547, %v547
    %v623 = vlaneseq
    %v624 = vshrl.u32 %v623, 7
    %v625 = vsub.s32 0, %v624
    %v626 = vrot.slane %v621, %v625
    %v628 = vpack.i.b16 %v561, %v561
    %v630 = vlaneseq
    %v631 = vshrl.u32 %v630, 7
    %v632 = vsub.s32 0, %v631
    %v633 = vrot.slane %v628, %v632
    %v635 = vpack.i.b16 %v569, %v569
    %v637 = vlaneseq
    %v638 = vshrl.u32 %v637, 7
    %v639 = vsub.s32 0, %v638
    %v640 = vrot.slane %v635, %v639
    %v642 = vpack.i.b16 %v571, %v571
    %v644 = vlaneseq
    %v645 = vshrl.u32 %v644, 7
    %v646 = vsub.s32 0, %v645
    %v647 = vrot.slane %v642, %v646
    %v649 = vpack.i.b16 %v554, %v554
    %v651 = vlaneseq
    %v652 = vshrl.u32 %v651, 7
    %v653 = vsub.s32 0, %v652
    %v654 = vrot.slane %v649, %v653
    %v656 = vpack.i.b16 %v568, %v568
    %v658 = vlaneseq
    %v659 = vshrl.u32 %v658, 7
    %v660 = vsub.s32 0, %v659
    %v661 = vrot.slane %v656, %v660
    %v663 = vpack.i.b16 %v570, %v570
    %v665 = vlaneseq
    %v666 = vshrl.u32 %v665, 7
    %v667 = vsub.s32 0, %v666
    %v668 = vrot.slane %v663, %v667
    %v670 = vpack.i.b16 %v572, %v572
    %v672 = vlaneseq
    %v673 = vshrl.u32 %v672, 7
    %v674 = vsub.s32 0, %v673
    %v675 = vrot.slane %v670, %v674
    %v677 = vpack.i.b16 %v596, %v596
    %v679 = vlaneseq
    %v680 = vshrl.u32 %v679, 7
    %v681 = vsub.s32 0, %v680
    %v682 = vrot.slane %v677, %v681
    %v684 = vpack.i.b16 %v610, %v610
    %v686 = vlaneseq
    %v687 = vshrl.u32 %v686, 7
    %v688 = vsub.s32 0, %v687
    %v689 = vrot.slane %v684, %v688
    %v691 = vpack.i.b16 %v618, %v618
    %v693 = vlaneseq
    %v694 = vshrl.u32 %v693, 7
    %v695 = vsub.s32 0, %v694
    %v696 = vrot.slane %v691, %v695
    %v698 = vpack.i.b16 %v619, %v619
    %v700 = vlaneseq
    %v701 = vshrl.u32 %v700, 7
    %v702 = vsub.s32 0, %v701
    %v703 = vrot.slane %v698, %v702
    %v705 = vpack.i.b16 %v603, %v603
    %v707 = vlaneseq
    %v708 = vshrl.u32 %v707, 7
    %v709 = vsub.s32 0, %v708
    %v710 = vrot.slane %v705, %v709
    %v712 = vpack.i.b16 %v617, %v617
    %v714 = vlaneseq
    %v715 = vshrl.u32 %v714, 7
    %v716 = vsub.s32 0, %v715
    %v717 = vrot.slane %v712, %v716
    %v718 = vadd.bf16 %v506, %v626
    %v719 = vadd.bf16 %v507, %v633
    %v720 = vadd.bf16 %v508, %v640
    %v721 = vadd.bf16 %v509, %v647
    %v722 = vadd.bf16 %v510, %v654
    %v723 = vadd.bf16 %v511, %v661
    %v724 = vadd.bf16 %v512, %v668
    %v725 = vadd.bf16 %v513, %v675
    %v726 = vadd.bf16 %v514, %v682
    %v727 = vadd.bf16 %v515, %v689
    %v728 = vadd.bf16 %v516, %v696
    %v729 = vadd.bf16 %v517, %v703
    %v730 = vadd.bf16 %v518, %v710
    %v731 = vadd.bf16 %v519, %v717
    %v732 = vmax.bf16 %v718, 0
    %v733 = vmax.bf16 %v719, 0
    %v734 = vmax.bf16 %v720, 0
    %v735 = vmax.bf16 %v721, 0
    %v736 = vmax.bf16 %v722, 0
    %v737 = vmax.bf16 %v723, 0
    %v738 = vmax.bf16 %v724, 0
    %v739 = vmax.bf16 %v725, 0
    %v740 = vmax.bf16 %v726, 0
    %v741 = vmax.bf16 %v727, 0
    %v742 = vmax.bf16 %v728, 0
    %v743 = vmax.bf16 %v729, 0
    %v744 = vmax.bf16 %v730, 0
    %v745 = vmax.bf16 %v731, 0
    %v746 = vld [vmem:[#allocation2] sm:$0xff]
    %v747 = vld [vmem:[#allocation2 + $0x8] sm:$0xff]
    %v748 = vld [vmem:[#allocation2 + $0x10] sm:$0xff]
    %v749 = vld [vmem:[#allocation2 + $0x18] sm:$0xff]
    %v750 = vld [vmem:[#allocation2 + $0x20] sm:$0xff]
    %v751 = vld [vmem:[#allocation2 + $0x28] sm:$0xff]
    %v752 = vld [vmem:[#allocation2 + $0x30] sm:$0xff]
    %v753 = vld [vmem:[#allocation2 + $0x38] sm:$0xff]
    %v754 = vld [vmem:[#allocation2 + $0x40] sm:$0xff]
    %v755 = vld [vmem:[#allocation2 + $0x48] sm:$0xff]
    %v756 = vld [vmem:[#allocation2 + $0x50] sm:$0xff]
    %v757 = vld [vmem:[#allocation2 + $0x58] sm:$0xff]
    %v758 = vld [vmem:[#allocation2 + $0x60] sm:$0xff]
    %v759 = vld [vmem:[#allocation2 + $0x68] sm:$0xff]
    %v760 = vld [vmem:[#allocation2 + $0x70] sm:$0xff]
    %v761 = vld [vmem:[#allocation2 + $0x78] sm:$0xff]
    %v762 = vld [vmem:[#allocation2 + $0x80] sm:$0xff]
    %v763 = vld [vmem:[#allocation2 + $0x88] sm:$0xff]
    %v764 = vld [vmem:[#allocation2 + $0x90] sm:$0xff]
    %v765 = vld [vmem:[#allocation2 + $0x98] sm:$0xff]
    %v766 = vld [vmem:[#allocation2 + $0xa0] sm:$0xff]
    %v767 = vld [vmem:[#allocation2 + $0xa8] sm:$0xff]
    %v768 = vld [vmem:[#allocation2 + $0xb0] sm:$0xff]
    %v769 = vld [vmem:[#allocation2 + $0xb8] sm:$0xff]
    %v770 = vld [vmem:[#allocation2 + $0xc0] sm:$0xff]
    %v771 = vld [vmem:[#allocation2 + $0xc8] sm:$0xff]
    %v772 = vld [vmem:[#allocation2 + $0xd0] sm:$0xff]
    %v773 = vld [vmem:[#allocation2 + $0xd8] sm:$0xff]
    %v774 = vld [vmem:[#allocation2 + $0xe0] sm:$0xff]
    %v775 = vld [vmem:[#allocation2 + $0xe8] sm:$0xff]
    %v776 = vld [vmem:[#allocation2 + $0xf0] sm:$0xff]
    %v777 = vld [vmem:[#allocation2 + $0xf8] sm:$0xff]
    %v778 = vld [vmem:[#allocation2 + $0x100] sm:$0xff]
    %v779 = vld [vmem:[#allocation2 + $0x108] sm:$0xff]
    %v780 = vld [vmem:[#allocation2 + $0x110] sm:$0xff]
    %v781 = vld [vmem:[#allocation2 + $0x118] sm:$0xff]
    %v782 = vld [vmem:[#allocation2 + $0x120] sm:$0xff]
    %v783 = vld [vmem:[#allocation2 + $0x128] sm:$0xff]
    %v784 = vld [vmem:[#allocation2 + $0x130] sm:$0xff]
    %v785 = vld [vmem:[#allocation2 + $0x138] sm:$0xff]
    %v786 = vld [vmem:[#allocation2 + $0x140] sm:$0xff]
    %v787 = vld [vmem:[#allocation2 + $0x148] sm:$0xff]
    %v788 = vld [vmem:[#allocation2 + $0x150] sm:$0xff]
    %v789 = vld [vmem:[#allocation2 + $0x158] sm:$0xff]
    %v790 = vld [vmem:[#allocation2 + $0x160] sm:$0xff]
    %v791 = vld [vmem:[#allocation2 + $0x168] sm:$0xff]
    %v792 = vld [vmem:[#allocation2 + $0x170] sm:$0xff]
    %v793 = vld [vmem:[#allocation2 + $0x178] sm:$0xff]
    %v794 = vld [vmem:[#allocation2 + $0x180] sm:$0xff]
    %v795 = vld [vmem:[#allocation2 + $0x188] sm:$0xff]
    %v796 = vld [vmem:[#allocation2 + $0x190] sm:$0xff]
    %v797 = vld [vmem:[#allocation2 + $0x198] sm:$0xff]
    %v798 = vld [vmem:[#allocation2 + $0x1a0] sm:$0xff]
    %v799 = vld [vmem:[#allocation2 + $0x1a8] sm:$0xff]
    %v800 = vld [vmem:[#allocation2 + $0x1b0] sm:$0xff]
    %v801 = vld [vmem:[#allocation2 + $0x1b8] sm:$0xff]
    %v802 = vld [vmem:[#allocation2 + $0x1c0] sm:$0xff]
    %v803 = vld [vmem:[#allocation2 + $0x1c8] sm:$0xff]
    %v804 = vld [vmem:[#allocation2 + $0x1d0] sm:$0xff]
    %v805 = vld [vmem:[#allocation2 + $0x1d8] sm:$0xff]
    %v806 = vld [vmem:[#allocation2 + $0x1e0] sm:$0xff]
    %v807 = vld [vmem:[#allocation2 + $0x1e8] sm:$0xff]
    %v808 = vld [vmem:[#allocation2 + $0x1f0] sm:$0xff]
    %v809 = vld [vmem:[#allocation2 + $0x1f8] sm:$0xff]
    %v810 = vld [vmem:[#allocation2 + $0x200] sm:$0xff]
    %v811 = vld [vmem:[#allocation2 + $0x208] sm:$0xff]
    %v812 = vld [vmem:[#allocation2 + $0x210] sm:$0xff]
    %v813 = vld [vmem:[#allocation2 + $0x218] sm:$0xff]
    %v814 = vld [vmem:[#allocation2 + $0x220] sm:$0xff]
    %v815 = vld [vmem:[#allocation2 + $0x228] sm:$0xff]
    %v816 = vld [vmem:[#allocation2 + $0x230] sm:$0xff]
    %v817 = vld [vmem:[#allocation2 + $0x238] sm:$0xff]
    %v818 = vld [vmem:[#allocation2 + $0x240] sm:$0xff]
    %v819 = vld [vmem:[#allocation2 + $0x248] sm:$0xff]
    %v820 = vld [vmem:[#allocation2 + $0x250] sm:$0xff]
    %v821 = vld [vmem:[#allocation2 + $0x258] sm:$0xff]
    %v822 = vld [vmem:[#allocation2 + $0x260] sm:$0xff]
    %v823 = vld [vmem:[#allocation2 + $0x268] sm:$0xff]
    %v824 = vld [vmem:[#allocation2 + $0x270] sm:$0xff]
    %v825 = vld [vmem:[#allocation2 + $0x278] sm:$0xff]
    %v826 = vld [vmem:[#allocation2 + $0x280] sm:$0xff]
    %v827 = vld [vmem:[#allocation2 + $0x288] sm:$0xff]
    %v828 = vld [vmem:[#allocation2 + $0x290] sm:$0xff]
    %v829 = vld [vmem:[#allocation2 + $0x298] sm:$0xff]
    %v830 = vld [vmem:[#allocation2 + $0x2a0] sm:$0xff]
    %v831 = vld [vmem:[#allocation2 + $0x2a8] sm:$0xff]
    %v832 = vld [vmem:[#allocation2 + $0x2b0] sm:$0xff]
    %v833 = vld [vmem:[#allocation2 + $0x2b8] sm:$0xff]
    %v834 = vld [vmem:[#allocation2 + $0x2c0] sm:$0xff]
    %v835 = vld [vmem:[#allocation2 + $0x2c8] sm:$0xff]
    %v836 = vld [vmem:[#allocation2 + $0x2d0] sm:$0xff]
    %v837 = vld [vmem:[#allocation2 + $0x2d8] sm:$0xff]
    %v838 = vld [vmem:[#allocation2 + $0x2e0] sm:$0xff]
    %v839 = vld [vmem:[#allocation2 + $0x2e8] sm:$0xff]
    %v840 = vld [vmem:[#allocation2 + $0x2f0] sm:$0xff]
    %v841 = vld [vmem:[#allocation2 + $0x2f8] sm:$0xff]
    %v842 = vld [vmem:[#allocation2 + $0x300] sm:$0xff]
    %v843 = vld [vmem:[#allocation2 + $0x308] sm:$0xff]
    %v844 = vld [vmem:[#allocation2 + $0x310] sm:$0xff]
    %v845 = vld [vmem:[#allocation2 + $0x318] sm:$0xff]
    %v846 = vld [vmem:[#allocation2 + $0x320] sm:$0xff]
    %v847 = vld [vmem:[#allocation2 + $0x328] sm:$0xff]
    %v848 = vld [vmem:[#allocation2 + $0x330] sm:$0xff]
    %v849 = vld [vmem:[#allocation2 + $0x338] sm:$0xff]
    %v850 = vld [vmem:[#allocation2 + $0x340] sm:$0xff]
    %v851 = vld [vmem:[#allocation2 + $0x348] sm:$0xff]
    %v852 = vld [vmem:[#allocation2 + $0x350] sm:$0xff]
    %v853 = vld [vmem:[#allocation2 + $0x358] sm:$0xff]
    %v854 = vld [vmem:[#allocation2 + $0x360] sm:$0xff]
    %v855 = vld [vmem:[#allocation2 + $0x368] sm:$0xff]
    %v856 = vld [vmem:[#allocation2 + $0x370] sm:$0xff]
    %v857 = vld [vmem:[#allocation2 + $0x378] sm:$0xff]
    %v858 = vld [vmem:[#allocation2 + $0x380] sm:$0xff]
    %v859 = vld [vmem:[#allocation2 + $0x388] sm:$0xff]
    %v860 = vld [vmem:[#allocation2 + $0x390] sm:$0xff]
    %v861 = vld [vmem:[#allocation2 + $0x398] sm:$0xff]
    %v862 = vld [vmem:[#allocation2 + $0x3a0] sm:$0xff]
    %v863 = vld [vmem:[#allocation2 + $0x3a8] sm:$0xff]
    %v864 = vld [vmem:[#allocation2 + $0x3b0] sm:$0xff]
    %v865 = vld [vmem:[#allocation2 + $0x3b8] sm:$0xff]
    %v866 = vld [vmem:[#allocation2 + $0x3c0] sm:$0xff]
    %v867 = vld [vmem:[#allocation2 + $0x3c8] sm:$0xff]
    %v868 = vld [vmem:[#allocation2 + $0x3d0] sm:$0xff]
    %v869 = vld [vmem:[#allocation2 + $0x3d8] sm:$0xff]
    %v870 = vld [vmem:[#allocation2 + $0x3e0] sm:$0xff]
    %v871 = vld [vmem:[#allocation2 + $0x3e8] sm:$0xff]
    %v872 = vld [vmem:[#allocation2 + $0x3f0] sm:$0xff]
    %v873 = vld [vmem:[#allocation2 + $0x3f8] sm:$0xff]
    %v874 = vld [vmem:[#allocation2 + $0x400] sm:$0xff]
    %v875 = vld [vmem:[#allocation2 + $0x408] sm:$0xff]
    %v876 = vld [vmem:[#allocation2 + $0x410] sm:$0xff]
    %v877 = vld [vmem:[#allocation2 + $0x418] sm:$0xff]
    %v878 = vld [vmem:[#allocation2 + $0x420] sm:$0xff]
    %v879 = vld [vmem:[#allocation2 + $0x428] sm:$0xff]
    %v880 = vld [vmem:[#allocation2 + $0x430] sm:$0xff]
    %v881 = vld [vmem:[#allocation2 + $0x438] sm:$0xff]
    %v882 = vld [vmem:[#allocation2 + $0x440] sm:$0xff]
    %v883 = vld [vmem:[#allocation2 + $0x448] sm:$0xff]
    %v884 = vld [vmem:[#allocation2 + $0x450] sm:$0xff]
    %v885 = vld [vmem:[#allocation2 + $0x458] sm:$0xff]
    %v886 = vld [vmem:[#allocation2 + $0x460] sm:$0xff]
    %v887 = vld [vmem:[#allocation2 + $0x468] sm:$0xff]
    %v888 = vld [vmem:[#allocation2 + $0x470] sm:$0xff]
    %v889 = vld [vmem:[#allocation2 + $0x478] sm:$0xff]
    %v890 = vld [vmem:[#allocation2 + $0x480] sm:$0xff]
    %v891 = vld [vmem:[#allocation2 + $0x488] sm:$0xff]
    %v892 = vld [vmem:[#allocation2 + $0x490] sm:$0xff]
    %v893 = vld [vmem:[#allocation2 + $0x498] sm:$0xff]
    %v894 = vld [vmem:[#allocation2 + $0x4a0] sm:$0xff]
    %v895 = vld [vmem:[#allocation2 + $0x4a8] sm:$0xff]
    %v896 = vld [vmem:[#allocation2 + $0x4b0] sm:$0xff]
    %v897 = vld [vmem:[#allocation2 + $0x4b8] sm:$0xff]
    %v898 = vld [vmem:[#allocation2 + $0x4c0] sm:$0xff]
    %v899 = vld [vmem:[#allocation2 + $0x4c8] sm:$0xff]
    %v900 = vld [vmem:[#allocation2 + $0x4d0] sm:$0xff]
    %v901 = vld [vmem:[#allocation2 + $0x4d8] sm:$0xff]
    %v902 = vld [vmem:[#allocation2 + $0x4e0] sm:$0xff]
    %v903 = vld [vmem:[#allocation2 + $0x4e8] sm:$0xff]
    %v904 = vld [vmem:[#allocation2 + $0x4f0] sm:$0xff]
    %v905 = vld [vmem:[#allocation2 + $0x4f8] sm:$0xff]
    %v906 = vld [vmem:[#allocation2 + $0x500] sm:$0xff]
    %v907 = vld [vmem:[#allocation2 + $0x508] sm:$0xff]
    %v908 = vld [vmem:[#allocation2 + $0x510] sm:$0xff]
    %v909 = vld [vmem:[#allocation2 + $0x518] sm:$0xff]
    %v910 = vld [vmem:[#allocation2 + $0x520] sm:$0xff]
    %v911 = vld [vmem:[#allocation2 + $0x528] sm:$0xff]
    %v912 = vld [vmem:[#allocation2 + $0x530] sm:$0xff]
    %v913 = vld [vmem:[#allocation2 + $0x538] sm:$0xff]
    %v914 = vld [vmem:[#allocation2 + $0x540] sm:$0xff]
    %v915 = vld [vmem:[#allocation2 + $0x548] sm:$0xff]
    %v916 = vld [vmem:[#allocation2 + $0x550] sm:$0xff]
    %v917 = vld [vmem:[#allocation2 + $0x558] sm:$0xff]
    %v918 = vld [vmem:[#allocation2 + $0x560] sm:$0xff]
    %v919 = vld [vmem:[#allocation2 + $0x568] sm:$0xff]
    %v920 = vld [vmem:[#allocation2 + $0x570] sm:$0xff]
    %v921 = vld [vmem:[#allocation2 + $0x578] sm:$0xff]
    %v922 = vld [vmem:[#allocation2 + $0x580] sm:$0xff]
    %v923 = vld [vmem:[#allocation2 + $0x588] sm:$0xff]
    %v924 = vld [vmem:[#allocation2 + $0x590] sm:$0xff]
    %v925 = vld [vmem:[#allocation2 + $0x598] sm:$0xff]
    %v926 = vld [vmem:[#allocation2 + $0x5a0] sm:$0xff]
    %v927 = vld [vmem:[#allocation2 + $0x5a8] sm:$0xff]
    %v928 = vld [vmem:[#allocation2 + $0x5b0] sm:$0xff]
    %v929 = vld [vmem:[#allocation2 + $0x5b8] sm:$0xff]
    %v930 = vld [vmem:[#allocation2 + $0x5c0] sm:$0xff]
    %v931 = vld [vmem:[#allocation2 + $0x5c8] sm:$0xff]
    %v932 = vld [vmem:[#allocation2 + $0x5d0] sm:$0xff]
    %v933 = vld [vmem:[#allocation2 + $0x5d8] sm:$0xff]
    %v934 = vld [vmem:[#allocation2 + $0x5e0] sm:$0xff]
    %v935 = vld [vmem:[#allocation2 + $0x5e8] sm:$0xff]
    %v936 = vld [vmem:[#allocation2 + $0x5f0] sm:$0xff]
    %v937 = vld [vmem:[#allocation2 + $0x5f8] sm:$0xff]
    %v938 = vld [vmem:[#allocation2 + $0x600] sm:$0xff]
    %v939 = vld [vmem:[#allocation2 + $0x608] sm:$0xff]
    %v940 = vld [vmem:[#allocation2 + $0x610] sm:$0xff]
    %v941 = vld [vmem:[#allocation2 + $0x618] sm:$0xff]
    %v942 = vld [vmem:[#allocation2 + $0x620] sm:$0xff]
    %v943 = vld [vmem:[#allocation2 + $0x628] sm:$0xff]
    %v944 = vld [vmem:[#allocation2 + $0x630] sm:$0xff]
    %v945 = vld [vmem:[#allocation2 + $0x638] sm:$0xff]
    %v946 = vld [vmem:[#allocation2 + $0x640] sm:$0xff]
    %v947 = vld [vmem:[#allocation2 + $0x648] sm:$0xff]
    %v948 = vld [vmem:[#allocation2 + $0x650] sm:$0xff]
    %v949 = vld [vmem:[#allocation2 + $0x658] sm:$0xff]
    %v950 = vld [vmem:[#allocation2 + $0x660] sm:$0xff]
    %v951 = vld [vmem:[#allocation2 + $0x668] sm:$0xff]
    %v952 = vld [vmem:[#allocation2 + $0x670] sm:$0xff]
    %v953 = vld [vmem:[#allocation2 + $0x678] sm:$0xff]
    %v954 = vld [vmem:[#allocation2 + $0x680] sm:$0xff]
    %v955 = vld [vmem:[#allocation2 + $0x688] sm:$0xff]
    %v956 = vld [vmem:[#allocation2 + $0x690] sm:$0xff]
    %v957 = vld [vmem:[#allocation2 + $0x698] sm:$0xff]
    %v958 = vld [vmem:[#allocation2 + $0x6a0] sm:$0xff]
    %v959 = vld [vmem:[#allocation2 + $0x6a8] sm:$0xff]
    %v960 = vld [vmem:[#allocation2 + $0x6b0] sm:$0xff]
    %v961 = vld [vmem:[#allocation2 + $0x6b8] sm:$0xff]
    %v962 = vld [vmem:[#allocation2 + $0x6c0] sm:$0xff]
    %v963 = vld [vmem:[#allocation2 + $0x6c8] sm:$0xff]
    %v964 = vld [vmem:[#allocation2 + $0x6d0] sm:$0xff]
    %v965 = vld [vmem:[#allocation2 + $0x6d8] sm:$0xff]
    %v966 = vld [vmem:[#allocation2 + $0x6e0] sm:$0xff]
    %v967 = vld [vmem:[#allocation2 + $0x6e8] sm:$0xff]
    %v968 = vld [vmem:[#allocation2 + $0x6f0] sm:$0xff]
    %v969 = vld [vmem:[#allocation2 + $0x6f8] sm:$0xff]
    %v970 = vld [vmem:[%s4] sm:$0xf]
    %v972 = vlaneseq
    %v973 = vshrl.u32 %v972, 7
    %v974 = vsub.s32 0, %v973
    %v975 = vrot.slane %v970, %v974
    %v976 = vlaneseq
    %v977 = vshrl.u32 %v976, 7
    %v978 = vsub.s32 1, %v977
    %v979 = vrot.slane %v970, %v978
    %v980 = vlaneseq
    %v981 = vshrl.u32 %v980, 7
    %v982 = vsub.s32 2, %v981
    %v983 = vrot.slane %v970, %v982
    %v984 = vlaneseq
    %v985 = vshrl.u32 %v984, 7
    %v986 = vsub.s32 3, %v985
    %v987 = vrot.slane %v970, %v986
    %v1216 = vunpack.c.l.b16 %v746
    %v1217 = vunpack.c.h.b16 %v746
    %v1218 = vunpack.c.l.b16 %v747
    %v1219 = vunpack.c.h.b16 %v747
    %v1220 = vunpack.c.l.b16 %v748
    %v1221 = vunpack.c.h.b16 %v748
    %v1222 = vunpack.c.l.b16 %v749
    %v1223 = vunpack.c.h.b16 %v749
    %v1224 = vunpack.c.l.b16 %v750
    %v1225 = vunpack.c.h.b16 %v750
    %v1226 = vunpack.c.l.b16 %v751
    %v1227 = vunpack.c.h.b16 %v751
    %v1228 = vunpack.c.l.b16 %v752
    %v1229 = vunpack.c.h.b16 %v752
    %v1230 = vunpack.c.l.b16 %v753
    %v1231 = vunpack.c.h.b16 %v753
    %v1232 = vunpack.c.l.b16 %v754
    %v1233 = vunpack.c.h.b16 %v754
    %v1234 = vunpack.c.l.b16 %v755
    %v1235 = vunpack.c.h.b16 %v755
    %v1236 = vunpack.c.l.b16 %v756
    %v1237 = vunpack.c.h.b16 %v756
    %v1238 = vunpack.c.l.b16 %v757
    %v1239 = vunpack.c.h.b16 %v757
    %v1240 = vunpack.c.l.b16 %v758
    %v1241 = vunpack.c.h.b16 %v758
    %v1242 = vunpack.c.l.b16 %v759
    %v1243 = vunpack.c.h.b16 %v759
    %v1244 = vunpack.c.l.b16 %v760
    %v1245 = vunpack.c.h.b16 %v760
    %v1246 = vunpack.c.l.b16 %v761
    %v1247 = vunpack.c.h.b16 %v761
    %v1248 = vunpack.c.l.b16 %v762
    %v1249 = vunpack.c.h.b16 %v762
    %v1250 = vunpack.c.l.b16 %v763
    %v1251 = vunpack.c.h.b16 %v763
    %v1252 = vunpack.c.l.b16 %v764
    %v1253 = vunpack.c.h.b16 %v764
    %v1254 = vunpack.c.l.b16 %v765
    %v1255 = vunpack.c.h.b16 %v765
    %v1256 = vunpack.c.l.b16 %v766
    %v1257 = vunpack.c.h.b16 %v766
    %v1258 = vunpack.c.l.b16 %v767
    %v1259 = vunpack.c.h.b16 %v767
    %v1260 = vunpack.c.l.b16 %v768
    %v1261 = vunpack.c.h.b16 %v768
    %v1262 = vunpack.c.l.b16 %v769
    %v1263 = vunpack.c.h.b16 %v769
    %v1264 = vunpack.c.l.b16 %v770
    %v1265 = vunpack.c.h.b16 %v770
    %v1266 = vunpack.c.l.b16 %v771
    %v1267 = vunpack.c.h.b16 %v771
    %v1268 = vunpack.c.l.b16 %v772
    %v1269 = vunpack.c.h.b16 %v772
    %v1270 = vunpack.c.l.b16 %v773
    %v1271 = vunpack.c.h.b16 %v773
    %v1272 = vunpack.c.l.b16 %v774
    %v1273 = vunpack.c.h.b16 %v774
    %v1274 = vunpack.c.l.b16 %v775
    %v1275 = vunpack.c.h.b16 %v775
    %v1276 = vunpack.c.l.b16 %v776
    %v1277 = vunpack.c.h.b16 %v776
    %v1278 = vunpack.c.l.b16 %v777
    %v1279 = vunpack.c.h.b16 %v777
    %v1280 = vunpack.c.l.b16 %v778
    %v1281 = vunpack.c.h.b16 %v778
    %v1282 = vunpack.c.l.b16 %v779
    %v1283 = vunpack.c.h.b16 %v779
    %v1284 = vunpack.c.l.b16 %v780
    %v1285 = vunpack.c.h.b16 %v780
    %v1286 = vunpack.c.l.b16 %v781
    %v1287 = vunpack.c.h.b16 %v781
    %v1288 = vunpack.c.l.b16 %v782
    %v1289 = vunpack.c.h.b16 %v782
    %v1290 = vunpack.c.l.b16 %v783
    %v1291 = vunpack.c.h.b16 %v783
    %v1292 = vunpack.c.l.b16 %v784
    %v1293 = vunpack.c.h.b16 %v784
    %v1294 = vunpack.c.l.b16 %v785
    %v1295 = vunpack.c.h.b16 %v785
    %v1296 = vunpack.c.l.b16 %v786
    %v1297 = vunpack.c.h.b16 %v786
    %v1298 = vunpack.c.l.b16 %v787
    %v1299 = vunpack.c.h.b16 %v787
    %v1300 = vunpack.c.l.b16 %v788
    %v1301 = vunpack.c.h.b16 %v788
    %v1302 = vunpack.c.l.b16 %v789
    %v1303 = vunpack.c.h.b16 %v789
    %v1304 = vunpack.c.l.b16 %v790
    %v1305 = vunpack.c.h.b16 %v790
    %v1306 = vunpack.c.l.b16 %v791
    %v1307 = vunpack.c.h.b16 %v791
    %v1308 = vunpack.c.l.b16 %v792
    %v1309 = vunpack.c.h.b16 %v792
    %v1310 = vunpack.c.l.b16 %v793
    %v1311 = vunpack.c.h.b16 %v793
    %v1312 = vunpack.c.l.b16 %v794
    %v1313 = vunpack.c.h.b16 %v794
    %v1314 = vunpack.c.l.b16 %v795
    %v1315 = vunpack.c.h.b16 %v795
    %v1316 = vunpack.c.l.b16 %v796
    %v1317 = vunpack.c.h.b16 %v796
    %v1318 = vunpack.c.l.b16 %v797
    %v1319 = vunpack.c.h.b16 %v797
    %v1320 = vunpack.c.l.b16 %v798
    %v1321 = vunpack.c.h.b16 %v798
    %v1322 = vunpack.c.l.b16 %v799
    %v1323 = vunpack.c.h.b16 %v799
    %v1324 = vunpack.c.l.b16 %v800
    %v1325 = vunpack.c.h.b16 %v800
    %v1326 = vunpack.c.l.b16 %v801
    %v1327 = vunpack.c.h.b16 %v801
    %v1328 = vunpack.c.l.b16 %v802
    %v1329 = vunpack.c.h.b16 %v802
    %v1330 = vunpack.c.l.b16 %v803
    %v1331 = vunpack.c.h.b16 %v803
    %v1332 = vunpack.c.l.b16 %v804
    %v1333 = vunpack.c.h.b16 %v804
    %v1334 = vunpack.c.l.b16 %v805
    %v1335 = vunpack.c.h.b16 %v805
    %v1336 = vunpack.c.l.b16 %v806
    %v1337 = vunpack.c.h.b16 %v806
    %v1338 = vunpack.c.l.b16 %v807
    %v1339 = vunpack.c.h.b16 %v807
    %v1340 = vunpack.c.l.b16 %v808
    %v1341 = vunpack.c.h.b16 %v808
    %v1342 = vunpack.c.l.b16 %v809
    %v1343 = vunpack.c.h.b16 %v809
    %v1344 = vunpack.c.l.b16 %v810
    %v1345 = vunpack.c.h.b16 %v810
    %v1346 = vunpack.c.l.b16 %v811
    %v1347 = vunpack.c.h.b16 %v811
    %v1348 = vunpack.c.l.b16 %v812
    %v1349 = vunpack.c.h.b16 %v812
    %v1350 = vunpack.c.l.b16 %v813
    %v1351 = vunpack.c.h.b16 %v813
    %v1352 = vunpack.c.l.b16 %v814
    %v1353 = vunpack.c.h.b16 %v814
    %v1354 = vunpack.c.l.b16 %v815
    %v1355 = vunpack.c.h.b16 %v815
    %v1356 = vunpack.c.l.b16 %v816
    %v1357 = vunpack.c.h.b16 %v816
    %v1358 = vunpack.c.l.b16 %v817
    %v1359 = vunpack.c.h.b16 %v817
    %v1360 = vunpack.c.l.b16 %v818
    %v1361 = vunpack.c.h.b16 %v818
    %v1362 = vunpack.c.l.b16 %v819
    %v1363 = vunpack.c.h.b16 %v819
    %v1364 = vunpack.c.l.b16 %v820
    %v1365 = vunpack.c.h.b16 %v820
    %v1366 = vunpack.c.l.b16 %v821
    %v1367 = vunpack.c.h.b16 %v821
    %v1368 = vunpack.c.l.b16 %v822
    %v1369 = vunpack.c.h.b16 %v822
    %v1370 = vunpack.c.l.b16 %v823
    %v1371 = vunpack.c.h.b16 %v823
    %v1372 = vunpack.c.l.b16 %v824
    %v1373 = vunpack.c.h.b16 %v824
    %v1374 = vunpack.c.l.b16 %v825
    %v1375 = vunpack.c.h.b16 %v825
    %v1376 = vunpack.c.l.b16 %v826
    %v1377 = vunpack.c.h.b16 %v826
    %v1378 = vunpack.c.l.b16 %v827
    %v1379 = vunpack.c.h.b16 %v827
    %v1380 = vunpack.c.l.b16 %v828
    %v1381 = vunpack.c.h.b16 %v828
    %v1382 = vunpack.c.l.b16 %v829
    %v1383 = vunpack.c.h.b16 %v829
    %v1384 = vunpack.c.l.b16 %v830
    %v1385 = vunpack.c.h.b16 %v830
    %v1386 = vunpack.c.l.b16 %v831
    %v1387 = vunpack.c.h.b16 %v831
    %v1388 = vunpack.c.l.b16 %v832
    %v1389 = vunpack.c.h.b16 %v832
    %v1390 = vunpack.c.l.b16 %v833
    %v1391 = vunpack.c.h.b16 %v833
    %v1392 = vunpack.c.l.b16 %v834
    %v1393 = vunpack.c.h.b16 %v834
    %v1394 = vunpack.c.l.b16 %v835
    %v1395 = vunpack.c.h.b16 %v835
    %v1396 = vunpack.c.l.b16 %v836
    %v1397 = vunpack.c.h.b16 %v836
    %v1398 = vunpack.c.l.b16 %v837
    %v1399 = vunpack.c.h.b16 %v837
    %v1400 = vunpack.c.l.b16 %v838
    %v1401 = vunpack.c.h.b16 %v838
    %v1402 = vunpack.c.l.b16 %v839
    %v1403 = vunpack.c.h.b16 %v839
    %v1404 = vunpack.c.l.b16 %v840
    %v1405 = vunpack.c.h.b16 %v840
    %v1406 = vunpack.c.l.b16 %v841
    %v1407 = vunpack.c.h.b16 %v841
    %v1408 = vunpack.c.l.b16 %v842
    %v1409 = vunpack.c.h.b16 %v842
    %v1410 = vunpack.c.l.b16 %v843
    %v1411 = vunpack.c.h.b16 %v843
    %v1412 = vunpack.c.l.b16 %v844
    %v1413 = vunpack.c.h.b16 %v844
    %v1414 = vunpack.c.l.b16 %v845
    %v1415 = vunpack.c.h.b16 %v845
    %v1416 = vunpack.c.l.b16 %v846
    %v1417 = vunpack.c.h.b16 %v846
    %v1418 = vunpack.c.l.b16 %v847
    %v1419 = vunpack.c.h.b16 %v847
    %v1420 = vunpack.c.l.b16 %v848
    %v1421 = vunpack.c.h.b16 %v848
    %v1422 = vunpack.c.l.b16 %v849
    %v1423 = vunpack.c.h.b16 %v849
    %v1424 = vunpack.c.l.b16 %v850
    %v1425 = vunpack.c.h.b16 %v850
    %v1426 = vunpack.c.l.b16 %v851
    %v1427 = vunpack.c.h.b16 %v851
    %v1428 = vunpack.c.l.b16 %v852
    %v1429 = vunpack.c.h.b16 %v852
    %v1430 = vunpack.c.l.b16 %v853
    %v1431 = vunpack.c.h.b16 %v853
    %v1432 = vunpack.c.l.b16 %v854
    %v1433 = vunpack.c.h.b16 %v854
    %v1434 = vunpack.c.l.b16 %v855
    %v1435 = vunpack.c.h.b16 %v855
    %v1436 = vunpack.c.l.b16 %v856
    %v1437 = vunpack.c.h.b16 %v856
    %v1438 = vunpack.c.l.b16 %v857
    %v1439 = vunpack.c.h.b16 %v857
    %v1440 = vunpack.c.l.b16 %v858
    %v1441 = vunpack.c.h.b16 %v858
    %v1442 = vunpack.c.l.b16 %v859
    %v1443 = vunpack.c.h.b16 %v859
    %v1444 = vunpack.c.l.b16 %v860
    %v1445 = vunpack.c.h.b16 %v860
    %v1446 = vunpack.c.l.b16 %v861
    %v1447 = vunpack.c.h.b16 %v861
    %v1448 = vunpack.c.l.b16 %v862
    %v1449 = vunpack.c.h.b16 %v862
    %v1450 = vunpack.c.l.b16 %v863
    %v1451 = vunpack.c.h.b16 %v863
    %v1452 = vunpack.c.l.b16 %v864
    %v1453 = vunpack.c.h.b16 %v864
    %v1454 = vunpack.c.l.b16 %v865
    %v1455 = vunpack.c.h.b16 %v865
    %v1456 = vunpack.c.l.b16 %v866
    %v1457 = vunpack.c.h.b16 %v866
    %v1458 = vunpack.c.l.b16 %v867
    %v1459 = vunpack.c.h.b16 %v867
    %v1460 = vunpack.c.l.b16 %v868
    %v1461 = vunpack.c.h.b16 %v868
    %v1462 = vunpack.c.l.b16 %v869
    %v1463 = vunpack.c.h.b16 %v869
    %v1464 = vunpack.c.l.b16 %v870
    %v1465 = vunpack.c.h.b16 %v870
    %v1466 = vunpack.c.l.b16 %v871
    %v1467 = vunpack.c.h.b16 %v871
    %v1468 = vunpack.c.l.b16 %v872
    %v1469 = vunpack.c.h.b16 %v872
    %v1470 = vunpack.c.l.b16 %v873
    %v1471 = vunpack.c.h.b16 %v873
    %v1472 = vunpack.c.l.b16 %v874
    %v1473 = vunpack.c.h.b16 %v874
    %v1474 = vunpack.c.l.b16 %v875
    %v1475 = vunpack.c.h.b16 %v875
    %v1476 = vunpack.c.l.b16 %v876
    %v1477 = vunpack.c.h.b16 %v876
    %v1478 = vunpack.c.l.b16 %v877
    %v1479 = vunpack.c.h.b16 %v877
    %v1480 = vunpack.c.l.b16 %v878
    %v1481 = vunpack.c.h.b16 %v878
    %v1482 = vunpack.c.l.b16 %v879
    %v1483 = vunpack.c.h.b16 %v879
    %v1484 = vunpack.c.l.b16 %v880
    %v1485 = vunpack.c.h.b16 %v880
    %v1486 = vunpack.c.l.b16 %v881
    %v1487 = vunpack.c.h.b16 %v881
    %v1488 = vunpack.c.l.b16 %v882
    %v1489 = vunpack.c.h.b16 %v882
    %v1490 = vunpack.c.l.b16 %v883
    %v1491 = vunpack.c.h.b16 %v883
    %v1492 = vunpack.c.l.b16 %v884
    %v1493 = vunpack.c.h.b16 %v884
    %v1494 = vunpack.c.l.b16 %v885
    %v1495 = vunpack.c.h.b16 %v885
    %v1496 = vunpack.c.l.b16 %v886
    %v1497 = vunpack.c.h.b16 %v886
    %v1498 = vunpack.c.l.b16 %v887
    %v1499 = vunpack.c.h.b16 %v887
    %v1500 = vunpack.c.l.b16 %v888
    %v1501 = vunpack.c.h.b16 %v888
    %v1502 = vunpack.c.l.b16 %v889
    %v1503 = vunpack.c.h.b16 %v889
    %v1504 = vunpack.c.l.b16 %v890
    %v1505 = vunpack.c.h.b16 %v890
    %v1506 = vunpack.c.l.b16 %v891
    %v1507 = vunpack.c.h.b16 %v891
    %v1508 = vunpack.c.l.b16 %v892
    %v1509 = vunpack.c.h.b16 %v892
    %v1510 = vunpack.c.l.b16 %v893
    %v1511 = vunpack.c.h.b16 %v893
    %v1512 = vunpack.c.l.b16 %v894
    %v1513 = vunpack.c.h.b16 %v894
    %v1514 = vunpack.c.l.b16 %v895
    %v1515 = vunpack.c.h.b16 %v895
    %v1516 = vunpack.c.l.b16 %v896
    %v1517 = vunpack.c.h.b16 %v896
    %v1518 = vunpack.c.l.b16 %v897
    %v1519 = vunpack.c.h.b16 %v897
    %v1520 = vunpack.c.l.b16 %v898
    %v1521 = vunpack.c.h.b16 %v898
    %v1522 = vunpack.c.l.b16 %v899
    %v1523 = vunpack.c.h.b16 %v899
    %v1524 = vunpack.c.l.b16 %v900
    %v1525 = vunpack.c.h.b16 %v900
    %v1526 = vunpack.c.l.b16 %v901
    %v1527 = vunpack.c.h.b16 %v901
    %v1528 = vunpack.c.l.b16 %v902
    %v1529 = vunpack.c.h.b16 %v902
    %v1530 = vunpack.c.l.b16 %v903
    %v1531 = vunpack.c.h.b16 %v903
    %v1532 = vunpack.c.l.b16 %v904
    %v1533 = vunpack.c.h.b16 %v904
    %v1534 = vunpack.c.l.b16 %v905
    %v1535 = vunpack.c.h.b16 %v905
    %v1536 = vunpack.c.l.b16 %v906
    %v1537 = vunpack.c.h.b16 %v906
    %v1538 = vunpack.c.l.b16 %v907
    %v1539 = vunpack.c.h.b16 %v907
    %v1540 = vunpack.c.l.b16 %v908
    %v1541 = vunpack.c.h.b16 %v908
    %v1542 = vunpack.c.l.b16 %v909
    %v1543 = vunpack.c.h.b16 %v909
    %v1544 = vunpack.c.l.b16 %v910
    %v1545 = vunpack.c.h.b16 %v910
    %v1546 = vunpack.c.l.b16 %v911
    %v1547 = vunpack.c.h.b16 %v911
    %v1548 = vunpack.c.l.b16 %v912
    %v1549 = vunpack.c.h.b16 %v912
    %v1550 = vunpack.c.l.b16 %v913
    %v1551 = vunpack.c.h.b16 %v913
    %v1552 = vunpack.c.l.b16 %v914
    %v1553 = vunpack.c.h.b16 %v914
    %v1554 = vunpack.c.l.b16 %v915
    %v1555 = vunpack.c.h.b16 %v915
    %v1556 = vunpack.c.l.b16 %v916
    %v1557 = vunpack.c.h.b16 %v916
    %v1558 = vunpack.c.l.b16 %v917
    %v1559 = vunpack.c.h.b16 %v917
    %v1560 = vunpack.c.l.b16 %v918
    %v1561 = vunpack.c.h.b16 %v918
    %v1562 = vunpack.c.l.b16 %v919
    %v1563 = vunpack.c.h.b16 %v919
    %v1564 = vunpack.c.l.b16 %v920
    %v1565 = vunpack.c.h.b16 %v920
    %v1566 = vunpack.c.l.b16 %v921
    %v1567 = vunpack.c.h.b16 %v921
    %v1568 = vunpack.c.l.b16 %v922
    %v1569 = vunpack.c.h.b16 %v922
    %v1570 = vunpack.c.l.b16 %v923
    %v1571 = vunpack.c.h.b16 %v923
    %v1572 = vunpack.c.l.b16 %v924
    %v1573 = vunpack.c.h.b16 %v924
    %v1574 = vunpack.c.l.b16 %v925
    %v1575 = vunpack.c.h.b16 %v925
    %v1576 = vunpack.c.l.b16 %v926
    %v1577 = vunpack.c.h.b16 %v926
    %v1578 = vunpack.c.l.b16 %v927
    %v1579 = vunpack.c.h.b16 %v927
    %v1580 = vunpack.c.l.b16 %v928
    %v1581 = vunpack.c.h.b16 %v928
    %v1582 = vunpack.c.l.b16 %v929
    %v1583 = vunpack.c.h.b16 %v929
    %v1584 = vunpack.c.l.b16 %v930
    %v1585 = vunpack.c.h.b16 %v930
    %v1586 = vunpack.c.l.b16 %v931
    %v1587 = vunpack.c.h.b16 %v931
    %v1588 = vunpack.c.l.b16 %v932
    %v1589 = vunpack.c.h.b16 %v932
    %v1590 = vunpack.c.l.b16 %v933
    %v1591 = vunpack.c.h.b16 %v933
    %v1592 = vunpack.c.l.b16 %v934
    %v1593 = vunpack.c.h.b16 %v934
    %v1594 = vunpack.c.l.b16 %v935
    %v1595 = vunpack.c.h.b16 %v935
    %v1596 = vunpack.c.l.b16 %v936
    %v1597 = vunpack.c.h.b16 %v936
    %v1598 = vunpack.c.l.b16 %v937
    %v1599 = vunpack.c.h.b16 %v937
    %v1600 = vunpack.c.l.b16 %v938
    %v1601 = vunpack.c.h.b16 %v938
    %v1602 = vunpack.c.l.b16 %v939
    %v1603 = vunpack.c.h.b16 %v939
    %v1604 = vunpack.c.l.b16 %v940
    %v1605 = vunpack.c.h.b16 %v940
    %v1606 = vunpack.c.l.b16 %v941
    %v1607 = vunpack.c.h.b16 %v941
    %v1608 = vunpack.c.l.b16 %v942
    %v1609 = vunpack.c.h.b16 %v942
    %v1610 = vunpack.c.l.b16 %v943
    %v1611 = vunpack.c.h.b16 %v943
    %v1612 = vunpack.c.l.b16 %v944
    %v1613 = vunpack.c.h.b16 %v944
    %v1614 = vunpack.c.l.b16 %v945
    %v1615 = vunpack.c.h.b16 %v945
    %v1616 = vunpack.c.l.b16 %v946
    %v1617 = vunpack.c.h.b16 %v946
    %v1618 = vunpack.c.l.b16 %v947
    %v1619 = vunpack.c.h.b16 %v947
    %v1620 = vunpack.c.l.b16 %v948
    %v1621 = vunpack.c.h.b16 %v948
    %v1622 = vunpack.c.l.b16 %v949
    %v1623 = vunpack.c.h.b16 %v949
    %v1624 = vunpack.c.l.b16 %v950
    %v1625 = vunpack.c.h.b16 %v950
    %v1626 = vunpack.c.l.b16 %v951
    %v1627 = vunpack.c.h.b16 %v951
    %v1628 = vunpack.c.l.b16 %v952
    %v1629 = vunpack.c.h.b16 %v952
    %v1630 = vunpack.c.l.b16 %v953
    %v1631 = vunpack.c.h.b16 %v953
    %v1632 = vunpack.c.l.b16 %v954
    %v1633 = vunpack.c.h.b16 %v954
    %v1634 = vunpack.c.l.b16 %v955
    %v1635 = vunpack.c.h.b16 %v955
    %v1636 = vunpack.c.l.b16 %v956
    %v1637 = vunpack.c.h.b16 %v956
    %v1638 = vunpack.c.l.b16 %v957
    %v1639 = vunpack.c.h.b16 %v957
    %v1640 = vunpack.c.l.b16 %v958
    %v1641 = vunpack.c.h.b16 %v958
    %v1642 = vunpack.c.l.b16 %v959
    %v1643 = vunpack.c.h.b16 %v959
    %v1644 = vunpack.c.l.b16 %v960
    %v1645 = vunpack.c.h.b16 %v960
    %v1646 = vunpack.c.l.b16 %v961
    %v1647 = vunpack.c.h.b16 %v961
    %v1648 = vunpack.c.l.b16 %v962
    %v1649 = vunpack.c.h.b16 %v962
    %v1650 = vunpack.c.l.b16 %v963
    %v1651 = vunpack.c.h.b16 %v963
    %v1652 = vunpack.c.l.b16 %v964
    %v1653 = vunpack.c.h.b16 %v964
    %v1654 = vunpack.c.l.b16 %v965
    %v1655 = vunpack.c.h.b16 %v965
    %v1656 = vunpack.c.l.b16 %v966
    %v1657 = vunpack.c.h.b16 %v966
    %v1658 = vunpack.c.l.b16 %v967
    %v1659 = vunpack.c.h.b16 %v967
    %v1660 = vunpack.c.l.b16 %v968
    %v1661 = vunpack.c.h.b16 %v968
    %v1662 = vunpack.c.l.b16 %v969
    %v1663 = vunpack.c.h.b16 %v969
    %v1664 = vpack.c.b16 %v1220, %v1216
    %v1665 = vpack.c.b16 %v1221, %v1217
    %v1666 = vpack.c.b16 %v1222, %v1218
    %v1667 = vpack.c.b16 %v1223, %v1219
    %v1668 = vpack.c.b16 %v1228, %v1224
    %v1669 = vpack.c.b16 %v1229, %v1225
    %v1670 = vpack.c.b16 %v1230, %v1226
    %v1671 = vpack.c.b16 %v1231, %v1227
    %v1672 = vpack.c.b16 %v1236, %v1232
    %v1673 = vpack.c.b16 %v1237, %v1233
    %v1674 = vpack.c.b16 %v1238, %v1234
    %v1675 = vpack.c.b16 %v1239, %v1235
    %v1676 = vpack.c.b16 %v1244, %v1240
    %v1677 = vpack.c.b16 %v1245, %v1241
    %v1678 = vpack.c.b16 %v1246, %v1242
    %v1679 = vpack.c.b16 %v1247, %v1243
    %v1680 = vpack.c.b16 %v1252, %v1248
    %v1681 = vpack.c.b16 %v1253, %v1249
    %v1682 = vpack.c.b16 %v1254, %v1250
    %v1683 = vpack.c.b16 %v1255, %v1251
    %v1684 = vpack.c.b16 %v1260, %v1256
    %v1685 = vpack.c.b16 %v1261, %v1257
    %v1686 = vpack.c.b16 %v1262, %v1258
    %v1687 = vpack.c.b16 %v1263, %v1259
    %v1688 = vpack.c.b16 %v1268, %v1264
    %v1689 = vpack.c.b16 %v1269, %v1265
    %v1690 = vpack.c.b16 %v1270, %v1266
    %v1691 = vpack.c.b16 %v1271, %v1267
    %v1692 = vpack.c.b16 %v1276, %v1272
    %v1693 = vpack.c.b16 %v1277, %v1273
    %v1694 = vpack.c.b16 %v1278, %v1274
    %v1695 = vpack.c.b16 %v1279, %v1275
    %v1696 = vpack.c.b16 %v1284, %v1280
    %v1697 = vpack.c.b16 %v1285, %v1281
    %v1698 = vpack.c.b16 %v1286, %v1282
    %v1699 = vpack.c.b16 %v1287, %v1283
    %v1700 = vpack.c.b16 %v1292, %v1288
    %v1701 = vpack.c.b16 %v1293, %v1289
    %v1702 = vpack.c.b16 %v1294, %v1290
    %v1703 = vpack.c.b16 %v1295, %v1291
    %v1704 = vpack.c.b16 %v1300, %v1296
    %v1705 = vpack.c.b16 %v1301, %v1297
    %v1706 = vpack.c.b16 %v1302, %v1298
    %v1707 = vpack.c.b16 %v1303, %v1299
    %v1708 = vpack.c.b16 %v1308, %v1304
    %v1709 = vpack.c.b16 %v1309, %v1305
    %v1710 = vpack.c.b16 %v1310, %v1306
    %v1711 = vpack.c.b16 %v1311, %v1307
    %v1712 = vpack.c.b16 %v1316, %v1312
    %v1713 = vpack.c.b16 %v1317, %v1313
    %v1714 = vpack.c.b16 %v1318, %v1314
    %v1715 = vpack.c.b16 %v1319, %v1315
    %v1716 = vpack.c.b16 %v1324, %v1320
    %v1717 = vpack.c.b16 %v1325, %v1321
    %v1718 = vpack.c.b16 %v1326, %v1322
    %v1719 = vpack.c.b16 %v1327, %v1323
    %v1720 = vpack.c.b16 %v1332, %v1328
    %v1721 = vpack.c.b16 %v1333, %v1329
    %v1722 = vpack.c.b16 %v1334, %v1330
    %v1723 = vpack.c.b16 %v1335, %v1331
    %v1724 = vpack.c.b16 %v1340, %v1336
    %v1725 = vpack.c.b16 %v1341, %v1337
    %v1726 = vpack.c.b16 %v1342, %v1338
    %v1727 = vpack.c.b16 %v1343, %v1339
    %v1728 = vpack.c.b16 %v1348, %v1344
    %v1729 = vpack.c.b16 %v1349, %v1345
    %v1730 = vpack.c.b16 %v1350, %v1346
    %v1731 = vpack.c.b16 %v1351, %v1347
    %v1732 = vpack.c.b16 %v1356, %v1352
    %v1733 = vpack.c.b16 %v1357, %v1353
    %v1734 = vpack.c.b16 %v1358, %v1354
    %v1735 = vpack.c.b16 %v1359, %v1355
    %v1736 = vpack.c.b16 %v1364, %v1360
    %v1737 = vpack.c.b16 %v1365, %v1361
    %v1738 = vpack.c.b16 %v1366, %v1362
    %v1739 = vpack.c.b16 %v1367, %v1363
    %v1740 = vpack.c.b16 %v1372, %v1368
    %v1741 = vpack.c.b16 %v1373, %v1369
    %v1742 = vpack.c.b16 %v1374, %v1370
    %v1743 = vpack.c.b16 %v1375, %v1371
    %v1744 = vpack.c.b16 %v1380, %v1376
    %v1745 = vpack.c.b16 %v1381, %v1377
    %v1746 = vpack.c.b16 %v1382, %v1378
    %v1747 = vpack.c.b16 %v1383, %v1379
    %v1748 = vpack.c.b16 %v1388, %v1384
    %v1749 = vpack.c.b16 %v1389, %v1385
    %v1750 = vpack.c.b16 %v1390, %v1386
    %v1751 = vpack.c.b16 %v1391, %v1387
    %v1752 = vpack.c.b16 %v1396, %v1392
    %v1753 = vpack.c.b16 %v1397, %v1393
    %v1754 = vpack.c.b16 %v1398, %v1394
    %v1755 = vpack.c.b16 %v1399, %v1395
    %v1756 = vpack.c.b16 %v1404, %v1400
    %v1757 = vpack.c.b16 %v1405, %v1401
    %v1758 = vpack.c.b16 %v1406, %v1402
    %v1759 = vpack.c.b16 %v1407, %v1403
    %v1760 = vpack.c.b16 %v1412, %v1408
    %v1761 = vpack.c.b16 %v1413, %v1409
    %v1762 = vpack.c.b16 %v1414, %v1410
    %v1763 = vpack.c.b16 %v1415, %v1411
    %v1764 = vpack.c.b16 %v1420, %v1416
    %v1765 = vpack.c.b16 %v1421, %v1417
    %v1766 = vpack.c.b16 %v1422, %v1418
    %v1767 = vpack.c.b16 %v1423, %v1419
    %v1768 = vpack.c.b16 %v1428, %v1424
    %v1769 = vpack.c.b16 %v1429, %v1425
    %v1770 = vpack.c.b16 %v1430, %v1426
    %v1771 = vpack.c.b16 %v1431, %v1427
    %v1772 = vpack.c.b16 %v1436, %v1432
    %v1773 = vpack.c.b16 %v1437, %v1433
    %v1774 = vpack.c.b16 %v1438, %v1434
    %v1775 = vpack.c.b16 %v1439, %v1435
    %v1776 = vpack.c.b16 %v1444, %v1440
    %v1777 = vpack.c.b16 %v1445, %v1441
    %v1778 = vpack.c.b16 %v1446, %v1442
    %v1779 = vpack.c.b16 %v1447, %v1443
    %v1780 = vpack.c.b16 %v1452, %v1448
    %v1781 = vpack.c.b16 %v1453, %v1449
    %v1782 = vpack.c.b16 %v1454, %v1450
    %v1783 = vpack.c.b16 %v1455, %v1451
    %v1784 = vpack.c.b16 %v1460, %v1456
    %v1785 = vpack.c.b16 %v1461, %v1457
    %v1786 = vpack.c.b16 %v1462, %v1458
    %v1787 = vpack.c.b16 %v1463, %v1459
    %v1788 = vpack.c.b16 %v1468, %v1464
    %v1789 = vpack.c.b16 %v1469, %v1465
    %v1790 = vpack.c.b16 %v1470, %v1466
    %v1791 = vpack.c.b16 %v1471, %v1467
    %v1792 = vpack.c.b16 %v1476, %v1472
    %v1793 = vpack.c.b16 %v1477, %v1473
    %v1794 = vpack.c.b16 %v1478, %v1474
    %v1795 = vpack.c.b16 %v1479, %v1475
    %v1796 = vpack.c.b16 %v1484, %v1480
    %v1797 = vpack.c.b16 %v1485, %v1481
    %v1798 = vpack.c.b16 %v1486, %v1482
    %v1799 = vpack.c.b16 %v1487, %v1483
    %v1800 = vpack.c.b16 %v1492, %v1488
    %v1801 = vpack.c.b16 %v1493, %v1489
    %v1802 = vpack.c.b16 %v1494, %v1490
    %v1803 = vpack.c.b16 %v1495, %v1491
    %v1804 = vpack.c.b16 %v1500, %v1496
    %v1805 = vpack.c.b16 %v1501, %v1497
    %v1806 = vpack.c.b16 %v1502, %v1498
    %v1807 = vpack.c.b16 %v1503, %v1499
    %v1808 = vpack.c.b16 %v1508, %v1504
    %v1809 = vpack.c.b16 %v1509, %v1505
    %v1810 = vpack.c.b16 %v1510, %v1506
    %v1811 = vpack.c.b16 %v1511, %v1507
    %v1812 = vpack.c.b16 %v1516, %v1512
    %v1813 = vpack.c.b16 %v1517, %v1513
    %v1814 = vpack.c.b16 %v1518, %v1514
    %v1815 = vpack.c.b16 %v1519, %v1515
    %v1816 = vpack.c.b16 %v1524, %v1520
    %v1817 = vpack.c.b16 %v1525, %v1521
    %v1818 = vpack.c.b16 %v1526, %v1522
    %v1819 = vpack.c.b16 %v1527, %v1523
    %v1820 = vpack.c.b16 %v1532, %v1528
    %v1821 = vpack.c.b16 %v1533, %v1529
    %v1822 = vpack.c.b16 %v1534, %v1530
    %v1823 = vpack.c.b16 %v1535, %v1531
    %v1824 = vpack.c.b16 %v1540, %v1536
    %v1825 = vpack.c.b16 %v1541, %v1537
    %v1826 = vpack.c.b16 %v1542, %v1538
    %v1827 = vpack.c.b16 %v1543, %v1539
    %v1828 = vpack.c.b16 %v1548, %v1544
    %v1829 = vpack.c.b16 %v1549, %v1545
    %v1830 = vpack.c.b16 %v1550, %v1546
    %v1831 = vpack.c.b16 %v1551, %v1547
    %v1832 = vpack.c.b16 %v1556, %v1552
    %v1833 = vpack.c.b16 %v1557, %v1553
    %v1834 = vpack.c.b16 %v1558, %v1554
    %v1835 = vpack.c.b16 %v1559, %v1555
    %v1836 = vpack.c.b16 %v1564, %v1560
    %v1837 = vpack.c.b16 %v1565, %v1561
    %v1838 = vpack.c.b16 %v1566, %v1562
    %v1839 = vpack.c.b16 %v1567, %v1563
    %v1840 = vpack.c.b16 %v1572, %v1568
    %v1841 = vpack.c.b16 %v1573, %v1569
    %v1842 = vpack.c.b16 %v1574, %v1570
    %v1843 = vpack.c.b16 %v1575, %v1571
    %v1844 = vpack.c.b16 %v1580, %v1576
    %v1845 = vpack.c.b16 %v1581, %v1577
    %v1846 = vpack.c.b16 %v1582, %v1578
    %v1847 = vpack.c.b16 %v1583, %v1579
    %v1848 = vpack.c.b16 %v1588, %v1584
    %v1849 = vpack.c.b16 %v1589, %v1585
    %v1850 = vpack.c.b16 %v1590, %v1586
    %v1851 = vpack.c.b16 %v1591, %v1587
    %v1852 = vpack.c.b16 %v1596, %v1592
    %v1853 = vpack.c.b16 %v1597, %v1593
    %v1854 = vpack.c.b16 %v1598, %v1594
    %v1855 = vpack.c.b16 %v1599, %v1595
    %v1856 = vpack.c.b16 %v1604, %v1600
    %v1857 = vpack.c.b16 %v1605, %v1601
    %v1858 = vpack.c.b16 %v1606, %v1602
    %v1859 = vpack.c.b16 %v1607, %v1603
    %v1860 = vpack.c.b16 %v1612, %v1608
    %v1861 = vpack.c.b16 %v1613, %v1609
    %v1862 = vpack.c.b16 %v1614, %v1610
    %v1863 = vpack.c.b16 %v1615, %v1611
    %v1864 = vpack.c.b16 %v1620, %v1616
    %v1865 = vpack.c.b16 %v1621, %v1617
    %v1866 = vpack.c.b16 %v1622, %v1618
    %v1867 = vpack.c.b16 %v1623, %v1619
    %v1868 = vpack.c.b16 %v1628, %v1624
    %v1869 = vpack.c.b16 %v1629, %v1625
    %v1870 = vpack.c.b16 %v1630, %v1626
    %v1871 = vpack.c.b16 %v1631, %v1627
    %v1872 = vpack.c.b16 %v1636, %v1632
    %v1873 = vpack.c.b16 %v1637, %v1633
    %v1874 = vpack.c.b16 %v1638, %v1634
    %v1875 = vpack.c.b16 %v1639, %v1635
    %v1876 = vpack.c.b16 %v1644, %v1640
    %v1877 = vpack.c.b16 %v1645, %v1641
    %v1878 = vpack.c.b16 %v1646, %v1642
    %v1879 = vpack.c.b16 %v1647, %v1643
    %v1880 = vpack.c.b16 %v1652, %v1648
    %v1881 = vpack.c.b16 %v1653, %v1649
    %v1882 = vpack.c.b16 %v1654, %v1650
    %v1883 = vpack.c.b16 %v1655, %v1651
    %v1884 = vpack.c.b16 %v1660, %v1656
    %v1885 = vpack.c.b16 %v1661, %v1657
    %v1886 = vpack.c.b16 %v1662, %v1658
    %v1887 = vpack.c.b16 %v1663, %v1659
    %2112 = vmatprep.subr.bf16.mxu0 %v1665
    %2113 = vmatpush1.bf16.msra.mxu0 %v1664
    %2114 = vmatprep.subr.bf16.mxu0 %v1669
    %2115 = vmatpush1.bf16.msra.mxu0 %v1668
    %2116 = vmatprep.subr.bf16.mxu0 %v1673
    %2117 = vmatpush1.bf16.msra.mxu0 %v1672
    %2118 = vmatprep.subr.bf16.mxu0 %v1677
    %2119 = vmatpush1.bf16.msra.mxu0 %v1676
    %2120 = vmatprep.subr.bf16.mxu0 %v1681
    %2121 = vmatpush1.bf16.msra.mxu0 %v1680
    %2122 = vmatprep.subr.bf16.mxu0 %v1685
    %2123 = vmatpush1.bf16.msra.mxu0 %v1684
    %2124 = vmatprep.subr.bf16.mxu0 %v1689
    %2125 = vmatpush1.bf16.msra.mxu0 %v1688
    %2126 = vmatprep.subr.bf16.mxu0 %v1693
    %2127 = vmatpush1.bf16.msra.mxu0 %v1692
    %2128 = vmatprep.subr.bf16.mxu0 %v1697
    %2129 = vmatpush1.bf16.msra.mxu0 %v1696
    %2130 = vmatprep.subr.bf16.mxu0 %v1701
    %2131 = vmatpush1.bf16.msra.mxu0 %v1700
    %2132 = vmatprep.subr.bf16.mxu0 %v1705
    %2133 = vmatpush1.bf16.msra.mxu0 %v1704
    %2134 = vmatprep.subr.bf16.mxu0 %v1709
    %2135 = vmatpush1.bf16.msra.mxu0 %v1708
    %2136 = vmatprep.subr.bf16.mxu0 %v1713
    %2137 = vmatpush1.bf16.msra.mxu0 %v1712
    %2138 = vmatprep.subr.bf16.mxu0 %v1717
    %2139 = vmatpush1.bf16.msra.mxu0 %v1716
    %2140 = vmatprep.subr.bf16.mxu0 %v1721
    %2141 = vmatpush1.bf16.msra.mxu0 %v1720
    %2142 = vmatprep.subr.bf16.mxu0 %v1725
    %2143 = vmatpush1.bf16.msra.mxu0 %v1724
    %2144 = vmatprep.mubr.bf16.mxu0 %v733
    %2145 = vmatmul.mubr.bf16.gmra.mrb[0].mxu0 %v732
    %v2146 = vpop.f32.mrb[0].mxu0
    %v2147 = vadd.f32 %v975, %v2146
    %v2148 = vpop.f32.mrb[0].mxu0
    %v2149 = vadd.f32 %v979, %v2148
    %v2150 = vpop.f32.mrb[0].mxu0
    %v2151 = vpop.f32.mrb[0].mxu0
    %2152 = vdwg.mxu0
    %2153 = vmatprep.subr.bf16.mxu0 %v1729
    %2154 = vmatpush1.bf16.msra.mxu0 %v1728
    %2155 = vmatprep.subr.bf16.mxu0 %v1733
    %2156 = vmatpush1.bf16.msra.mxu0 %v1732
    %2157 = vmatprep.subr.bf16.mxu0 %v1737
    %2158 = vmatpush1.bf16.msra.mxu0 %v1736
    %2159 = vmatprep.subr.bf16.mxu0 %v1741
    %2160 = vmatpush1.bf16.msra.mxu0 %v1740
    %2161 = vmatprep.subr.bf16.mxu0 %v1745
    %2162 = vmatpush1.bf16.msra.mxu0 %v1744
    %2163 = vmatprep.subr.bf16.mxu0 %v1749
    %2164 = vmatpush1.bf16.msra.mxu0 %v1748
    %2165 = vmatprep.subr.bf16.mxu0 %v1753
    %2166 = vmatpush1.bf16.msra.mxu0 %v1752
    %2167 = vmatprep.subr.bf16.mxu0 %v1757
    %2168 = vmatpush1.bf16.msra.mxu0 %v1756
    %2169 = vmatprep.subr.bf16.mxu0 %v1761
    %2170 = vmatpush1.bf16.msra.mxu0 %v1760
    %2171 = vmatprep.subr.bf16.mxu0 %v1765
    %2172 = vmatpush1.bf16.msra.mxu0 %v1764
    %2173 = vmatprep.subr.bf16.mxu0 %v1769
    %2174 = vmatpush1.bf16.msra.mxu0 %v1768
    %2175 = vmatprep.subr.bf16.mxu0 %v1773
    %2176 = vmatpush1.bf16.msra.mxu0 %v1772
    %2177 = vmatprep.subr.bf16.mxu0 %v1777
    %2178 = vmatpush1.bf16.msra.mxu0 %v1776
    %2179 = vmatprep.subr.bf16.mxu0 %v1781
    %2180 = vmatpush1.bf16.msra.mxu0 %v1780
    %2181 = vmatprep.subr.bf16.mxu0 %v1785
    %2182 = vmatpush1.bf16.msra.mxu0 %v1784
    %2183 = vmatprep.subr.bf16.mxu0 %v1789
    %2184 = vmatpush1.bf16.msra.mxu0 %v1788
    %2185 = vmatprep.mubr.bf16.mxu0 %v735
    %2186 = vmatmul.mubr.bf16.gmra.mrb[0].mxu0 %v734
    %v2187 = vpop.f32.mrb[0].mxu0
    %v2188 = vadd.f32 %v2147, %v2187
    %v2189 = vpop.f32.mrb[0].mxu0
    %v2190 = vadd.f32 %v2149, %v2189
    %v2191 = vpop.f32.mrb[0].mxu0
    %v2192 = vpop.f32.mrb[0].mxu0
    %2193 = vdwg.mxu0
    %2194 = vmatprep.subr.bf16.mxu0 %v1793
    %2195 = vmatpush1.bf16.msra.mxu0 %v1792
    %2196 = vmatprep.subr.bf16.mxu0 %v1797
    %2197 = vmatpush1.bf16.msra.mxu0 %v1796
    %2198 = vmatprep.subr.bf16.mxu0 %v1801
    %2199 = vmatpush1.bf16.msra.mxu0 %v1800
    %2200 = vmatprep.subr.bf16.mxu0 %v1805
    %2201 = vmatpush1.bf16.msra.mxu0 %v1804
    %2202 = vmatprep.subr.bf16.mxu0 %v1809
    %2203 = vmatpush1.bf16.msra.mxu0 %v1808
    %2204 = vmatprep.subr.bf16.mxu0 %v1813
    %2205 = vmatpush1.bf16.msra.mxu0 %v1812
    %2206 = vmatprep.subr.bf16.mxu0 %v1817
    %2207 = vmatpush1.bf16.msra.mxu0 %v1816
    %2208 = vmatprep.subr.bf16.mxu0 %v1821
    %2209 = vmatpush1.bf16.msra.mxu0 %v1820
    %2210 = vmatprep.subr.bf16.mxu0 %v1825
    %2211 = vmatpush1.bf16.msra.mxu0 %v1824
    %2212 = vmatprep.subr.bf16.mxu0 %v1829
    %2213 = vmatpush1.bf16.msra.mxu0 %v1828
    %2214 = vmatprep.subr.bf16.mxu0 %v1833
    %2215 = vmatpush1.bf16.msra.mxu0 %v1832
    %2216 = vmatprep.subr.bf16.mxu0 %v1837
    %2217 = vmatpush1.bf16.msra.mxu0 %v1836
    %2218 = vmatprep.subr.bf16.mxu0 %v1841
    %2219 = vmatpush1.bf16.msra.mxu0 %v1840
    %2220 = vmatprep.subr.bf16.mxu0 %v1845
    %2221 = vmatpush1.bf16.msra.mxu0 %v1844
    %2222 = vmatprep.subr.bf16.mxu0 %v1849
    %2223 = vmatpush1.bf16.msra.mxu0 %v1848
    %2224 = vmatprep.subr.bf16.mxu0 %v1853
    %2225 = vmatpush1.bf16.msra.mxu0 %v1852
    %2226 = vmatprep.mubr.bf16.mxu0 %v737
    %2227 = vmatmul.mubr.bf16.gmra.mrb[0].mxu0 %v736
    %v2228 = vpop.f32.mrb[0].mxu0
    %v2229 = vadd.f32 %v2188, %v2228
    %v2230 = vpop.f32.mrb[0].mxu0
    %v2231 = vadd.f32 %v2190, %v2230
    %v2232 = vpop.f32.mrb[0].mxu0
    %v2233 = vpop.f32.mrb[0].mxu0
    %2234 = vdwg.mxu0
    %2235 = vmatprep.subr.bf16.mxu0 %v1857
    %2236 = vmatpush1.bf16.msra.mxu0 %v1856
    %2237 = vmatprep.subr.bf16.mxu0 %v1861
    %2238 = vmatpush1.bf16.msra.mxu0 %v1860
    %2239 = vmatprep.subr.bf16.mxu0 %v1865
    %2240 = vmatpush1.bf16.msra.mxu0 %v1864
    %2241 = vmatprep.subr.bf16.mxu0 %v1869
    %2242 = vmatpush1.bf16.msra.mxu0 %v1868
    %2243 = vmatprep.subr.bf16.mxu0 %v1873
    %2244 = vmatpush1.bf16.msra.mxu0 %v1872
    %2245 = vmatprep.subr.bf16.mxu0 %v1877
    %2246 = vmatpush1.bf16.msra.mxu0 %v1876
    %2247 = vmatprep.subr.bf16.mxu0 %v1881
    %2248 = vmatpush1.bf16.msra.mxu0 %v1880
    %2249 = vmatprep.subr.bf16.mxu0 %v1885
    %2250 = vmatpush1.bf16.msra.mxu0 %v1884
    %2251 = vmatprep.subr.bf16.mxu0 0
    %2252 = vmatpush1.bf16.msra.mxu0 0
    %2253 = vmatprep.subr.bf16.mxu0 0
    %2254 = vmatpush1.bf16.msra.mxu0 0
    %2255 = vmatprep.subr.bf16.mxu0 0
    %2256 = vmatpush1.bf16.msra.mxu0 0
    %2257 = vmatprep.subr.bf16.mxu0 0
    %2258 = vmatpush1.bf16.msra.mxu0 0
    %2259 = vmatprep.subr.bf16.mxu0 0
    %2260 = vmatpush1.bf16.msra.mxu0 0
    %2261 = vmatprep.subr.bf16.mxu0 0
    %2262 = vmatpush1.bf16.msra.mxu0 0
    %2263 = vmatprep.subr.bf16.mxu0 0
    %2264 = vmatpush1.bf16.msra.mxu0 0
    %2265 = vmatprep.subr.bf16.mxu0 0
    %2266 = vmatpush1.bf16.msra.mxu0 0
    %2267 = vmatprep.mubr.bf16.mxu0 0
    %2268 = vmatmul.mubr.bf16.gmra.mrb[0].mxu0 %v738
    %v2269 = vpop.f32.mrb[0].mxu0
    %v2270 = vadd.f32 %v2229, %v2269
    %v2271 = vpop.f32.mrb[0].mxu0
    %v2272 = vadd.f32 %v2231, %v2271
    %v2273 = vpop.f32.mrb[0].mxu0
    %v2274 = vpop.f32.mrb[0].mxu0
    %2275 = vdwg.mxu0
    %2276 = vmatprep.subr.bf16.mxu0 %v1667
    %2277 = vmatpush1.bf16.msra.mxu0 %v1666
    %2278 = vmatprep.subr.bf16.mxu0 %v1671
    %2279 = vmatpush1.bf16.msra.mxu0 %v1670
    %2280 = vmatprep.subr.bf16.mxu0 %v1675
    %2281 = vmatpush1.bf16.msra.mxu0 %v1674
    %2282 = vmatprep.subr.bf16.mxu0 %v1679
    %2283 = vmatpush1.bf16.msra.mxu0 %v1678
    %2284 = vmatprep.subr.bf16.mxu0 %v1683
    %2285 = vmatpush1.bf16.msra.mxu0 %v1682
    %2286 = vmatprep.subr.bf16.mxu0 %v1687
    %2287 = vmatpush1.bf16.msra.mxu0 %v1686
    %2288 = vmatprep.subr.bf16.mxu0 %v1691
    %2289 = vmatpush1.bf16.msra.mxu0 %v1690
    %2290 = vmatprep.subr.bf16.mxu0 %v1695
    %2291 = vmatpush1.bf16.msra.mxu0 %v1694
    %2292 = vmatprep.subr.bf16.mxu0 %v1699
    %2293 = vmatpush1.bf16.msra.mxu0 %v1698
    %2294 = vmatprep.subr.bf16.mxu0 %v1703
    %2295 = vmatpush1.bf16.msra.mxu0 %v1702
    %2296 = vmatprep.subr.bf16.mxu0 %v1707
    %2297 = vmatpush1.bf16.msra.mxu0 %v1706
    %2298 = vmatprep.subr.bf16.mxu0 %v1711
    %2299 = vmatpush1.bf16.msra.mxu0 %v1710
    %2300 = vmatprep.subr.bf16.mxu0 %v1715
    %2301 = vmatpush1.bf16.msra.mxu0 %v1714
    %2302 = vmatprep.subr.bf16.mxu0 %v1719
    %2303 = vmatpush1.bf16.msra.mxu0 %v1718
    %2304 = vmatprep.subr.bf16.mxu0 %v1723
    %2305 = vmatpush1.bf16.msra.mxu0 %v1722
    %2306 = vmatprep.subr.bf16.mxu0 %v1727
    %2307 = vmatpush1.bf16.msra.mxu0 %v1726
    %2308 = vmatprep.mubr.bf16.mxu0 %v733
    %2309 = vmatmul.mubr.bf16.gmra.mrb[0].mxu0 %v732
    %v2310 = vpop.f32.mrb[0].mxu0
    %v2311 = vadd.f32 %v983, %v2310
    %v2312 = vpop.f32.mrb[0].mxu0
    %v2313 = vadd.f32 %v987, %v2312
    %v2314 = vpop.f32.mrb[0].mxu0
    %v2315 = vpop.f32.mrb[0].mxu0
    %2316 = vdwg.mxu0
    %2317 = vmatprep.subr.bf16.mxu0 %v1731
    %2318 = vmatpush1.bf16.msra.mxu0 %v1730
    %2319 = vmatprep.subr.bf16.mxu0 %v1735
    %2320 = vmatpush1.bf16.msra.mxu0 %v1734
    %2321 = vmatprep.subr.bf16.mxu0 %v1739
    %2322 = vmatpush1.bf16.msra.mxu0 %v1738
    %2323 = vmatprep.subr.bf16.mxu0 %v1743
    %2324 = vmatpush1.bf16.msra.mxu0 %v1742
    %2325 = vmatprep.subr.bf16.mxu0 %v1747
    %2326 = vmatpush1.bf16.msra.mxu0 %v1746
    %2327 = vmatprep.subr.bf16.mxu0 %v1751
    %2328 = vmatpush1.bf16.msra.mxu0 %v1750
    %2329 = vmatprep.subr.bf16.mxu0 %v1755
    %2330 = vmatpush1.bf16.msra.mxu0 %v1754
    %2331 = vmatprep.subr.bf16.mxu0 %v1759
    %2332 = vmatpush1.bf16.msra.mxu0 %v1758
    %2333 = vmatprep.subr.bf16.mxu0 %v1763
    %2334 = vmatpush1.bf16.msra.mxu0 %v1762
    %2335 = vmatprep.subr.bf16.mxu0 %v1767
    %2336 = vmatpush1.bf16.msra.mxu0 %v1766
    %2337 = vmatprep.subr.bf16.mxu0 %v1771
    %2338 = vmatpush1.bf16.msra.mxu0 %v1770
    %2339 = vmatprep.subr.bf16.mxu0 %v1775
    %2340 = vmatpush1.bf16.msra.mxu0 %v1774
    %2341 = vmatprep.subr.bf16.mxu0 %v1779
    %2342 = vmatpush1.bf16.msra.mxu0 %v1778
    %2343 = vmatprep.subr.bf16.mxu0 %v1783
    %2344 = vmatpush1.bf16.msra.mxu0 %v1782
    %2345 = vmatprep.subr.bf16.mxu0 %v1787
    %2346 = vmatpush1.bf16.msra.mxu0 %v1786
    %2347 = vmatprep.subr.bf16.mxu0 %v1791
    %2348 = vmatpush1.bf16.msra.mxu0 %v1790
    %2349 = vmatprep.mubr.bf16.mxu0 %v735
    %2350 = vmatmul.mubr.bf16.gmra.mrb[0].mxu0 %v734
    %v2351 = vpop.f32.mrb[0].mxu0
    %v2352 = vadd.f32 %v2311, %v2351
    %v2353 = vpop.f32.mrb[0].mxu0
    %v2354 = vadd.f32 %v2313, %v2353
    %v2355 = vpop.f32.mrb[0].mxu0
    %v2356 = vpop.f32.mrb[0].mxu0
    %2357 = vdwg.mxu0
    %2358 = vmatprep.subr.bf16.mxu0 %v1795
    %2359 = vmatpush1.bf16.msra.mxu0 %v1794
    %2360 = vmatprep.subr.bf16.mxu0 %v1799
    %2361 = vmatpush1.bf16.msra.mxu0 %v1798
    %2362 = vmatprep.subr.bf16.mxu0 %v1803
    %2363 = vmatpush1.bf16.msra.mxu0 %v1802
    %2364 = vmatprep.subr.bf16.mxu0 %v1807
    %2365 = vmatpush1.bf16.msra.mxu0 %v1806
    %2366 = vmatprep.subr.bf16.mxu0 %v1811
    %2367 = vmatpush1.bf16.msra.mxu0 %v1810
    %2368 = vmatprep.subr.bf16.mxu0 %v1815
    %2369 = vmatpush1.bf16.msra.mxu0 %v1814
    %2370 = vmatprep.subr.bf16.mxu0 %v1819
    %2371 = vmatpush1.bf16.msra.mxu0 %v1818
    %2372 = vmatprep.subr.bf16.mxu0 %v1823
    %2373 = vmatpush1.bf16.msra.mxu0 %v1822
    %2374 = vmatprep.subr.bf16.mxu0 %v1827
    %2375 = vmatpush1.bf16.msra.mxu0 %v1826
    %2376 = vmatprep.subr.bf16.mxu0 %v1831
    %2377 = vmatpush1.bf16.msra.mxu0 %v1830
    %2378 = vmatprep.subr.bf16.mxu0 %v1835
    %2379 = vmatpush1.bf16.msra.mxu0 %v1834
    %2380 = vmatprep.subr.bf16.mxu0 %v1839
    %2381 = vmatpush1.bf16.msra.mxu0 %v1838
    %2382 = vmatprep.subr.bf16.mxu0 %v1843
    %2383 = vmatpush1.bf16.msra.mxu0 %v1842
    %2384 = vmatprep.subr.bf16.mxu0 %v1847
    %2385 = vmatpush1.bf16.msra.mxu0 %v1846
    %2386 = vmatprep.subr.bf16.mxu0 %v1851
    %2387 = vmatpush1.bf16.msra.mxu0 %v1850
    %2388 = vmatprep.subr.bf16.mxu0 %v1855
    %2389 = vmatpush1.bf16.msra.mxu0 %v1854
    %2390 = vmatprep.mubr.bf16.mxu0 %v737
    %2391 = vmatmul.mubr.bf16.gmra.mrb[0].mxu0 %v736
    %v2392 = vpop.f32.mrb[0].mxu0
    %v2393 = vadd.f32 %v2352, %v2392
    %v2394 = vpop.f32.mrb[0].mxu0
    %v2395 = vadd.f32 %v2354, %v2394
    %v2396 = vpop.f32.mrb[0].mxu0
    %v2397 = vpop.f32.mrb[0].mxu0
    %2398 = vdwg.mxu0
    %2399 = vmatprep.subr.bf16.mxu0 %v1859
    %2400 = vmatpush1.bf16.msra.mxu0 %v1858
    %2401 = vmatprep.subr.bf16.mxu0 %v1863
    %2402 = vmatpush1.bf16.msra.mxu0 %v1862
    %2403 = vmatprep.subr.bf16.mxu0 %v1867
    %2404 = vmatpush1.bf16.msra.mxu0 %v1866
    %2405 = vmatprep.subr.bf16.mxu0 %v1871
    %2406 = vmatpush1.bf16.msra.mxu0 %v1870
    %2407 = vmatprep.subr.bf16.mxu0 %v1875
    %2408 = vmatpush1.bf16.msra.mxu0 %v1874
    %2409 = vmatprep.subr.bf16.mxu0 %v1879
    %2410 = vmatpush1.bf16.msra.mxu0 %v1878
    %2411 = vmatprep.subr.bf16.mxu0 %v1883
    %2412 = vmatpush1.bf16.msra.mxu0 %v1882
    %2413 = vmatprep.subr.bf16.mxu0 %v1887
    %2414 = vmatpush1.bf16.msra.mxu0 %v1886
    %2415 = vmatprep.subr.bf16.mxu0 0
    %2416 = vmatpush1.bf16.msra.mxu0 0
    %2417 = vmatprep.subr.bf16.mxu0 0
    %2418 = vmatpush1.bf16.msra.mxu0 0
    %2419 = vmatprep.subr.bf16.mxu0 0
    %2420 = vmatpush1.bf16.msra.mxu0 0
    %2421 = vmatprep.subr.bf16.mxu0 0
    %2422 = vmatpush1.bf16.msra.mxu0 0
    %2423 = vmatprep.subr.bf16.mxu0 0
    %2424 = vmatpush1.bf16.msra.mxu0 0
    %2425 = vmatprep.subr.bf16.mxu0 0
    %2426 = vmatpush1.bf16.msra.mxu0 0
    %2427 = vmatprep.subr.bf16.mxu0 0
    %2428 = vmatpush1.bf16.msra.mxu0 0
    %2429 = vmatprep.subr.bf16.mxu0 0
    %2430 = vmatpush1.bf16.msra.mxu0 0
    %2431 = vmatprep.mubr.bf16.mxu0 0
    %2432 = vmatmul.mubr.bf16.gmra.mrb[0].mxu0 %v738
    %v2433 = vpop.f32.mrb[0].mxu0
    %v2434 = vadd.f32 %v2393, %v2433
    %v2435 = vpop.f32.mrb[0].mxu0
    %v2436 = vadd.f32 %v2395, %v2435
    %v2437 = vpop.f32.mrb[0].mxu0
    %v2438 = vpop.f32.mrb[0].mxu0
    %2439 = vdwg.mxu0
    %v2440 = vmax.f32 %v2270, 0.0
    %v2441 = vmax.f32 %v2272, 0.0
    %v2442 = vmax.f32 %v2434, 0.0
    %v2443 = vmax.f32 %v2436, 0.0
    %v2444 = vpack.c.bf16 %v2440, %v2440
    %v2445 = vpack.c.bf16 %v2441, %v2441
    %v2446 = vpack.c.bf16 %v2442, %v2442
    %v2447 = vpack.c.bf16 %v2443, %v2443
    %v2448 = vld [vmem:[#allocation4] sm:$0xff]
    %v2449 = vld [vmem:[#allocation4 + $0x8] sm:$0xf]
    %v2450 = vld [vmem:[#allocation4 + $0xc] sm:$0xff]
    %v2451 = vld [vmem:[#allocation4 + $0x14] sm:$0xf]
    %v2452 = vld [vmem:[#allocation4 + $0x18] sm:$0xff]
    %v2453 = vld [vmem:[#allocation4 + $0x20] sm:$0xf]
    %v2454 = vld [vmem:[#allocation4 + $0x24] sm:$0xff]
    %v2455 = vld [vmem:[#allocation4 + $0x2c] sm:$0xf]
    %v2456 = vld [vmem:[#allocation4 + $0x30] sm:$0xff]
    %v2457 = vld [vmem:[#allocation4 + $0x38] sm:$0xf]
    %v2458 = vld [vmem:[#allocation4 + $0x3c] sm:$0xff]
    %v2459 = vld [vmem:[#allocation4 + $0x44] sm:$0xf]
    %v2460 = vld [vmem:[#allocation4 + $0x48] sm:$0xff]
    %v2461 = vld [vmem:[#allocation4 + $0x50] sm:$0xf]
    %v2462 = vld [vmem:[#allocation4 + $0x54] sm:$0xff]
    %v2463 = vld [vmem:[#allocation4 + $0x5c] sm:$0xf]
    %v2464 = vld [vmem:[#allocation4 + $0x60] sm:$0xff]
    %v2465 = vld [vmem:[#allocation4 + $0x68] sm:$0xf]
    %v2466 = vld [vmem:[#allocation4 + $0x6c] sm:$0xff]
    %v2467 = vld [vmem:[#allocation4 + $0x74] sm:$0xf]
    %v2468 = vld [vmem:[#allocation4 + $0x78] sm:$0xff]
    %v2469 = vld [vmem:[#allocation4 + $0x80] sm:$0xf]
    %v2470 = vld [vmem:[#allocation4 + $0x84] sm:$0xff]
    %v2471 = vld [vmem:[#allocation4 + $0x8c] sm:$0xf]
    %v2472 = vld [vmem:[#allocation4 + $0x90] sm:$0xff]
    %v2473 = vld [vmem:[#allocation4 + $0x98] sm:$0xf]
    %v2474 = vld [vmem:[#allocation4 + $0x9c] sm:$0xff]
    %v2475 = vld [vmem:[#allocation4 + $0xa4] sm:$0xf]
    %v2476 = vld [vmem:[#allocation4 + $0xa8] sm:$0xff]
    %v2477 = vld [vmem:[#allocation4 + $0xb0] sm:$0xf]
    %v2478 = vld [vmem:[#allocation4 + $0xb4] sm:$0xff]
    %v2479 = vld [vmem:[#allocation4 + $0xbc] sm:$0xf]
    %v2480 = vld [vmem:[#allocation4 + $0xc0] sm:$0xff]
    %v2481 = vld [vmem:[#allocation4 + $0xc8] sm:$0xf]
    %v2482 = vld [vmem:[#allocation4 + $0xcc] sm:$0xff]
    %v2483 = vld [vmem:[#allocation4 + $0xd4] sm:$0xf]
    %v2484 = vld [vmem:[#allocation4 + $0xd8] sm:$0xff]
    %v2485 = vld [vmem:[#allocation4 + $0xe0] sm:$0xf]
    %v2486 = vld [vmem:[#allocation4 + $0xe4] sm:$0xff]
    %v2487 = vld [vmem:[#allocation4 + $0xec] sm:$0xf]
    %v2488 = vld [vmem:[#allocation4 + $0xf0] sm:$0xff]
    %v2489 = vld [vmem:[#allocation4 + $0xf8] sm:$0xf]
    %v2490 = vld [vmem:[#allocation4 + $0xfc] sm:$0xff]
    %v2491 = vld [vmem:[#allocation4 + $0x104] sm:$0xf]
    %v2492 = vld [vmem:[#allocation4 + $0x108] sm:$0xff]
    %v2493 = vld [vmem:[#allocation4 + $0x110] sm:$0xf]
    %v2494 = vld [vmem:[#allocation4 + $0x114] sm:$0xff]
    %v2495 = vld [vmem:[#allocation4 + $0x11c] sm:$0xf]
    %v2496 = vld [vmem:[#allocation4 + $0x120] sm:$0xff]
    %v2497 = vld [vmem:[#allocation4 + $0x128] sm:$0xf]
    %v2498 = vld [vmem:[#allocation4 + $0x12c] sm:$0xff]
    %v2499 = vld [vmem:[#allocation4 + $0x134] sm:$0xf]
    %v2500 = vld [vmem:[#allocation4 + $0x138] sm:$0xff]
    %v2501 = vld [vmem:[#allocation4 + $0x140] sm:$0xf]
    %v2502 = vld [vmem:[#allocation4 + $0x144] sm:$0xff]
    %v2503 = vld [vmem:[#allocation4 + $0x14c] sm:$0xf]
    %v2504 = vld [vmem:[#allocation4 + $0x150] sm:$0xff]
    %v2505 = vld [vmem:[#allocation4 + $0x158] sm:$0xf]
    %v2506 = vld [vmem:[#allocation4 + $0x15c] sm:$0xff]
    %v2507 = vld [vmem:[#allocation4 + $0x164] sm:$0xf]
    %v2508 = vld [vmem:[#allocation4 + $0x168] sm:$0xff]
    %v2509 = vld [vmem:[#allocation4 + $0x170] sm:$0xf]
    %v2510 = vld [vmem:[#allocation4 + $0x174] sm:$0xff]
    %v2511 = vld [vmem:[#allocation4 + $0x17c] sm:$0xf]
    %v2512 = vld [vmem:[#allocation4 + $0x180] sm:$0xff]
    %v2513 = vld [vmem:[#allocation4 + $0x188] sm:$0xf]
    %v2514 = vld [vmem:[#allocation4 + $0x18c] sm:$0xff]
    %v2515 = vld [vmem:[#allocation4 + $0x194] sm:$0xf]
    %v2516 = vld [vmem:[#allocation4 + $0x198] sm:$0xff]
    %v2517 = vld [vmem:[#allocation4 + $0x1a0] sm:$0xf]
    %v2518 = vld [vmem:[#allocation4 + $0x1a4] sm:$0xff]
    %v2519 = vld [vmem:[#allocation4 + $0x1ac] sm:$0xf]
    %v2520 = vld [vmem:[#allocation4 + $0x1b0] sm:$0xff]
    %v2521 = vld [vmem:[#allocation4 + $0x1b8] sm:$0xf]
    %v2522 = vld [vmem:[#allocation4 + $0x1bc] sm:$0xff]
    %v2523 = vld [vmem:[#allocation4 + $0x1c4] sm:$0xf]
    %v2524 = vld [vmem:[#allocation4 + $0x1c8] sm:$0xff]
    %v2525 = vld [vmem:[#allocation4 + $0x1d0] sm:$0xf]
    %v2526 = vld [vmem:[#allocation4 + $0x1d4] sm:$0xff]
    %v2527 = vld [vmem:[#allocation4 + $0x1dc] sm:$0xf]
    %v2528 = vld [vmem:[#allocation4 + $0x1e0] sm:$0xff]
    %v2529 = vld [vmem:[#allocation4 + $0x1e8] sm:$0xf]
    %v2530 = vld [vmem:[#allocation4 + $0x1ec] sm:$0xff]
    %v2531 = vld [vmem:[#allocation4 + $0x1f4] sm:$0xf]
    %v2532 = vld [vmem:[#allocation4 + $0x1f8] sm:$0xff]
    %v2533 = vld [vmem:[#allocation4 + $0x200] sm:$0xf]
    %v2534 = vld [vmem:[#allocation4 + $0x204] sm:$0xff]
    %v2535 = vld [vmem:[#allocation4 + $0x20c] sm:$0xf]
    %v2536 = vld [vmem:[#allocation4 + $0x210] sm:$0xff]
    %v2537 = vld [vmem:[#allocation4 + $0x218] sm:$0xf]
    %v2538 = vld [vmem:[#allocation4 + $0x21c] sm:$0xff]
    %v2539 = vld [vmem:[#allocation4 + $0x224] sm:$0xf]
    %v2540 = vld [vmem:[#allocation4 + $0x228] sm:$0xff]
    %v2541 = vld [vmem:[#allocation4 + $0x230] sm:$0xf]
    %v2542 = vld [vmem:[#allocation4 + $0x234] sm:$0xff]
    %v2543 = vld [vmem:[#allocation4 + $0x23c] sm:$0xf]
    %v2544 = vld [vmem:[#allocation4 + $0x240] sm:$0xff]
    %v2545 = vld [vmem:[#allocation4 + $0x248] sm:$0xf]
    %v2546 = vld [vmem:[#allocation4 + $0x24c] sm:$0xff]
    %v2547 = vld [vmem:[#allocation4 + $0x254] sm:$0xf]
    %v2548 = vld [vmem:[#allocation4 + $0x258] sm:$0xff]
    %v2549 = vld [vmem:[#allocation4 + $0x260] sm:$0xf]
    %v2550 = vld [vmem:[#allocation4 + $0x264] sm:$0xff]
    %v2551 = vld [vmem:[#allocation4 + $0x26c] sm:$0xf]
    %v2552 = vld [vmem:[#allocation4 + $0x270] sm:$0xff]
    %v2553 = vld [vmem:[#allocation4 + $0x278] sm:$0xf]
    %v2554 = vld [vmem:[#allocation4 + $0x27c] sm:$0xff]
    %v2555 = vld [vmem:[#allocation4 + $0x284] sm:$0xf]
    %v2556 = vld [vmem:[#allocation4 + $0x288] sm:$0xff]
    %v2557 = vld [vmem:[#allocation4 + $0x290] sm:$0xf]
    %v2558 = vld [vmem:[#allocation4 + $0x294] sm:$0xff]
    %v2559 = vld [vmem:[#allocation4 + $0x29c] sm:$0xf]
    %v2560 = vld [vmem:[#allocation4 + $0x2a0] sm:$0xff]
    %v2561 = vld [vmem:[#allocation4 + $0x2a8] sm:$0xf]
    %v2562 = vld [vmem:[#allocation4 + $0x2ac] sm:$0xff]
    %v2563 = vld [vmem:[#allocation4 + $0x2b4] sm:$0xf]
    %v2564 = vld [vmem:[#allocation4 + $0x2b8] sm:$0xff]
    %v2565 = vld [vmem:[#allocation4 + $0x2c0] sm:$0xf]
    %v2566 = vld [vmem:[#allocation4 + $0x2c4] sm:$0xff]
    %v2567 = vld [vmem:[#allocation4 + $0x2cc] sm:$0xf]
    %v2568 = vld [vmem:[#allocation4 + $0x2d0] sm:$0xff]
    %v2569 = vld [vmem:[#allocation4 + $0x2d8] sm:$0xf]
    %v2570 = vld [vmem:[#allocation4 + $0x2dc] sm:$0xff]
    %v2571 = vld [vmem:[#allocation4 + $0x2e4] sm:$0xf]
    %v2572 = vld [vmem:[#allocation4 + $0x2e8] sm:$0xff]
    %v2573 = vld [vmem:[#allocation4 + $0x2f0] sm:$0xf]
    %v2574 = vld [vmem:[#allocation4 + $0x2f4] sm:$0xff]
    %v2575 = vld [vmem:[#allocation4 + $0x2fc] sm:$0xf]
    %v2576 = vld [vmem:[%s6] sm:$0x7]
    %v2578 = vlaneseq
    %v2579 = vshrl.u32 %v2578, 7
    %v2580 = vsub.s32 0, %v2579
    %v2581 = vrot.slane %v2576, %v2580
    %v2582 = vlaneseq
    %v2583 = vshrl.u32 %v2582, 7
    %v2584 = vsub.s32 1, %v2583
    %v2585 = vrot.slane %v2576, %v2584
    %v2586 = vlaneseq
    %v2587 = vshrl.u32 %v2586, 7
    %v2588 = vsub.s32 2, %v2587
    %v2589 = vrot.slane %v2576, %v2588
    %v2721 = vunpack.c.l.b16 %v2448
    %v2722 = vunpack.c.h.b16 %v2448
    %v2723 = vunpack.c.l.b16 %v2449
    %v2724 = vunpack.c.l.b16 %v2450
    %v2725 = vunpack.c.h.b16 %v2450
    %v2726 = vunpack.c.l.b16 %v2451
    %v2727 = vunpack.c.l.b16 %v2452
    %v2728 = vunpack.c.h.b16 %v2452
    %v2729 = vunpack.c.l.b16 %v2453
    %v2730 = vunpack.c.l.b16 %v2454
    %v2731 = vunpack.c.h.b16 %v2454
    %v2732 = vunpack.c.l.b16 %v2455
    %v2733 = vunpack.c.l.b16 %v2456
    %v2734 = vunpack.c.h.b16 %v2456
    %v2735 = vunpack.c.l.b16 %v2457
    %v2736 = vunpack.c.l.b16 %v2458
    %v2737 = vunpack.c.h.b16 %v2458
    %v2738 = vunpack.c.l.b16 %v2459
    %v2739 = vunpack.c.l.b16 %v2460
    %v2740 = vunpack.c.h.b16 %v2460
    %v2741 = vunpack.c.l.b16 %v2461
    %v2742 = vunpack.c.l.b16 %v2462
    %v2743 = vunpack.c.h.b16 %v2462
    %v2744 = vunpack.c.l.b16 %v2463
    %v2745 = vunpack.c.l.b16 %v2464
    %v2746 = vunpack.c.h.b16 %v2464
    %v2747 = vunpack.c.l.b16 %v2465
    %v2748 = vunpack.c.l.b16 %v2466
    %v2749 = vunpack.c.h.b16 %v2466
    %v2750 = vunpack.c.l.b16 %v2467
    %v2751 = vunpack.c.l.b16 %v2468
    %v2752 = vunpack.c.h.b16 %v2468
    %v2753 = vunpack.c.l.b16 %v2469
    %v2754 = vunpack.c.l.b16 %v2470
    %v2755 = vunpack.c.h.b16 %v2470
    %v2756 = vunpack.c.l.b16 %v2471
    %v2757 = vunpack.c.l.b16 %v2472
    %v2758 = vunpack.c.h.b16 %v2472
    %v2759 = vunpack.c.l.b16 %v2473
    %v2760 = vunpack.c.l.b16 %v2474
    %v2761 = vunpack.c.h.b16 %v2474
    %v2762 = vunpack.c.l.b16 %v2475
    %v2763 = vunpack.c.l.b16 %v2476
    %v2764 = vunpack.c.h.b16 %v2476
    %v2765 = vunpack.c.l.b16 %v2477
    %v2766 = vunpack.c.l.b16 %v2478
    %v2767 = vunpack.c.h.b16 %v2478
    %v2768 = vunpack.c.l.b16 %v2479
    %v2769 = vunpack.c.l.b16 %v2480
    %v2770 = vunpack.c.h.b16 %v2480
    %v2771 = vunpack.c.l.b16 %v2481
    %v2772 = vunpack.c.l.b16 %v2482
    %v2773 = vunpack.c.h.b16 %v2482
    %v2774 = vunpack.c.l.b16 %v2483
    %v2775 = vunpack.c.l.b16 %v2484
    %v2776 = vunpack.c.h.b16 %v2484
    %v2777 = vunpack.c.l.b16 %v2485
    %v2778 = vunpack.c.l.b16 %v2486
    %v2779 = vunpack.c.h.b16 %v2486
    %v2780 = vunpack.c.l.b16 %v2487
    %v2781 = vunpack.c.l.b16 %v2488
    %v2782 = vunpack.c.h.b16 %v2488
    %v2783 = vunpack.c.l.b16 %v2489
    %v2784 = vunpack.c.l.b16 %v2490
    %v2785 = vunpack.c.h.b16 %v2490
    %v2786 = vunpack.c.l.b16 %v2491
    %v2787 = vunpack.c.l.b16 %v2492
    %v2788 = vunpack.c.h.b16 %v2492
    %v2789 = vunpack.c.l.b16 %v2493
    %v2790 = vunpack.c.l.b16 %v2494
    %v2791 = vunpack.c.h.b16 %v2494
    %v2792 = vunpack.c.l.b16 %v2495
    %v2793 = vunpack.c.l.b16 %v2496
    %v2794 = vunpack.c.h.b16 %v2496
    %v2795 = vunpack.c.l.b16 %v2497
    %v2796 = vunpack.c.l.b16 %v2498
    %v2797 = vunpack.c.h.b16 %v2498
    %v2798 = vunpack.c.l.b16 %v2499
    %v2799 = vunpack.c.l.b16 %v2500
    %v2800 = vunpack.c.h.b16 %v2500
    %v2801 = vunpack.c.l.b16 %v2501
    %v2802 = vunpack.c.l.b16 %v2502
    %v2803 = vunpack.c.h.b16 %v2502
    %v2804 = vunpack.c.l.b16 %v2503
    %v2805 = vunpack.c.l.b16 %v2504
    %v2806 = vunpack.c.h.b16 %v2504
    %v2807 = vunpack.c.l.b16 %v2505
    %v2808 = vunpack.c.l.b16 %v2506
    %v2809 = vunpack.c.h.b16 %v2506
    %v2810 = vunpack.c.l.b16 %v2507
    %v2811 = vunpack.c.l.b16 %v2508
    %v2812 = vunpack.c.h.b16 %v2508
    %v2813 = vunpack.c.l.b16 %v2509
    %v2814 = vunpack.c.l.b16 %v2510
    %v2815 = vunpack.c.h.b16 %v2510
    %v2816 = vunpack.c.l.b16 %v2511
    %v2817 = vunpack.c.l.b16 %v2512
    %v2818 = vunpack.c.h.b16 %v2512
    %v2819 = vunpack.c.l.b16 %v2513
    %v2820 = vunpack.c.l.b16 %v2514
    %v2821 = vunpack.c.h.b16 %v2514
    %v2822 = vunpack.c.l.b16 %v2515
    %v2823 = vunpack.c.l.b16 %v2516
    %v2824 = vunpack.c.h.b16 %v2516
    %v2825 = vunpack.c.l.b16 %v2517
    %v2826 = vunpack.c.l.b16 %v2518
    %v2827 = vunpack.c.h.b16 %v2518
    %v2828 = vunpack.c.l.b16 %v2519
    %v2829 = vunpack.c.l.b16 %v2520
    %v2830 = vunpack.c.h.b16 %v2520
    %v2831 = vunpack.c.l.b16 %v2521
    %v2832 = vunpack.c.l.b16 %v2522
    %v2833 = vunpack.c.h.b16 %v2522
    %v2834 = vunpack.c.l.b16 %v2523
    %v2835 = vunpack.c.l.b16 %v2524
    %v2836 = vunpack.c.h.b16 %v2524
    %v2837 = vunpack.c.l.b16 %v2525
    %v2838 = vunpack.c.l.b16 %v2526
    %v2839 = vunpack.c.h.b16 %v2526
    %v2840 = vunpack.c.l.b16 %v2527
    %v2841 = vunpack.c.l.b16 %v2528
    %v2842 = vunpack.c.h.b16 %v2528
    %v2843 = vunpack.c.l.b16 %v2529
    %v2844 = vunpack.c.l.b16 %v2530
    %v2845 = vunpack.c.h.b16 %v2530
    %v2846 = vunpack.c.l.b16 %v2531
    %v2847 = vunpack.c.l.b16 %v2532
    %v2848 = vunpack.c.h.b16 %v2532
    %v2849 = vunpack.c.l.b16 %v2533
    %v2850 = vunpack.c.l.b16 %v2534
    %v2851 = vunpack.c.h.b16 %v2534
    %v2852 = vunpack.c.l.b16 %v2535
    %v2853 = vunpack.c.l.b16 %v2536
    %v2854 = vunpack.c.h.b16 %v2536
    %v2855 = vunpack.c.l.b16 %v2537
    %v2856 = vunpack.c.l.b16 %v2538
    %v2857 = vunpack.c.h.b16 %v2538
    %v2858 = vunpack.c.l.b16 %v2539
    %v2859 = vunpack.c.l.b16 %v2540
    %v2860 = vunpack.c.h.b16 %v2540
    %v2861 = vunpack.c.l.b16 %v2541
    %v2862 = vunpack.c.l.b16 %v2542
    %v2863 = vunpack.c.h.b16 %v2542
    %v2864 = vunpack.c.l.b16 %v2543
    %v2865 = vunpack.c.l.b16 %v2544
    %v2866 = vunpack.c.h.b16 %v2544
    %v2867 = vunpack.c.l.b16 %v2545
    %v2868 = vunpack.c.l.b16 %v2546
    %v2869 = vunpack.c.h.b16 %v2546
    %v2870 = vunpack.c.l.b16 %v2547
    %v2871 = vunpack.c.l.b16 %v2548
    %v2872 = vunpack.c.h.b16 %v2548
    %v2873 = vunpack.c.l.b16 %v2549
    %v2874 = vunpack.c.l.b16 %v2550
    %v2875 = vunpack.c.h.b16 %v2550
    %v2876 = vunpack.c.l.b16 %v2551
    %v2877 = vunpack.c.l.b16 %v2552
    %v2878 = vunpack.c.h.b16 %v2552
    %v2879 = vunpack.c.l.b16 %v2553
    %v2880 = vunpack.c.l.b16 %v2554
    %v2881 = vunpack.c.h.b16 %v2554
    %v2882 = vunpack.c.l.b16 %v2555
    %v2883 = vunpack.c.l.b16 %v2556
    %v2884 = vunpack.c.h.b16 %v2556
    %v2885 = vunpack.c.l.b16 %v2557
    %v2886 = vunpack.c.l.b16 %v2558
    %v2887 = vunpack.c.h.b16 %v2558
    %v2888 = vunpack.c.l.b16 %v2559
    %v2889 = vunpack.c.l.b16 %v2560
    %v2890 = vunpack.c.h.b16 %v2560
    %v2891 = vunpack.c.l.b16 %v2561
    %v2892 = vunpack.c.l.b16 %v2562
    %v2893 = vunpack.c.h.b16 %v2562
    %v2894 = vunpack.c.l.b16 %v2563
    %v2895 = vunpack.c.l.b16 %v2564
    %v2896 = vunpack.c.h.b16 %v2564
    %v2897 = vunpack.c.l.b16 %v2565
    %v2898 = vunpack.c.l.b16 %v2566
    %v2899 = vunpack.c.h.b16 %v2566
    %v2900 = vunpack.c.l.b16 %v2567
    %v2901 = vunpack.c.l.b16 %v2568
    %v2902 = vunpack.c.h.b16 %v2568
    %v2903 = vunpack.c.l.b16 %v2569
    %v2904 = vunpack.c.l.b16 %v2570
    %v2905 = vunpack.c.h.b16 %v2570
    %v2906 = vunpack.c.l.b16 %v2571
    %v2907 = vunpack.c.l.b16 %v2572
    %v2908 = vunpack.c.h.b16 %v2572
    %v2909 = vunpack.c.l.b16 %v2573
    %v2910 = vunpack.c.l.b16 %v2574
    %v2911 = vunpack.c.h.b16 %v2574
    %v2912 = vunpack.c.l.b16 %v2575
    %v2913 = vpack.c.b16 %v2724, %v2721
    %v2914 = vpack.c.b16 %v2725, %v2722
    %v2915 = vpack.c.b16 %v2726, %v2723
    %v2916 = vpack.c.b16 %v2730, %v2727
    %v2917 = vpack.c.b16 %v2731, %v2728
    %v2918 = vpack.c.b16 %v2732, %v2729
    %v2919 = vpack.c.b16 %v2736, %v2733
    %v2920 = vpack.c.b16 %v2737, %v2734
    %v2921 = vpack.c.b16 %v2738, %v2735
    %v2922 = vpack.c.b16 %v2742, %v2739
    %v2923 = vpack.c.b16 %v2743, %v2740
    %v2924 = vpack.c.b16 %v2744, %v2741
    %v2925 = vpack.c.b16 %v2748, %v2745
    %v2926 = vpack.c.b16 %v2749, %v2746
    %v2927 = vpack.c.b16 %v2750, %v2747
    %v2928 = vpack.c.b16 %v2754, %v2751
    %v2929 = vpack.c.b16 %v2755, %v2752
    %v2930 = vpack.c.b16 %v2756, %v2753
    %v2931 = vpack.c.b16 %v2760, %v2757
    %v2932 = vpack.c.b16 %v2761, %v2758
    %v2933 = vpack.c.b16 %v2762, %v2759
    %v2934 = vpack.c.b16 %v2766, %v2763
    %v2935 = vpack.c.b16 %v2767, %v2764
    %v2936 = vpack.c.b16 %v2768, %v2765
    %v2937 = vpack.c.b16 %v2772, %v2769
    %v2938 = vpack.c.b16 %v2773, %v2770
    %v2939 = vpack.c.b16 %v2774, %v2771
    %v2940 = vpack.c.b16 %v2778, %v2775
    %v2941 = vpack.c.b16 %v2779, %v2776
    %v2942 = vpack.c.b16 %v2780, %v2777
    %v2943 = vpack.c.b16 %v2784, %v2781
    %v2944 = vpack.c.b16 %v2785, %v2782
    %v2945 = vpack.c.b16 %v2786, %v2783
    %v2946 = vpack.c.b16 %v2790, %v2787
    %v2947 = vpack.c.b16 %v2791, %v2788
    %v2948 = vpack.c.b16 %v2792, %v2789
    %v2949 = vpack.c.b16 %v2796, %v2793
    %v2950 = vpack.c.b16 %v2797, %v2794
    %v2951 = vpack.c.b16 %v2798, %v2795
    %v2952 = vpack.c.b16 %v2802, %v2799
    %v2953 = vpack.c.b16 %v2803, %v2800
    %v2954 = vpack.c.b16 %v2804, %v2801
    %v2955 = vpack.c.b16 %v2808, %v2805
    %v2956 = vpack.c.b16 %v2809, %v2806
    %v2957 = vpack.c.b16 %v2810, %v2807
    %v2958 = vpack.c.b16 %v2814, %v2811
    %v2959 = vpack.c.b16 %v2815, %v2812
    %v2960 = vpack.c.b16 %v2816, %v2813
    %v2961 = vpack.c.b16 %v2820, %v2817
    %v2962 = vpack.c.b16 %v2821, %v2818
    %v2963 = vpack.c.b16 %v2822, %v2819
    %v2964 = vpack.c.b16 %v2826, %v2823
    %v2965 = vpack.c.b16 %v2827, %v2824
    %v2966 = vpack.c.b16 %v2828, %v2825
    %v2967 = vpack.c.b16 %v2832, %v2829
    %v2968 = vpack.c.b16 %v2833, %v2830
    %v2969 = vpack.c.b16 %v2834, %v2831
    %v2970 = vpack.c.b16 %v2838, %v2835
    %v2971 = vpack.c.b16 %v2839, %v2836
    %v2972 = vpack.c.b16 %v2840, %v2837
    %v2973 = vpack.c.b16 %v2844, %v2841
    %v2974 = vpack.c.b16 %v2845, %v2842
    %v2975 = vpack.c.b16 %v2846, %v2843
    %v2976 = vpack.c.b16 %v2850, %v2847
    %v2977 = vpack.c.b16 %v2851, %v2848
    %v2978 = vpack.c.b16 %v2852, %v2849
    %v2979 = vpack.c.b16 %v2856, %v2853
    %v2980 = vpack.c.b16 %v2857, %v2854
    %v2981 = vpack.c.b16 %v2858, %v2855
    %v2982 = vpack.c.b16 %v2862, %v2859
    %v2983 = vpack.c.b16 %v2863, %v2860
    %v2984 = vpack.c.b16 %v2864, %v2861
    %v2985 = vpack.c.b16 %v2868, %v2865
    %v2986 = vpack.c.b16 %v2869, %v2866
    %v2987 = vpack.c.b16 %v2870, %v2867
    %v2988 = vpack.c.b16 %v2874, %v2871
    %v2989 = vpack.c.b16 %v2875, %v2872
    %v2990 = vpack.c.b16 %v2876, %v2873
    %v2991 = vpack.c.b16 %v2880, %v2877
    %v2992 = vpack.c.b16 %v2881, %v2878
    %v2993 = vpack.c.b16 %v2882, %v2879
    %v2994 = vpack.c.b16 %v2886, %v2883
    %v2995 = vpack.c.b16 %v2887, %v2884
    %v2996 = vpack.c.b16 %v2888, %v2885
    %v2997 = vpack.c.b16 %v2892, %v2889
    %v2998 = vpack.c.b16 %v2893, %v2890
    %v2999 = vpack.c.b16 %v2894, %v2891
    %v3000 = vpack.c.b16 %v2898, %v2895
    %v3001 = vpack.c.b16 %v2899, %v2896
    %v3002 = vpack.c.b16 %v2900, %v2897
    %v3003 = vpack.c.b16 %v2904, %v2901
    %v3004 = vpack.c.b16 %v2905, %v2902
    %v3005 = vpack.c.b16 %v2906, %v2903
    %v3006 = vpack.c.b16 %v2910, %v2907
    %v3007 = vpack.c.b16 %v2911, %v2908
    %v3008 = vpack.c.b16 %v2912, %v2909
    %3105 = vmatprep.subr.bf16.mxu0 %v2914
    %3106 = vmatpush1.bf16.msra.mxu0 %v2913
    %3107 = vmatprep.subr.bf16.mxu0 %v2917
    %3108 = vmatpush1.bf16.msra.mxu0 %v2916
    %3109 = vmatprep.subr.bf16.mxu0 %v2920
    %3110 = vmatpush1.bf16.msra.mxu0 %v2919
    %3111 = vmatprep.subr.bf16.mxu0 %v2923
    %3112 = vmatpush1.bf16.msra.mxu0 %v2922
    %3113 = vmatprep.subr.bf16.mxu0 %v2926
    %3114 = vmatpush1.bf16.msra.mxu0 %v2925
    %3115 = vmatprep.subr.bf16.mxu0 %v2929
    %3116 = vmatpush1.bf16.msra.mxu0 %v2928
    %3117 = vmatprep.subr.bf16.mxu0 %v2932
    %3118 = vmatpush1.bf16.msra.mxu0 %v2931
    %3119 = vmatprep.subr.bf16.mxu0 %v2935
    %3120 = vmatpush1.bf16.msra.mxu0 %v2934
    %3121 = vmatprep.subr.bf16.mxu0 %v2938
    %3122 = vmatpush1.bf16.msra.mxu0 %v2937
    %3123 = vmatprep.subr.bf16.mxu0 %v2941
    %3124 = vmatpush1.bf16.msra.mxu0 %v2940
    %3125 = vmatprep.subr.bf16.mxu0 %v2944
    %3126 = vmatpush1.bf16.msra.mxu0 %v2943
    %3127 = vmatprep.subr.bf16.mxu0 %v2947
    %3128 = vmatpush1.bf16.msra.mxu0 %v2946
    %3129 = vmatprep.subr.bf16.mxu0 %v2950
    %3130 = vmatpush1.bf16.msra.mxu0 %v2949
    %3131 = vmatprep.subr.bf16.mxu0 %v2953
    %3132 = vmatpush1.bf16.msra.mxu0 %v2952
    %3133 = vmatprep.subr.bf16.mxu0 %v2956
    %3134 = vmatpush1.bf16.msra.mxu0 %v2955
    %3135 = vmatprep.subr.bf16.mxu0 %v2959
    %3136 = vmatpush1.bf16.msra.mxu0 %v2958
    %3137 = vmatprep.mubr.bf16.mxu0 %v2445
    %3138 = vmatmul.mubr.bf16.gmra.mrb[0].mxu0 %v2444
    %v3139 = vpop.f32.mrb[0].mxu0
    %v3140 = vadd.f32 %v2581, %v3139
    %v3141 = vpop.f32.mrb[0].mxu0
    %v3142 = vadd.f32 %v2585, %v3141
    %v3143 = vpop.f32.mrb[0].mxu0
    %v3144 = vpop.f32.mrb[0].mxu0
    %3145 = vdwg.mxu0
    %3146 = vmatprep.subr.bf16.mxu0 %v2962
    %3147 = vmatpush1.bf16.msra.mxu0 %v2961
    %3148 = vmatprep.subr.bf16.mxu0 %v2965
    %3149 = vmatpush1.bf16.msra.mxu0 %v2964
    %3150 = vmatprep.subr.bf16.mxu0 %v2968
    %3151 = vmatpush1.bf16.msra.mxu0 %v2967
    %3152 = vmatprep.subr.bf16.mxu0 %v2971
    %3153 = vmatpush1.bf16.msra.mxu0 %v2970
    %3154 = vmatprep.subr.bf16.mxu0 %v2974
    %3155 = vmatpush1.bf16.msra.mxu0 %v2973
    %3156 = vmatprep.subr.bf16.mxu0 %v2977
    %3157 = vmatpush1.bf16.msra.mxu0 %v2976
    %3158 = vmatprep.subr.bf16.mxu0 %v2980
    %3159 = vmatpush1.bf16.msra.mxu0 %v2979
    %3160 = vmatprep.subr.bf16.mxu0 %v2983
    %3161 = vmatpush1.bf16.msra.mxu0 %v2982
    %3162 = vmatprep.subr.bf16.mxu0 %v2986
    %3163 = vmatpush1.bf16.msra.mxu0 %v2985
    %3164 = vmatprep.subr.bf16.mxu0 %v2989
    %3165 = vmatpush1.bf16.msra.mxu0 %v2988
    %3166 = vmatprep.subr.bf16.mxu0 %v2992
    %3167 = vmatpush1.bf16.msra.mxu0 %v2991
    %3168 = vmatprep.subr.bf16.mxu0 %v2995
    %3169 = vmatpush1.bf16.msra.mxu0 %v2994
    %3170 = vmatprep.subr.bf16.mxu0 %v2998
    %3171 = vmatpush1.bf16.msra.mxu0 %v2997
    %3172 = vmatprep.subr.bf16.mxu0 %v3001
    %3173 = vmatpush1.bf16.msra.mxu0 %v3000
    %3174 = vmatprep.subr.bf16.mxu0 %v3004
    %3175 = vmatpush1.bf16.msra.mxu0 %v3003
    %3176 = vmatprep.subr.bf16.mxu0 %v3007
    %3177 = vmatpush1.bf16.msra.mxu0 %v3006
    %3178 = vmatprep.mubr.bf16.mxu0 %v2447
    %3179 = vmatmul.mubr.bf16.gmra.mrb[0].mxu0 %v2446
    %v3180 = vpop.f32.mrb[0].mxu0
    %v3181 = vadd.f32 %v3140, %v3180
    %v3182 = vpop.f32.mrb[0].mxu0
    %v3183 = vadd.f32 %v3142, %v3182
    %v3184 = vpop.f32.mrb[0].mxu0
    %v3185 = vpop.f32.mrb[0].mxu0
    %3186 = vdwg.mxu0
    %3187 = vmatprep.subr.bf16.mxu0 0
    %3188 = vmatpush1.bf16.msra.mxu0 %v2915
    %3189 = vmatprep.subr.bf16.mxu0 0
    %3190 = vmatpush1.bf16.msra.mxu0 %v2918
    %3191 = vmatprep.subr.bf16.mxu0 0
    %3192 = vmatpush1.bf16.msra.mxu0 %v2921
    %3193 = vmatprep.subr.bf16.mxu0 0
    %3194 = vmatpush1.bf16.msra.mxu0 %v2924
    %3195 = vmatprep.subr.bf16.mxu0 0
    %3196 = vmatpush1.bf16.msra.mxu0 %v2927
    %3197 = vmatprep.subr.bf16.mxu0 0
    %3198 = vmatpush1.bf16.msra.mxu0 %v2930
    %3199 = vmatprep.subr.bf16.mxu0 0
    %3200 = vmatpush1.bf16.msra.mxu0 %v2933
    %3201 = vmatprep.subr.bf16.mxu0 0
    %3202 = vmatpush1.bf16.msra.mxu0 %v2936
    %3203 = vmatprep.subr.bf16.mxu0 0
    %3204 = vmatpush1.bf16.msra.mxu0 %v2939
    %3205 = vmatprep.subr.bf16.mxu0 0
    %3206 = vmatpush1.bf16.msra.mxu0 %v2942
    %3207 = vmatprep.subr.bf16.mxu0 0
    %3208 = vmatpush1.bf16.msra.mxu0 %v2945
    %3209 = vmatprep.subr.bf16.mxu0 0
    %3210 = vmatpush1.bf16.msra.mxu0 %v2948
    %3211 = vmatprep.subr.bf16.mxu0 0
    %3212 = vmatpush1.bf16.msra.mxu0 %v2951
    %3213 = vmatprep.subr.bf16.mxu0 0
    %3214 = vmatpush1.bf16.msra.mxu0 %v2954
    %3215 = vmatprep.subr.bf16.mxu0 0
    %3216 = vmatpush1.bf16.msra.mxu0 %v2957
    %3217 = vmatprep.subr.bf16.mxu0 0
    %3218 = vmatpush1.bf16.msra.mxu0 %v2960
    %3219 = vmatprep.mubr.bf16.mxu0 %v2445
    %3220 = vmatmul.mubr.bf16.gmra.mrb[0].mxu0 %v2444
    %v3221 = vpop.f32.mrb[0].mxu0
    %v3222 = vadd.f32 %v2589, %v3221
    %v3223 = vpop.f32.mrb[0].mxu0
    %v3224 = vpop.f32.mrb[0].mxu0
    %v3225 = vpop.f32.mrb[0].mxu0
    %3226 = vdwg.mxu0
    %3227 = vmatprep.subr.bf16.mxu0 0
    %3228 = vmatpush1.bf16.msra.mxu0 %v2963
    %3229 = vmatprep.subr.bf16.mxu0 0
    %3230 = vmatpush1.bf16.msra.mxu0 %v2966
    %3231 = vmatprep.subr.bf16.mxu0 0
    %3232 = vmatpush1.bf16.msra.mxu0 %v2969
    %3233 = vmatprep.subr.bf16.mxu0 0
    %3234 = vmatpush1.bf16.msra.mxu0 %v2972
    %3235 = vmatprep.subr.bf16.mxu0 0
    %3236 = vmatpush1.bf16.msra.mxu0 %v2975
    %3237 = vmatprep.subr.bf16.mxu0 0
    %3238 = vmatpush1.bf16.msra.mxu0 %v2978
    %3239 = vmatprep.subr.bf16.mxu0 0
    %3240 = vmatpush1.bf16.msra.mxu0 %v2981
    %3241 = vmatprep.subr.bf16.mxu0 0
    %3242 = vmatpush1.bf16.msra.mxu0 %v2984
    %3243 = vmatprep.subr.bf16.mxu0 0
    %3244 = vmatpush1.bf16.msra.mxu0 %v2987
    %3245 = vmatprep.subr.bf16.mxu0 0
    %3246 = vmatpush1.bf16.msra.mxu0 %v2990
    %3247 = vmatprep.subr.bf16.mxu0 0
    %3248 = vmatpush1.bf16.msra.mxu0 %v2993
    %3249 = vmatprep.subr.bf16.mxu0 0
    %3250 = vmatpush1.bf16.msra.mxu0 %v2996
    %3251 = vmatprep.subr.bf16.mxu0 0
    %3252 = vmatpush1.bf16.msra.mxu0 %v2999
    %3253 = vmatprep.subr.bf16.mxu0 0
    %3254 = vmatpush1.bf16.msra.mxu0 %v3002
    %3255 = vmatprep.subr.bf16.mxu0 0
    %3256 = vmatpush1.bf16.msra.mxu0 %v3005
    %3257 = vmatprep.subr.bf16.mxu0 0
    %3258 = vmatpush1.bf16.msra.mxu0 %v3008
    %3259 = vmatprep.mubr.bf16.mxu0 %v2447
    %3260 = vmatmul.mubr.bf16.gmra.mrb[0].mxu0 %v2446
    %v3261 = vpop.f32.mrb[0].mxu0
    %v3262 = vadd.f32 %v3222, %v3261
    %v3263 = vpop.f32.mrb[0].mxu0
    %v3264 = vpop.f32.mrb[0].mxu0
    %v3265 = vpop.f32.mrb[0].mxu0
    %3266 = vdwg.mxu0
    %v3267 = vmax.f32 %v3181, 0.0
    %v3268 = vmax.f32 %v3183, 0.0
    %v3269 = vmax.f32 %v3262, 0.0
    %v3270 = vpack.c.bf16 %v3267, %v3267
    %v3271 = vpack.c.bf16 %v3268, %v3268
    %v3272 = vpack.c.bf16 %v3269, %v3269
    %v3273 = vld [vmem:[#allocation6] sm:$0xff]
    %v3274 = vld [vmem:[#allocation6 + $0x8] sm:$0xff]
    %v3275 = vld [vmem:[#allocation6 + $0x10] sm:$0xff]
    %v3276 = vld [vmem:[#allocation6 + $0x18] sm:$0xff]
    %v3277 = vld [vmem:[#allocation6 + $0x20] sm:$0xff]
    %v3278 = vld [vmem:[#allocation6 + $0x28] sm:$0xff]
    %v3279 = vld [vmem:[#allocation6 + $0x30] sm:$0xff]
    %v3280 = vld [vmem:[#allocation6 + $0x38] sm:$0xff]
    %v3281 = vld [vmem:[#allocation6 + $0x40] sm:$0xff]
    %v3282 = vld [vmem:[#allocation6 + $0x48] sm:$0xff]
    %v3283 = vld [vmem:[#allocation6 + $0x50] sm:$0xff]
    %v3284 = vld [vmem:[#allocation6 + $0x58] sm:$0xff]
    %v3285 = vld [vmem:[#allocation6 + $0x60] sm:$0xff]
    %v3286 = vld [vmem:[#allocation6 + $0x68] sm:$0xff]
    %v3287 = vld [vmem:[#allocation6 + $0x70] sm:$0xff]
    %v3288 = vld [vmem:[#allocation6 + $0x78] sm:$0xff]
    %v3289 = vld [vmem:[#allocation6 + $0x80] sm:$0xff]
    %v3290 = vld [vmem:[#allocation6 + $0x88] sm:$0xff]
    %v3291 = vld [vmem:[#allocation6 + $0x90] sm:$0xff]
    %v3292 = vld [vmem:[#allocation6 + $0x98] sm:$0xff]
    %v3293 = vld [vmem:[#allocation6 + $0xa0] sm:$0xff]
    %v3294 = vld [vmem:[#allocation6 + $0xa8] sm:$0xff]
    %v3295 = vld [vmem:[#allocation6 + $0xb0] sm:$0xff]
    %v3296 = vld [vmem:[#allocation6 + $0xb8] sm:$0xff]
    %v3297 = vld [vmem:[#allocation6 + $0xc0] sm:$0xff]
    %v3298 = vld [vmem:[#allocation6 + $0xc8] sm:$0xff]
    %v3299 = vld [vmem:[#allocation6 + $0xd0] sm:$0xff]
    %v3300 = vld [vmem:[#allocation6 + $0xd8] sm:$0xff]
    %v3301 = vld [vmem:[#allocation6 + $0xe0] sm:$0xff]
    %v3302 = vld [vmem:[#allocation6 + $0xe8] sm:$0xff]
    %v3303 = vld [vmem:[#allocation6 + $0xf0] sm:$0xff]
    %v3304 = vld [vmem:[#allocation6 + $0xf8] sm:$0xff]
    %v3305 = vld [vmem:[#allocation6 + $0x100] sm:$0xff]
    %v3306 = vld [vmem:[#allocation6 + $0x108] sm:$0xff]
    %v3307 = vld [vmem:[#allocation6 + $0x110] sm:$0xff]
    %v3308 = vld [vmem:[#allocation6 + $0x118] sm:$0xff]
    %v3309 = vld [vmem:[#allocation6 + $0x120] sm:$0xff]
    %v3310 = vld [vmem:[#allocation6 + $0x128] sm:$0xff]
    %v3311 = vld [vmem:[#allocation6 + $0x130] sm:$0xff]
    %v3312 = vld [vmem:[#allocation6 + $0x138] sm:$0xff]
    %v3313 = vld [vmem:[#allocation6 + $0x140] sm:$0xff]
    %v3314 = vld [vmem:[#allocation6 + $0x148] sm:$0xff]
    %v3315 = vld [vmem:[#allocation6 + $0x150] sm:$0xff]
    %v3316 = vld [vmem:[#allocation6 + $0x158] sm:$0xff]
    %v3317 = vld [vmem:[#allocation6 + $0x160] sm:$0xff]
    %v3318 = vld [vmem:[#allocation6 + $0x168] sm:$0xff]
    %v3319 = vld [vmem:[#allocation6 + $0x170] sm:$0xff]
    %v3320 = vld [vmem:[#allocation6 + $0x178] sm:$0xff]
    %v3321 = vld [vmem:[#allocation6 + $0x180] sm:$0xff]
    %v3322 = vld [vmem:[#allocation6 + $0x188] sm:$0xff]
    %v3323 = vld [vmem:[#allocation6 + $0x190] sm:$0xff]
    %v3324 = vld [vmem:[#allocation6 + $0x198] sm:$0xff]
    %v3325 = vld [vmem:[#allocation6 + $0x1a0] sm:$0xff]
    %v3326 = vld [vmem:[#allocation6 + $0x1a8] sm:$0xff]
    %v3327 = vld [vmem:[#allocation6 + $0x1b0] sm:$0xff]
    %v3328 = vld [vmem:[#allocation6 + $0x1b8] sm:$0xff]
    %v3329 = vld [vmem:[#allocation6 + $0x1c0] sm:$0xff]
    %v3330 = vld [vmem:[#allocation6 + $0x1c8] sm:$0xff]
    %v3331 = vld [vmem:[#allocation6 + $0x1d0] sm:$0xff]
    %v3332 = vld [vmem:[#allocation6 + $0x1d8] sm:$0xff]
    %v3333 = vld [vmem:[#allocation6 + $0x1e0] sm:$0xff]
    %v3334 = vld [vmem:[#allocation6 + $0x1e8] sm:$0xff]
    %v3335 = vld [vmem:[#allocation6 + $0x1f0] sm:$0xff]
    %v3336 = vld [vmem:[#allocation6 + $0x1f8] sm:$0xff]
    %v3337 = vld [vmem:[#allocation6 + $0x200] sm:$0xff]
    %v3338 = vld [vmem:[#allocation6 + $0x208] sm:$0xff]
    %v3339 = vld [vmem:[#allocation6 + $0x210] sm:$0xff]
    %v3340 = vld [vmem:[#allocation6 + $0x218] sm:$0xff]
    %v3341 = vld [vmem:[#allocation6 + $0x220] sm:$0xff]
    %v3342 = vld [vmem:[#allocation6 + $0x228] sm:$0xff]
    %v3343 = vld [vmem:[#allocation6 + $0x230] sm:$0xff]
    %v3344 = vld [vmem:[#allocation6 + $0x238] sm:$0xff]
    %v3345 = vld [vmem:[#allocation6 + $0x240] sm:$0xff]
    %v3346 = vld [vmem:[#allocation6 + $0x248] sm:$0xff]
    %v3347 = vld [vmem:[#allocation6 + $0x250] sm:$0xff]
    %v3348 = vld [vmem:[#allocation6 + $0x258] sm:$0xff]
    %v3349 = vld [vmem:[#allocation6 + $0x260] sm:$0xff]
    %v3350 = vld [vmem:[#allocation6 + $0x268] sm:$0xff]
    %v3351 = vld [vmem:[#allocation6 + $0x270] sm:$0xff]
    %v3352 = vld [vmem:[#allocation6 + $0x278] sm:$0xff]
    %v3353 = vld [vmem:[#allocation6 + $0x280] sm:$0xff]
    %v3354 = vld [vmem:[#allocation6 + $0x288] sm:$0xff]
    %v3355 = vld [vmem:[#allocation6 + $0x290] sm:$0xff]
    %v3356 = vld [vmem:[#allocation6 + $0x298] sm:$0xff]
    %v3357 = vld [vmem:[#allocation6 + $0x2a0] sm:$0xff]
    %v3358 = vld [vmem:[#allocation6 + $0x2a8] sm:$0xff]
    %v3359 = vld [vmem:[#allocation6 + $0x2b0] sm:$0xff]
    %v3360 = vld [vmem:[#allocation6 + $0x2b8] sm:$0xff]
    %v3361 = vld [vmem:[#allocation6 + $0x2c0] sm:$0xff]
    %v3362 = vld [vmem:[#allocation6 + $0x2c8] sm:$0xff]
    %v3363 = vld [vmem:[#allocation6 + $0x2d0] sm:$0xff]
    %v3364 = vld [vmem:[#allocation6 + $0x2d8] sm:$0xff]
    %v3365 = vld [vmem:[#allocation6 + $0x2e0] sm:$0xff]
    %v3366 = vld [vmem:[#allocation6 + $0x2e8] sm:$0xff]
    %v3367 = vld [vmem:[#allocation6 + $0x2f0] sm:$0xff]
    %v3368 = vld [vmem:[#allocation6 + $0x2f8] sm:$0xff]
    %v3369 = vld [vmem:[#allocation6 + $0x300] sm:$0xff]
    %v3370 = vld [vmem:[#allocation6 + $0x308] sm:$0xff]
    %v3371 = vld [vmem:[#allocation6 + $0x310] sm:$0xff]
    %v3372 = vld [vmem:[#allocation6 + $0x318] sm:$0xff]
    %v3373 = vld [vmem:[#allocation6 + $0x320] sm:$0xff]
    %v3374 = vld [vmem:[#allocation6 + $0x328] sm:$0xff]
    %v3375 = vld [vmem:[#allocation6 + $0x330] sm:$0xff]
    %v3376 = vld [vmem:[#allocation6 + $0x338] sm:$0xff]
    %v3377 = vld [vmem:[#allocation6 + $0x340] sm:$0xff]
    %v3378 = vld [vmem:[#allocation6 + $0x348] sm:$0xff]
    %v3379 = vld [vmem:[#allocation6 + $0x350] sm:$0xff]
    %v3380 = vld [vmem:[#allocation6 + $0x358] sm:$0xff]
    %v3381 = vld [vmem:[#allocation6 + $0x360] sm:$0xff]
    %v3382 = vld [vmem:[#allocation6 + $0x368] sm:$0xff]
    %v3383 = vld [vmem:[#allocation6 + $0x370] sm:$0xff]
    %v3384 = vld [vmem:[#allocation6 + $0x378] sm:$0xff]
    %v3385 = vld [vmem:[#allocation6 + $0x380] sm:$0xff]
    %v3386 = vld [vmem:[#allocation6 + $0x388] sm:$0xff]
    %v3387 = vld [vmem:[#allocation6 + $0x390] sm:$0xff]
    %v3388 = vld [vmem:[#allocation6 + $0x398] sm:$0xff]
    %v3389 = vld [vmem:[#allocation6 + $0x3a0] sm:$0xff]
    %v3390 = vld [vmem:[#allocation6 + $0x3a8] sm:$0xff]
    %v3391 = vld [vmem:[#allocation6 + $0x3b0] sm:$0xff]
    %v3392 = vld [vmem:[#allocation6 + $0x3b8] sm:$0xff]
    %v3393 = vld [vmem:[#allocation6 + $0x3c0] sm:$0xff]
    %v3394 = vld [vmem:[#allocation6 + $0x3c8] sm:$0xff]
    %v3395 = vld [vmem:[#allocation6 + $0x3d0] sm:$0xff]
    %v3396 = vld [vmem:[#allocation6 + $0x3d8] sm:$0xff]
    %v3397 = vld [vmem:[#allocation6 + $0x3e0] sm:$0xff]
    %v3398 = vld [vmem:[#allocation6 + $0x3e8] sm:$0xff]
    %v3399 = vld [vmem:[#allocation6 + $0x3f0] sm:$0xff]
    %v3400 = vld [vmem:[#allocation6 + $0x3f8] sm:$0xff]
    %v3401 = vld [vmem:[#allocation6 + $0x400] sm:$0xff]
    %v3402 = vld [vmem:[#allocation6 + $0x408] sm:$0xff]
    %v3403 = vld [vmem:[#allocation6 + $0x410] sm:$0xff]
    %v3404 = vld [vmem:[#allocation6 + $0x418] sm:$0xff]
    %v3405 = vld [vmem:[#allocation6 + $0x420] sm:$0xff]
    %v3406 = vld [vmem:[#allocation6 + $0x428] sm:$0xff]
    %v3407 = vld [vmem:[#allocation6 + $0x430] sm:$0xff]
    %v3408 = vld [vmem:[#allocation6 + $0x438] sm:$0xff]
    %v3409 = vld [vmem:[#allocation6 + $0x440] sm:$0xff]
    %v3410 = vld [vmem:[#allocation6 + $0x448] sm:$0xff]
    %v3411 = vld [vmem:[#allocation6 + $0x450] sm:$0xff]
    %v3412 = vld [vmem:[#allocation6 + $0x458] sm:$0xff]
    %v3413 = vld [vmem:[#allocation6 + $0x460] sm:$0xff]
    %v3414 = vld [vmem:[#allocation6 + $0x468] sm:$0xff]
    %v3415 = vld [vmem:[#allocation6 + $0x470] sm:$0xff]
    %v3416 = vld [vmem:[#allocation6 + $0x478] sm:$0xff]
    %v3417 = vld [vmem:[#allocation6 + $0x480] sm:$0xff]
    %v3418 = vld [vmem:[#allocation6 + $0x488] sm:$0xff]
    %v3419 = vld [vmem:[#allocation6 + $0x490] sm:$0xff]
    %v3420 = vld [vmem:[#allocation6 + $0x498] sm:$0xff]
    %v3421 = vld [vmem:[#allocation6 + $0x4a0] sm:$0xff]
    %v3422 = vld [vmem:[#allocation6 + $0x4a8] sm:$0xff]
    %v3423 = vld [vmem:[#allocation6 + $0x4b0] sm:$0xff]
    %v3424 = vld [vmem:[#allocation6 + $0x4b8] sm:$0xff]
    %v3425 = vld [vmem:[#allocation6 + $0x4c0] sm:$0xff]
    %v3426 = vld [vmem:[#allocation6 + $0x4c8] sm:$0xff]
    %v3427 = vld [vmem:[#allocation6 + $0x4d0] sm:$0xff]
    %v3428 = vld [vmem:[#allocation6 + $0x4d8] sm:$0xff]
    %v3429 = vld [vmem:[#allocation6 + $0x4e0] sm:$0xff]
    %v3430 = vld [vmem:[#allocation6 + $0x4e8] sm:$0xff]
    %v3431 = vld [vmem:[#allocation6 + $0x4f0] sm:$0xff]
    %v3432 = vld [vmem:[#allocation6 + $0x4f8] sm:$0xff]
    %v3433 = vld [vmem:[#allocation6 + $0x500] sm:$0xff]
    %v3434 = vld [vmem:[#allocation6 + $0x508] sm:$0xff]
    %v3435 = vld [vmem:[#allocation6 + $0x510] sm:$0xff]
    %v3436 = vld [vmem:[#allocation6 + $0x518] sm:$0xff]
    %v3437 = vld [vmem:[#allocation6 + $0x520] sm:$0xff]
    %v3438 = vld [vmem:[#allocation6 + $0x528] sm:$0xff]
    %v3439 = vld [vmem:[#allocation6 + $0x530] sm:$0xff]
    %v3440 = vld [vmem:[#allocation6 + $0x538] sm:$0xff]
    %v3441 = vld [vmem:[#allocation6 + $0x540] sm:$0xff]
    %v3442 = vld [vmem:[#allocation6 + $0x548] sm:$0xff]
    %v3443 = vld [vmem:[#allocation6 + $0x550] sm:$0xff]
    %v3444 = vld [vmem:[#allocation6 + $0x558] sm:$0xff]
    %v3445 = vld [vmem:[#allocation6 + $0x560] sm:$0xff]
    %v3446 = vld [vmem:[#allocation6 + $0x568] sm:$0xff]
    %v3447 = vld [vmem:[#allocation6 + $0x570] sm:$0xff]
    %v3448 = vld [vmem:[#allocation6 + $0x578] sm:$0xff]
    %v3449 = vld [vmem:[#allocation6 + $0x580] sm:$0xff]
    %v3450 = vld [vmem:[#allocation6 + $0x588] sm:$0xff]
    %v3451 = vld [vmem:[#allocation6 + $0x590] sm:$0xff]
    %v3452 = vld [vmem:[#allocation6 + $0x598] sm:$0xff]
    %v3453 = vld [vmem:[#allocation6 + $0x5a0] sm:$0xff]
    %v3454 = vld [vmem:[#allocation6 + $0x5a8] sm:$0xff]
    %v3455 = vld [vmem:[#allocation6 + $0x5b0] sm:$0xff]
    %v3456 = vld [vmem:[#allocation6 + $0x5b8] sm:$0xff]
    %v3457 = vld [vmem:[#allocation6 + $0x5c0] sm:$0xff]
    %v3458 = vld [vmem:[#allocation6 + $0x5c8] sm:$0xff]
    %v3459 = vld [vmem:[#allocation6 + $0x5d0] sm:$0xff]
    %v3460 = vld [vmem:[#allocation6 + $0x5d8] sm:$0xff]
    %v3461 = vld [vmem:[#allocation6 + $0x5e0] sm:$0xff]
    %v3462 = vld [vmem:[#allocation6 + $0x5e8] sm:$0xff]
    %v3463 = vld [vmem:[#allocation6 + $0x5f0] sm:$0xff]
    %v3464 = vld [vmem:[#allocation6 + $0x5f8] sm:$0xff]
    %v3465 = vld [vmem:[#allocation6 + $0x600] sm:$0xff]
    %v3466 = vld [vmem:[#allocation6 + $0x608] sm:$0xff]
    %v3467 = vld [vmem:[#allocation6 + $0x610] sm:$0xff]
    %v3468 = vld [vmem:[#allocation6 + $0x618] sm:$0xff]
    %v3469 = vld [vmem:[#allocation6 + $0x620] sm:$0xff]
    %v3470 = vld [vmem:[#allocation6 + $0x628] sm:$0xff]
    %v3471 = vld [vmem:[#allocation6 + $0x630] sm:$0xff]
    %v3472 = vld [vmem:[#allocation6 + $0x638] sm:$0xff]
    %v3473 = vld [vmem:[#allocation6 + $0x640] sm:$0xff]
    %v3474 = vld [vmem:[#allocation6 + $0x648] sm:$0xff]
    %v3475 = vld [vmem:[#allocation6 + $0x650] sm:$0xff]
    %v3476 = vld [vmem:[#allocation6 + $0x658] sm:$0xff]
    %v3477 = vld [vmem:[#allocation6 + $0x660] sm:$0xff]
    %v3478 = vld [vmem:[#allocation6 + $0x668] sm:$0xff]
    %v3479 = vld [vmem:[#allocation6 + $0x670] sm:$0xff]
    %v3480 = vld [vmem:[#allocation6 + $0x678] sm:$0xff]
    %v3481 = vld [vmem:[#allocation6 + $0x680] sm:$0xff]
    %v3482 = vld [vmem:[#allocation6 + $0x688] sm:$0xff]
    %v3483 = vld [vmem:[#allocation6 + $0x690] sm:$0xff]
    %v3484 = vld [vmem:[#allocation6 + $0x698] sm:$0xff]
    %v3485 = vld [vmem:[#allocation6 + $0x6a0] sm:$0xff]
    %v3486 = vld [vmem:[#allocation6 + $0x6a8] sm:$0xff]
    %v3487 = vld [vmem:[#allocation6 + $0x6b0] sm:$0xff]
    %v3488 = vld [vmem:[#allocation6 + $0x6b8] sm:$0xff]
    %v3489 = vld [vmem:[#allocation6 + $0x6c0] sm:$0xff]
    %v3490 = vld [vmem:[#allocation6 + $0x6c8] sm:$0xff]
    %v3491 = vld [vmem:[#allocation6 + $0x6d0] sm:$0xff]
    %v3492 = vld [vmem:[#allocation6 + $0x6d8] sm:$0xff]
    %v3493 = vld [vmem:[#allocation6 + $0x6e0] sm:$0xff]
    %v3494 = vld [vmem:[#allocation6 + $0x6e8] sm:$0xff]
    %v3495 = vld [vmem:[#allocation6 + $0x6f0] sm:$0xff]
    %v3496 = vld [vmem:[#allocation6 + $0x6f8] sm:$0xff]
    %v3497 = vld [vmem:[%s8] sm:$0xf]
    %v3499 = vlaneseq
    %v3500 = vshrl.u32 %v3499, 7
    %v3501 = vsub.s32 0, %v3500
    %v3502 = vrot.slane %v3497, %v3501
    %v3503 = vlaneseq
    %v3504 = vshrl.u32 %v3503, 7
    %v3505 = vsub.s32 1, %v3504
    %v3506 = vrot.slane %v3497, %v3505
    %v3507 = vlaneseq
    %v3508 = vshrl.u32 %v3507, 7
    %v3509 = vsub.s32 2, %v3508
    %v3510 = vrot.slane %v3497, %v3509
    %v3511 = vlaneseq
    %v3512 = vshrl.u32 %v3511, 7
    %v3513 = vsub.s32 3, %v3512
    %v3514 = vrot.slane %v3497, %v3513
    %v3743 = vunpack.c.l.b16 %v3273
    %v3744 = vunpack.c.h.b16 %v3273
    %v3745 = vunpack.c.l.b16 %v3274
    %v3746 = vunpack.c.h.b16 %v3274
    %v3747 = vunpack.c.l.b16 %v3275
    %v3748 = vunpack.c.h.b16 %v3275
    %v3749 = vunpack.c.l.b16 %v3276
    %v3750 = vunpack.c.h.b16 %v3276
    %v3751 = vunpack.c.l.b16 %v3277
    %v3752 = vunpack.c.h.b16 %v3277
    %v3753 = vunpack.c.l.b16 %v3278
    %v3754 = vunpack.c.h.b16 %v3278
    %v3755 = vunpack.c.l.b16 %v3279
    %v3756 = vunpack.c.h.b16 %v3279
    %v3757 = vunpack.c.l.b16 %v3280
    %v3758 = vunpack.c.h.b16 %v3280
    %v3759 = vunpack.c.l.b16 %v3281
    %v3760 = vunpack.c.h.b16 %v3281
    %v3761 = vunpack.c.l.b16 %v3282
    %v3762 = vunpack.c.h.b16 %v3282
    %v3763 = vunpack.c.l.b16 %v3283
    %v3764 = vunpack.c.h.b16 %v3283
    %v3765 = vunpack.c.l.b16 %v3284
    %v3766 = vunpack.c.h.b16 %v3284
    %v3767 = vunpack.c.l.b16 %v3285
    %v3768 = vunpack.c.h.b16 %v3285
    %v3769 = vunpack.c.l.b16 %v3286
    %v3770 = vunpack.c.h.b16 %v3286
    %v3771 = vunpack.c.l.b16 %v3287
    %v3772 = vunpack.c.h.b16 %v3287
    %v3773 = vunpack.c.l.b16 %v3288
    %v3774 = vunpack.c.h.b16 %v3288
    %v3775 = vunpack.c.l.b16 %v3289
    %v3776 = vunpack.c.h.b16 %v3289
    %v3777 = vunpack.c.l.b16 %v3290
    %v3778 = vunpack.c.h.b16 %v3290
    %v3779 = vunpack.c.l.b16 %v3291
    %v3780 = vunpack.c.h.b16 %v3291
    %v3781 = vunpack.c.l.b16 %v3292
    %v3782 = vunpack.c.h.b16 %v3292
    %v3783 = vunpack.c.l.b16 %v3293
    %v3784 = vunpack.c.h.b16 %v3293
    %v3785 = vunpack.c.l.b16 %v3294
    %v3786 = vunpack.c.h.b16 %v3294
    %v3787 = vunpack.c.l.b16 %v3295
    %v3788 = vunpack.c.h.b16 %v3295
    %v3789 = vunpack.c.l.b16 %v3296
    %v3790 = vunpack.c.h.b16 %v3296
    %v3791 = vunpack.c.l.b16 %v3297
    %v3792 = vunpack.c.h.b16 %v3297
    %v3793 = vunpack.c.l.b16 %v3298
    %v3794 = vunpack.c.h.b16 %v3298
    %v3795 = vunpack.c.l.b16 %v3299
    %v3796 = vunpack.c.h.b16 %v3299
    %v3797 = vunpack.c.l.b16 %v3300
    %v3798 = vunpack.c.h.b16 %v3300
    %v3799 = vunpack.c.l.b16 %v3301
    %v3800 = vunpack.c.h.b16 %v3301
    %v3801 = vunpack.c.l.b16 %v3302
    %v3802 = vunpack.c.h.b16 %v3302
    %v3803 = vunpack.c.l.b16 %v3303
    %v3804 = vunpack.c.h.b16 %v3303
    %v3805 = vunpack.c.l.b16 %v3304
    %v3806 = vunpack.c.h.b16 %v3304
    %v3807 = vunpack.c.l.b16 %v3305
    %v3808 = vunpack.c.h.b16 %v3305
    %v3809 = vunpack.c.l.b16 %v3306
    %v3810 = vunpack.c.h.b16 %v3306
    %v3811 = vunpack.c.l.b16 %v3307
    %v3812 = vunpack.c.h.b16 %v3307
    %v3813 = vunpack.c.l.b16 %v3308
    %v3814 = vunpack.c.h.b16 %v3308
    %v3815 = vunpack.c.l.b16 %v3309
    %v3816 = vunpack.c.h.b16 %v3309
    %v3817 = vunpack.c.l.b16 %v3310
    %v3818 = vunpack.c.h.b16 %v3310
    %v3819 = vunpack.c.l.b16 %v3311
    %v3820 = vunpack.c.h.b16 %v3311
    %v3821 = vunpack.c.l.b16 %v3312
    %v3822 = vunpack.c.h.b16 %v3312
    %v3823 = vunpack.c.l.b16 %v3313
    %v3824 = vunpack.c.h.b16 %v3313
    %v3825 = vunpack.c.l.b16 %v3314
    %v3826 = vunpack.c.h.b16 %v3314
    %v3827 = vunpack.c.l.b16 %v3315
    %v3828 = vunpack.c.h.b16 %v3315
    %v3829 = vunpack.c.l.b16 %v3316
    %v3830 = vunpack.c.h.b16 %v3316
    %v3831 = vunpack.c.l.b16 %v3317
    %v3832 = vunpack.c.h.b16 %v3317
    %v3833 = vunpack.c.l.b16 %v3318
    %v3834 = vunpack.c.h.b16 %v3318
    %v3835 = vunpack.c.l.b16 %v3319
    %v3836 = vunpack.c.h.b16 %v3319
    %v3837 = vunpack.c.l.b16 %v3320
    %v3838 = vunpack.c.h.b16 %v3320
    %v3839 = vunpack.c.l.b16 %v3321
    %v3840 = vunpack.c.h.b16 %v3321
    %v3841 = vunpack.c.l.b16 %v3322
    %v3842 = vunpack.c.h.b16 %v3322
    %v3843 = vunpack.c.l.b16 %v3323
    %v3844 = vunpack.c.h.b16 %v3323
    %v3845 = vunpack.c.l.b16 %v3324
    %v3846 = vunpack.c.h.b16 %v3324
    %v3847 = vunpack.c.l.b16 %v3325
    %v3848 = vunpack.c.h.b16 %v3325
    %v3849 = vunpack.c.l.b16 %v3326
    %v3850 = vunpack.c.h.b16 %v3326
    %v3851 = vunpack.c.l.b16 %v3327
    %v3852 = vunpack.c.h.b16 %v3327
    %v3853 = vunpack.c.l.b16 %v3328
    %v3854 = vunpack.c.h.b16 %v3328
    %v3855 = vunpack.c.l.b16 %v3329
    %v3856 = vunpack.c.h.b16 %v3329
    %v3857 = vunpack.c.l.b16 %v3330
    %v3858 = vunpack.c.h.b16 %v3330
    %v3859 = vunpack.c.l.b16 %v3331
    %v3860 = vunpack.c.h.b16 %v3331
    %v3861 = vunpack.c.l.b16 %v3332
    %v3862 = vunpack.c.h.b16 %v3332
    %v3863 = vunpack.c.l.b16 %v3333
    %v3864 = vunpack.c.h.b16 %v3333
    %v3865 = vunpack.c.l.b16 %v3334
    %v3866 = vunpack.c.h.b16 %v3334
    %v3867 = vunpack.c.l.b16 %v3335
    %v3868 = vunpack.c.h.b16 %v3335
    %v3869 = vunpack.c.l.b16 %v3336
    %v3870 = vunpack.c.h.b16 %v3336
    %v3871 = vunpack.c.l.b16 %v3337
    %v3872 = vunpack.c.h.b16 %v3337
    %v3873 = vunpack.c.l.b16 %v3338
    %v3874 = vunpack.c.h.b16 %v3338
    %v3875 = vunpack.c.l.b16 %v3339
    %v3876 = vunpack.c.h.b16 %v3339
    %v3877 = vunpack.c.l.b16 %v3340
    %v3878 = vunpack.c.h.b16 %v3340
    %v3879 = vunpack.c.l.b16 %v3341
    %v3880 = vunpack.c.h.b16 %v3341
    %v3881 = vunpack.c.l.b16 %v3342
    %v3882 = vunpack.c.h.b16 %v3342
    %v3883 = vunpack.c.l.b16 %v3343
    %v3884 = vunpack.c.h.b16 %v3343
    %v3885 = vunpack.c.l.b16 %v3344
    %v3886 = vunpack.c.h.b16 %v3344
    %v3887 = vunpack.c.l.b16 %v3345
    %v3888 = vunpack.c.h.b16 %v3345
    %v3889 = vunpack.c.l.b16 %v3346
    %v3890 = vunpack.c.h.b16 %v3346
    %v3891 = vunpack.c.l.b16 %v3347
    %v3892 = vunpack.c.h.b16 %v3347
    %v3893 = vunpack.c.l.b16 %v3348
    %v3894 = vunpack.c.h.b16 %v3348
    %v3895 = vunpack.c.l.b16 %v3349
    %v3896 = vunpack.c.h.b16 %v3349
    %v3897 = vunpack.c.l.b16 %v3350
    %v3898 = vunpack.c.h.b16 %v3350
    %v3899 = vunpack.c.l.b16 %v3351
    %v3900 = vunpack.c.h.b16 %v3351
    %v3901 = vunpack.c.l.b16 %v3352
    %v3902 = vunpack.c.h.b16 %v3352
    %v3903 = vunpack.c.l.b16 %v3353
    %v3904 = vunpack.c.h.b16 %v3353
    %v3905 = vunpack.c.l.b16 %v3354
    %v3906 = vunpack.c.h.b16 %v3354
    %v3907 = vunpack.c.l.b16 %v3355
    %v3908 = vunpack.c.h.b16 %v3355
    %v3909 = vunpack.c.l.b16 %v3356
    %v3910 = vunpack.c.h.b16 %v3356
    %v3911 = vunpack.c.l.b16 %v3357
    %v3912 = vunpack.c.h.b16 %v3357
    %v3913 = vunpack.c.l.b16 %v3358
    %v3914 = vunpack.c.h.b16 %v3358
    %v3915 = vunpack.c.l.b16 %v3359
    %v3916 = vunpack.c.h.b16 %v3359
    %v3917 = vunpack.c.l.b16 %v3360
    %v3918 = vunpack.c.h.b16 %v3360
    %v3919 = vunpack.c.l.b16 %v3361
    %v3920 = vunpack.c.h.b16 %v3361
    %v3921 = vunpack.c.l.b16 %v3362
    %v3922 = vunpack.c.h.b16 %v3362
    %v3923 = vunpack.c.l.b16 %v3363
    %v3924 = vunpack.c.h.b16 %v3363
    %v3925 = vunpack.c.l.b16 %v3364
    %v3926 = vunpack.c.h.b16 %v3364
    %v3927 = vunpack.c.l.b16 %v3365
    %v3928 = vunpack.c.h.b16 %v3365
    %v3929 = vunpack.c.l.b16 %v3366
    %v3930 = vunpack.c.h.b16 %v3366
    %v3931 = vunpack.c.l.b16 %v3367
    %v3932 = vunpack.c.h.b16 %v3367
    %v3933 = vunpack.c.l.b16 %v3368
    %v3934 = vunpack.c.h.b16 %v3368
    %v3935 = vunpack.c.l.b16 %v3369
    %v3936 = vunpack.c.h.b16 %v3369
    %v3937 = vunpack.c.l.b16 %v3370
    %v3938 = vunpack.c.h.b16 %v3370
    %v3939 = vunpack.c.l.b16 %v3371
    %v3940 = vunpack.c.h.b16 %v3371
    %v3941 = vunpack.c.l.b16 %v3372
    %v3942 = vunpack.c.h.b16 %v3372
    %v3943 = vunpack.c.l.b16 %v3373
    %v3944 = vunpack.c.h.b16 %v3373
    %v3945 = vunpack.c.l.b16 %v3374
    %v3946 = vunpack.c.h.b16 %v3374
    %v3947 = vunpack.c.l.b16 %v3375
    %v3948 = vunpack.c.h.b16 %v3375
    %v3949 = vunpack.c.l.b16 %v3376
    %v3950 = vunpack.c.h.b16 %v3376
    %v3951 = vunpack.c.l.b16 %v3377
    %v3952 = vunpack.c.h.b16 %v3377
    %v3953 = vunpack.c.l.b16 %v3378
    %v3954 = vunpack.c.h.b16 %v3378
    %v3955 = vunpack.c.l.b16 %v3379
    %v3956 = vunpack.c.h.b16 %v3379
    %v3957 = vunpack.c.l.b16 %v3380
    %v3958 = vunpack.c.h.b16 %v3380
    %v3959 = vunpack.c.l.b16 %v3381
    %v3960 = vunpack.c.h.b16 %v3381
    %v3961 = vunpack.c.l.b16 %v3382
    %v3962 = vunpack.c.h.b16 %v3382
    %v3963 = vunpack.c.l.b16 %v3383
    %v3964 = vunpack.c.h.b16 %v3383
    %v3965 = vunpack.c.l.b16 %v3384
    %v3966 = vunpack.c.h.b16 %v3384
    %v3967 = vunpack.c.l.b16 %v3385
    %v3968 = vunpack.c.h.b16 %v3385
    %v3969 = vunpack.c.l.b16 %v3386
    %v3970 = vunpack.c.h.b16 %v3386
    %v3971 = vunpack.c.l.b16 %v3387
    %v3972 = vunpack.c.h.b16 %v3387
    %v3973 = vunpack.c.l.b16 %v3388
    %v3974 = vunpack.c.h.b16 %v3388
    %v3975 = vunpack.c.l.b16 %v3389
    %v3976 = vunpack.c.h.b16 %v3389
    %v3977 = vunpack.c.l.b16 %v3390
    %v3978 = vunpack.c.h.b16 %v3390
    %v3979 = vunpack.c.l.b16 %v3391
    %v3980 = vunpack.c.h.b16 %v3391
    %v3981 = vunpack.c.l.b16 %v3392
    %v3982 = vunpack.c.h.b16 %v3392
    %v3983 = vunpack.c.l.b16 %v3393
    %v3984 = vunpack.c.h.b16 %v3393
    %v3985 = vunpack.c.l.b16 %v3394
    %v3986 = vunpack.c.h.b16 %v3394
    %v3987 = vunpack.c.l.b16 %v3395
    %v3988 = vunpack.c.h.b16 %v3395
    %v3989 = vunpack.c.l.b16 %v3396
    %v3990 = vunpack.c.h.b16 %v3396
    %v3991 = vunpack.c.l.b16 %v3397
    %v3992 = vunpack.c.h.b16 %v3397
    %v3993 = vunpack.c.l.b16 %v3398
    %v3994 = vunpack.c.h.b16 %v3398
    %v3995 = vunpack.c.l.b16 %v3399
    %v3996 = vunpack.c.h.b16 %v3399
    %v3997 = vunpack.c.l.b16 %v3400
    %v3998 = vunpack.c.h.b16 %v3400
    %v3999 = vunpack.c.l.b16 %v3401
    %v4000 = vunpack.c.h.b16 %v3401
    %v4001 = vunpack.c.l.b16 %v3402
    %v4002 = vunpack.c.h.b16 %v3402
    %v4003 = vunpack.c.l.b16 %v3403
    %v4004 = vunpack.c.h.b16 %v3403
    %v4005 = vunpack.c.l.b16 %v3404
    %v4006 = vunpack.c.h.b16 %v3404
    %v4007 = vunpack.c.l.b16 %v3405
    %v4008 = vunpack.c.h.b16 %v3405
    %v4009 = vunpack.c.l.b16 %v3406
    %v4010 = vunpack.c.h.b16 %v3406
    %v4011 = vunpack.c.l.b16 %v3407
    %v4012 = vunpack.c.h.b16 %v3407
    %v4013 = vunpack.c.l.b16 %v3408
    %v4014 = vunpack.c.h.b16 %v3408
    %v4015 = vunpack.c.l.b16 %v3409
    %v4016 = vunpack.c.h.b16 %v3409
    %v4017 = vunpack.c.l.b16 %v3410
    %v4018 = vunpack.c.h.b16 %v3410
    %v4019 = vunpack.c.l.b16 %v3411
    %v4020 = vunpack.c.h.b16 %v3411
    %v4021 = vunpack.c.l.b16 %v3412
    %v4022 = vunpack.c.h.b16 %v3412
    %v4023 = vunpack.c.l.b16 %v3413
    %v4024 = vunpack.c.h.b16 %v3413
    %v4025 = vunpack.c.l.b16 %v3414
    %v4026 = vunpack.c.h.b16 %v3414
    %v4027 = vunpack.c.l.b16 %v3415
    %v4028 = vunpack.c.h.b16 %v3415
    %v4029 = vunpack.c.l.b16 %v3416
    %v4030 = vunpack.c.h.b16 %v3416
    %v4031 = vunpack.c.l.b16 %v3417
    %v4032 = vunpack.c.h.b16 %v3417
    %v4033 = vunpack.c.l.b16 %v3418
    %v4034 = vunpack.c.h.b16 %v3418
    %v4035 = vunpack.c.l.b16 %v3419
    %v4036 = vunpack.c.h.b16 %v3419
    %v4037 = vunpack.c.l.b16 %v3420
    %v4038 = vunpack.c.h.b16 %v3420
    %v4039 = vunpack.c.l.b16 %v3421
    %v4040 = vunpack.c.h.b16 %v3421
    %v4041 = vunpack.c.l.b16 %v3422
    %v4042 = vunpack.c.h.b16 %v3422
    %v4043 = vunpack.c.l.b16 %v3423
    %v4044 = vunpack.c.h.b16 %v3423
    %v4045 = vunpack.c.l.b16 %v3424
    %v4046 = vunpack.c.h.b16 %v3424
    %v4047 = vunpack.c.l.b16 %v3425
    %v4048 = vunpack.c.h.b16 %v3425
    %v4049 = vunpack.c.l.b16 %v3426
    %v4050 = vunpack.c.h.b16 %v3426
    %v4051 = vunpack.c.l.b16 %v3427
    %v4052 = vunpack.c.h.b16 %v3427
    %v4053 = vunpack.c.l.b16 %v3428
    %v4054 = vunpack.c.h.b16 %v3428
    %v4055 = vunpack.c.l.b16 %v3429
    %v4056 = vunpack.c.h.b16 %v3429
    %v4057 = vunpack.c.l.b16 %v3430
    %v4058 = vunpack.c.h.b16 %v3430
    %v4059 = vunpack.c.l.b16 %v3431
    %v4060 = vunpack.c.h.b16 %v3431
    %v4061 = vunpack.c.l.b16 %v3432
    %v4062 = vunpack.c.h.b16 %v3432
    %v4063 = vunpack.c.l.b16 %v3433
    %v4064 = vunpack.c.h.b16 %v3433
    %v4065 = vunpack.c.l.b16 %v3434
    %v4066 = vunpack.c.h.b16 %v3434
    %v4067 = vunpack.c.l.b16 %v3435
    %v4068 = vunpack.c.h.b16 %v3435
    %v4069 = vunpack.c.l.b16 %v3436
    %v4070 = vunpack.c.h.b16 %v3436
    %v4071 = vunpack.c.l.b16 %v3437
    %v4072 = vunpack.c.h.b16 %v3437
    %v4073 = vunpack.c.l.b16 %v3438
    %v4074 = vunpack.c.h.b16 %v3438
    %v4075 = vunpack.c.l.b16 %v3439
    %v4076 = vunpack.c.h.b16 %v3439
    %v4077 = vunpack.c.l.b16 %v3440
    %v4078 = vunpack.c.h.b16 %v3440
    %v4079 = vunpack.c.l.b16 %v3441
    %v4080 = vunpack.c.h.b16 %v3441
    %v4081 = vunpack.c.l.b16 %v3442
    %v4082 = vunpack.c.h.b16 %v3442
    %v4083 = vunpack.c.l.b16 %v3443
    %v4084 = vunpack.c.h.b16 %v3443
    %v4085 = vunpack.c.l.b16 %v3444
    %v4086 = vunpack.c.h.b16 %v3444
    %v4087 = vunpack.c.l.b16 %v3445
    %v4088 = vunpack.c.h.b16 %v3445
    %v4089 = vunpack.c.l.b16 %v3446
    %v4090 = vunpack.c.h.b16 %v3446
    %v4091 = vunpack.c.l.b16 %v3447
    %v4092 = vunpack.c.h.b16 %v3447
    %v4093 = vunpack.c.l.b16 %v3448
    %v4094 = vunpack.c.h.b16 %v3448
    %v4095 = vunpack.c.l.b16 %v3449
    %v4096 = vunpack.c.h.b16 %v3449
    %v4097 = vunpack.c.l.b16 %v3450
    %v4098 = vunpack.c.h.b16 %v3450
    %v4099 = vunpack.c.l.b16 %v3451
    %v4100 = vunpack.c.h.b16 %v3451
    %v4101 = vunpack.c.l.b16 %v3452
    %v4102 = vunpack.c.h.b16 %v3452
    %v4103 = vunpack.c.l.b16 %v3453
    %v4104 = vunpack.c.h.b16 %v3453
    %v4105 = vunpack.c.l.b16 %v3454
    %v4106 = vunpack.c.h.b16 %v3454
    %v4107 = vunpack.c.l.b16 %v3455
    %v4108 = vunpack.c.h.b16 %v3455
    %v4109 = vunpack.c.l.b16 %v3456
    %v4110 = vunpack.c.h.b16 %v3456
    %v4111 = vunpack.c.l.b16 %v3457
    %v4112 = vunpack.c.h.b16 %v3457
    %v4113 = vunpack.c.l.b16 %v3458
    %v4114 = vunpack.c.h.b16 %v3458
    %v4115 = vunpack.c.l.b16 %v3459
    %v4116 = vunpack.c.h.b16 %v3459
    %v4117 = vunpack.c.l.b16 %v3460
    %v4118 = vunpack.c.h.b16 %v3460
    %v4119 = vunpack.c.l.b16 %v3461
    %v4120 = vunpack.c.h.b16 %v3461
    %v4121 = vunpack.c.l.b16 %v3462
    %v4122 = vunpack.c.h.b16 %v3462
    %v4123 = vunpack.c.l.b16 %v3463
    %v4124 = vunpack.c.h.b16 %v3463
    %v4125 = vunpack.c.l.b16 %v3464
    %v4126 = vunpack.c.h.b16 %v3464
    %v4127 = vunpack.c.l.b16 %v3465
    %v4128 = vunpack.c.h.b16 %v3465
    %v4129 = vunpack.c.l.b16 %v3466
    %v4130 = vunpack.c.h.b16 %v3466
    %v4131 = vunpack.c.l.b16 %v3467
    %v4132 = vunpack.c.h.b16 %v3467
    %v4133 = vunpack.c.l.b16 %v3468
    %v4134 = vunpack.c.h.b16 %v3468
    %v4135 = vunpack.c.l.b16 %v3469
    %v4136 = vunpack.c.h.b16 %v3469
    %v4137 = vunpack.c.l.b16 %v3470
    %v4138 = vunpack.c.h.b16 %v3470
    %v4139 = vunpack.c.l.b16 %v3471
    %v4140 = vunpack.c.h.b16 %v3471
    %v4141 = vunpack.c.l.b16 %v3472
    %v4142 = vunpack.c.h.b16 %v3472
    %v4143 = vunpack.c.l.b16 %v3473
    %v4144 = vunpack.c.h.b16 %v3473
    %v4145 = vunpack.c.l.b16 %v3474
    %v4146 = vunpack.c.h.b16 %v3474
    %v4147 = vunpack.c.l.b16 %v3475
    %v4148 = vunpack.c.h.b16 %v3475
    %v4149 = vunpack.c.l.b16 %v3476
    %v4150 = vunpack.c.h.b16 %v3476
    %v4151 = vunpack.c.l.b16 %v3477
    %v4152 = vunpack.c.h.b16 %v3477
    %v4153 = vunpack.c.l.b16 %v3478
    %v4154 = vunpack.c.h.b16 %v3478
    %v4155 = vunpack.c.l.b16 %v3479
    %v4156 = vunpack.c.h.b16 %v3479
    %v4157 = vunpack.c.l.b16 %v3480
    %v4158 = vunpack.c.h.b16 %v3480
    %v4159 = vunpack.c.l.b16 %v3481
    %v4160 = vunpack.c.h.b16 %v3481
    %v4161 = vunpack.c.l.b16 %v3482
    %v4162 = vunpack.c.h.b16 %v3482
    %v4163 = vunpack.c.l.b16 %v3483
    %v4164 = vunpack.c.h.b16 %v3483
    %v4165 = vunpack.c.l.b16 %v3484
    %v4166 = vunpack.c.h.b16 %v3484
    %v4167 = vunpack.c.l.b16 %v3485
    %v4168 = vunpack.c.h.b16 %v3485
    %v4169 = vunpack.c.l.b16 %v3486
    %v4170 = vunpack.c.h.b16 %v3486
    %v4171 = vunpack.c.l.b16 %v3487
    %v4172 = vunpack.c.h.b16 %v3487
    %v4173 = vunpack.c.l.b16 %v3488
    %v4174 = vunpack.c.h.b16 %v3488
    %v4175 = vunpack.c.l.b16 %v3489
    %v4176 = vunpack.c.h.b16 %v3489
    %v4177 = vunpack.c.l.b16 %v3490
    %v4178 = vunpack.c.h.b16 %v3490
    %v4179 = vunpack.c.l.b16 %v3491
    %v4180 = vunpack.c.h.b16 %v3491
    %v4181 = vunpack.c.l.b16 %v3492
    %v4182 = vunpack.c.h.b16 %v3492
    %v4183 = vunpack.c.l.b16 %v3493
    %v4184 = vunpack.c.h.b16 %v3493
    %v4185 = vunpack.c.l.b16 %v3494
    %v4186 = vunpack.c.h.b16 %v3494
    %v4187 = vunpack.c.l.b16 %v3495
    %v4188 = vunpack.c.h.b16 %v3495
    %v4189 = vunpack.c.l.b16 %v3496
    %v4190 = vunpack.c.h.b16 %v3496
    %v4191 = vpack.c.b16 %v3747, %v3743
    %v4192 = vpack.c.b16 %v3748, %v3744
    %v4193 = vpack.c.b16 %v3749, %v3745
    %v4194 = vpack.c.b16 %v3750, %v3746
    %v4195 = vpack.c.b16 %v3755, %v3751
    %v4196 = vpack.c.b16 %v3756, %v3752
    %v4197 = vpack.c.b16 %v3757, %v3753
    %v4198 = vpack.c.b16 %v3758, %v3754
    %v4199 = vpack.c.b16 %v3763, %v3759
    %v4200 = vpack.c.b16 %v3764, %v3760
    %v4201 = vpack.c.b16 %v3765, %v3761
    %v4202 = vpack.c.b16 %v3766, %v3762
    %v4203 = vpack.c.b16 %v3771, %v3767
    %v4204 = vpack.c.b16 %v3772, %v3768
    %v4205 = vpack.c.b16 %v3773, %v3769
    %v4206 = vpack.c.b16 %v3774, %v3770
    %v4207 = vpack.c.b16 %v3779, %v3775
    %v4208 = vpack.c.b16 %v3780, %v3776
    %v4209 = vpack.c.b16 %v3781, %v3777
    %v4210 = vpack.c.b16 %v3782, %v3778
    %v4211 = vpack.c.b16 %v3787, %v3783
    %v4212 = vpack.c.b16 %v3788, %v3784
    %v4213 = vpack.c.b16 %v3789, %v3785
    %v4214 = vpack.c.b16 %v3790, %v3786
    %v4215 = vpack.c.b16 %v3795, %v3791
    %v4216 = vpack.c.b16 %v3796, %v3792
    %v4217 = vpack.c.b16 %v3797, %v3793
    %v4218 = vpack.c.b16 %v3798, %v3794
    %v4219 = vpack.c.b16 %v3803, %v3799
    %v4220 = vpack.c.b16 %v3804, %v3800
    %v4221 = vpack.c.b16 %v3805, %v3801
    %v4222 = vpack.c.b16 %v3806, %v3802
    %v4223 = vpack.c.b16 %v3811, %v3807
    %v4224 = vpack.c.b16 %v3812, %v3808
    %v4225 = vpack.c.b16 %v3813, %v3809
    %v4226 = vpack.c.b16 %v3814, %v3810
    %v4227 = vpack.c.b16 %v3819, %v3815
    %v4228 = vpack.c.b16 %v3820, %v3816
    %v4229 = vpack.c.b16 %v3821, %v3817
    %v4230 = vpack.c.b16 %v3822, %v3818
    %v4231 = vpack.c.b16 %v3827, %v3823
    %v4232 = vpack.c.b16 %v3828, %v3824
    %v4233 = vpack.c.b16 %v3829, %v3825
    %v4234 = vpack.c.b16 %v3830, %v3826
    %v4235 = vpack.c.b16 %v3835, %v3831
    %v4236 = vpack.c.b16 %v3836, %v3832
    %v4237 = vpack.c.b16 %v3837, %v3833
    %v4238 = vpack.c.b16 %v3838, %v3834
    %v4239 = vpack.c.b16 %v3843, %v3839
    %v4240 = vpack.c.b16 %v3844, %v3840
    %v4241 = vpack.c.b16 %v3845, %v3841
    %v4242 = vpack.c.b16 %v3846, %v3842
    %v4243 = vpack.c.b16 %v3851, %v3847
    %v4244 = vpack.c.b16 %v3852, %v3848
    %v4245 = vpack.c.b16 %v3853, %v3849
    %v4246 = vpack.c.b16 %v3854, %v3850
    %v4247 = vpack.c.b16 %v3859, %v3855
    %v4248 = vpack.c.b16 %v3860, %v3856
    %v4249 = vpack.c.b16 %v3861, %v3857
    %v4250 = vpack.c.b16 %v3862, %v3858
    %v4251 = vpack.c.b16 %v3867, %v3863
    %v4252 = vpack.c.b16 %v3868, %v3864
    %v4253 = vpack.c.b16 %v3869, %v3865
    %v4254 = vpack.c.b16 %v3870, %v3866
    %v4255 = vpack.c.b16 %v3875, %v3871
    %v4256 = vpack.c.b16 %v3876, %v3872
    %v4257 = vpack.c.b16 %v3877, %v3873
    %v4258 = vpack.c.b16 %v3878, %v3874
    %v4259 = vpack.c.b16 %v3883, %v3879
    %v4260 = vpack.c.b16 %v3884, %v3880
    %v4261 = vpack.c.b16 %v3885, %v3881
    %v4262 = vpack.c.b16 %v3886, %v3882
    %v4263 = vpack.c.b16 %v3891, %v3887
    %v4264 = vpack.c.b16 %v3892, %v3888
    %v4265 = vpack.c.b16 %v3893, %v3889
    %v4266 = vpack.c.b16 %v3894, %v3890
    %v4267 = vpack.c.b16 %v3899, %v3895
    %v4268 = vpack.c.b16 %v3900, %v3896
    %v4269 = vpack.c.b16 %v3901, %v3897
    %v4270 = vpack.c.b16 %v3902, %v3898
    %v4271 = vpack.c.b16 %v3907, %v3903
    %v4272 = vpack.c.b16 %v3908, %v3904
    %v4273 = vpack.c.b16 %v3909, %v3905
    %v4274 = vpack.c.b16 %v3910, %v3906
    %v4275 = vpack.c.b16 %v3915, %v3911
    %v4276 = vpack.c.b16 %v3916, %v3912
    %v4277 = vpack.c.b16 %v3917, %v3913
    %v4278 = vpack.c.b16 %v3918, %v3914
    %v4279 = vpack.c.b16 %v3923, %v3919
    %v4280 = vpack.c.b16 %v3924, %v3920
    %v4281 = vpack.c.b16 %v3925, %v3921
    %v4282 = vpack.c.b16 %v3926, %v3922
    %v4283 = vpack.c.b16 %v3931, %v3927
    %v4284 = vpack.c.b16 %v3932, %v3928
    %v4285 = vpack.c.b16 %v3933, %v3929
    %v4286 = vpack.c.b16 %v3934, %v3930
    %v4287 = vpack.c.b16 %v3939, %v3935
    %v4288 = vpack.c.b16 %v3940, %v3936
    %v4289 = vpack.c.b16 %v3941, %v3937
    %v4290 = vpack.c.b16 %v3942, %v3938
    %v4291 = vpack.c.b16 %v3947, %v3943
    %v4292 = vpack.c.b16 %v3948, %v3944
    %v4293 = vpack.c.b16 %v3949, %v3945
    %v4294 = vpack.c.b16 %v3950, %v3946
    %v4295 = vpack.c.b16 %v3955, %v3951
    %v4296 = vpack.c.b16 %v3956, %v3952
    %v4297 = vpack.c.b16 %v3957, %v3953
    %v4298 = vpack.c.b16 %v3958, %v3954
    %v4299 = vpack.c.b16 %v3963, %v3959
    %v4300 = vpack.c.b16 %v3964, %v3960
    %v4301 = vpack.c.b16 %v3965, %v3961
    %v4302 = vpack.c.b16 %v3966, %v3962
    %v4303 = vpack.c.b16 %v3971, %v3967
    %v4304 = vpack.c.b16 %v3972, %v3968
    %v4305 = vpack.c.b16 %v3973, %v3969
    %v4306 = vpack.c.b16 %v3974, %v3970
    %v4307 = vpack.c.b16 %v3979, %v3975
    %v4308 = vpack.c.b16 %v3980, %v3976
    %v4309 = vpack.c.b16 %v3981, %v3977
    %v4310 = vpack.c.b16 %v3982, %v3978
    %v4311 = vpack.c.b16 %v3987, %v3983
    %v4312 = vpack.c.b16 %v3988, %v3984
    %v4313 = vpack.c.b16 %v3989, %v3985
    %v4314 = vpack.c.b16 %v3990, %v3986
    %v4315 = vpack.c.b16 %v3995, %v3991
    %v4316 = vpack.c.b16 %v3996, %v3992
    %v4317 = vpack.c.b16 %v3997, %v3993
    %v4318 = vpack.c.b16 %v3998, %v3994
    %v4319 = vpack.c.b16 %v4003, %v3999
    %v4320 = vpack.c.b16 %v4004, %v4000
    %v4321 = vpack.c.b16 %v4005, %v4001
    %v4322 = vpack.c.b16 %v4006, %v4002
    %v4323 = vpack.c.b16 %v4011, %v4007
    %v4324 = vpack.c.b16 %v4012, %v4008
    %v4325 = vpack.c.b16 %v4013, %v4009
    %v4326 = vpack.c.b16 %v4014, %v4010
    %v4327 = vpack.c.b16 %v4019, %v4015
    %v4328 = vpack.c.b16 %v4020, %v4016
    %v4329 = vpack.c.b16 %v4021, %v4017
    %v4330 = vpack.c.b16 %v4022, %v4018
    %v4331 = vpack.c.b16 %v4027, %v4023
    %v4332 = vpack.c.b16 %v4028, %v4024
    %v4333 = vpack.c.b16 %v4029, %v4025
    %v4334 = vpack.c.b16 %v4030, %v4026
    %v4335 = vpack.c.b16 %v4035, %v4031
    %v4336 = vpack.c.b16 %v4036, %v4032
    %v4337 = vpack.c.b16 %v4037, %v4033
    %v4338 = vpack.c.b16 %v4038, %v4034
    %v4339 = vpack.c.b16 %v4043, %v4039
    %v4340 = vpack.c.b16 %v4044, %v4040
    %v4341 = vpack.c.b16 %v4045, %v4041
    %v4342 = vpack.c.b16 %v4046, %v4042
    %v4343 = vpack.c.b16 %v4051, %v4047
    %v4344 = vpack.c.b16 %v4052, %v4048
    %v4345 = vpack.c.b16 %v4053, %v4049
    %v4346 = vpack.c.b16 %v4054, %v4050
    %v4347 = vpack.c.b16 %v4059, %v4055
    %v4348 = vpack.c.b16 %v4060, %v4056
    %v4349 = vpack.c.b16 %v4061, %v4057
    %v4350 = vpack.c.b16 %v4062, %v4058
    %v4351 = vpack.c.b16 %v4067, %v4063
    %v4352 = vpack.c.b16 %v4068, %v4064
    %v4353 = vpack.c.b16 %v4069, %v4065
    %v4354 = vpack.c.b16 %v4070, %v4066
    %v4355 = vpack.c.b16 %v4075, %v4071
    %v4356 = vpack.c.b16 %v4076, %v4072
    %v4357 = vpack.c.b16 %v4077, %v4073
    %v4358 = vpack.c.b16 %v4078, %v4074
    %v4359 = vpack.c.b16 %v4083, %v4079
    %v4360 = vpack.c.b16 %v4084, %v4080
    %v4361 = vpack.c.b16 %v4085, %v4081
    %v4362 = vpack.c.b16 %v4086, %v4082
    %v4363 = vpack.c.b16 %v4091, %v4087
    %v4364 = vpack.c.b16 %v4092, %v4088
    %v4365 = vpack.c.b16 %v4093, %v4089
    %v4366 = vpack.c.b16 %v4094, %v4090
    %v4367 = vpack.c.b16 %v4099, %v4095
    %v4368 = vpack.c.b16 %v4100, %v4096
    %v4369 = vpack.c.b16 %v4101, %v4097
    %v4370 = vpack.c.b16 %v4102, %v4098
    %v4371 = vpack.c.b16 %v4107, %v4103
    %v4372 = vpack.c.b16 %v4108, %v4104
    %v4373 = vpack.c.b16 %v4109, %v4105
    %v4374 = vpack.c.b16 %v4110, %v4106
    %v4375 = vpack.c.b16 %v4115, %v4111
    %v4376 = vpack.c.b16 %v4116, %v4112
    %v4377 = vpack.c.b16 %v4117, %v4113
    %v4378 = vpack.c.b16 %v4118, %v4114
    %v4379 = vpack.c.b16 %v4123, %v4119
    %v4380 = vpack.c.b16 %v4124, %v4120
    %v4381 = vpack.c.b16 %v4125, %v4121
    %v4382 = vpack.c.b16 %v4126, %v4122
    %v4383 = vpack.c.b16 %v4131, %v4127
    %v4384 = vpack.c.b16 %v4132, %v4128
    %v4385 = vpack.c.b16 %v4133, %v4129
    %v4386 = vpack.c.b16 %v4134, %v4130
    %v4387 = vpack.c.b16 %v4139, %v4135
    %v4388 = vpack.c.b16 %v4140, %v4136
    %v4389 = vpack.c.b16 %v4141, %v4137
    %v4390 = vpack.c.b16 %v4142, %v4138
    %v4391 = vpack.c.b16 %v4147, %v4143
    %v4392 = vpack.c.b16 %v4148, %v4144
    %v4393 = vpack.c.b16 %v4149, %v4145
    %v4394 = vpack.c.b16 %v4150, %v4146
    %v4395 = vpack.c.b16 %v4155, %v4151
    %v4396 = vpack.c.b16 %v4156, %v4152
    %v4397 = vpack.c.b16 %v4157, %v4153
    %v4398 = vpack.c.b16 %v4158, %v4154
    %v4399 = vpack.c.b16 %v4163, %v4159
    %v4400 = vpack.c.b16 %v4164, %v4160
    %v4401 = vpack.c.b16 %v4165, %v4161
    %v4402 = vpack.c.b16 %v4166, %v4162
    %v4403 = vpack.c.b16 %v4171, %v4167
    %v4404 = vpack.c.b16 %v4172, %v4168
    %v4405 = vpack.c.b16 %v4173, %v4169
    %v4406 = vpack.c.b16 %v4174, %v4170
    %v4407 = vpack.c.b16 %v4179, %v4175
    %v4408 = vpack.c.b16 %v4180, %v4176
    %v4409 = vpack.c.b16 %v4181, %v4177
    %v4410 = vpack.c.b16 %v4182, %v4178
    %v4411 = vpack.c.b16 %v4187, %v4183
    %v4412 = vpack.c.b16 %v4188, %v4184
    %v4413 = vpack.c.b16 %v4189, %v4185
    %v4414 = vpack.c.b16 %v4190, %v4186
    %4639 = vmatprep.subr.bf16.mxu0 %v4192
    %4640 = vmatpush1.bf16.msra.mxu0 %v4191
    %4641 = vmatprep.subr.bf16.mxu0 %v4196
    %4642 = vmatpush1.bf16.msra.mxu0 %v4195
    %4643 = vmatprep.subr.bf16.mxu0 %v4200
    %4644 = vmatpush1.bf16.msra.mxu0 %v4199
    %4645 = vmatprep.subr.bf16.mxu0 %v4204
    %4646 = vmatpush1.bf16.msra.mxu0 %v4203
    %4647 = vmatprep.subr.bf16.mxu0 %v4208
    %4648 = vmatpush1.bf16.msra.mxu0 %v4207
    %4649 = vmatprep.subr.bf16.mxu0 %v4212
    %4650 = vmatpush1.bf16.msra.mxu0 %v4211
    %4651 = vmatprep.subr.bf16.mxu0 %v4216
    %4652 = vmatpush1.bf16.msra.mxu0 %v4215
    %4653 = vmatprep.subr.bf16.mxu0 %v4220
    %4654 = vmatpush1.bf16.msra.mxu0 %v4219
    %4655 = vmatprep.subr.bf16.mxu0 %v4224
    %4656 = vmatpush1.bf16.msra.mxu0 %v4223
    %4657 = vmatprep.subr.bf16.mxu0 %v4228
    %4658 = vmatpush1.bf16.msra.mxu0 %v4227
    %4659 = vmatprep.subr.bf16.mxu0 %v4232
    %4660 = vmatpush1.bf16.msra.mxu0 %v4231
    %4661 = vmatprep.subr.bf16.mxu0 %v4236
    %4662 = vmatpush1.bf16.msra.mxu0 %v4235
    %4663 = vmatprep.subr.bf16.mxu0 %v4240
    %4664 = vmatpush1.bf16.msra.mxu0 %v4239
    %4665 = vmatprep.subr.bf16.mxu0 %v4244
    %4666 = vmatpush1.bf16.msra.mxu0 %v4243
    %4667 = vmatprep.subr.bf16.mxu0 %v4248
    %4668 = vmatpush1.bf16.msra.mxu0 %v4247
    %4669 = vmatprep.subr.bf16.mxu0 %v4252
    %4670 = vmatpush1.bf16.msra.mxu0 %v4251
    %4671 = vmatprep.mubr.bf16.mxu0 %v740
    %4672 = vmatmul.mubr.bf16.gmra.mrb[0].mxu0 %v739
    %v4673 = vpop.f32.mrb[0].mxu0
    %v4674 = vadd.f32 %v3502, %v4673
    %v4675 = vpop.f32.mrb[0].mxu0
    %v4676 = vadd.f32 %v3506, %v4675
    %v4677 = vpop.f32.mrb[0].mxu0
    %v4678 = vpop.f32.mrb[0].mxu0
    %4679 = vdwg.mxu0
    %4680 = vmatprep.subr.bf16.mxu0 %v4256
    %4681 = vmatpush1.bf16.msra.mxu0 %v4255
    %4682 = vmatprep.subr.bf16.mxu0 %v4260
    %4683 = vmatpush1.bf16.msra.mxu0 %v4259
    %4684 = vmatprep.subr.bf16.mxu0 %v4264
    %4685 = vmatpush1.bf16.msra.mxu0 %v4263
    %4686 = vmatprep.subr.bf16.mxu0 %v4268
    %4687 = vmatpush1.bf16.msra.mxu0 %v4267
    %4688 = vmatprep.subr.bf16.mxu0 %v4272
    %4689 = vmatpush1.bf16.msra.mxu0 %v4271
    %4690 = vmatprep.subr.bf16.mxu0 %v4276
    %4691 = vmatpush1.bf16.msra.mxu0 %v4275
    %4692 = vmatprep.subr.bf16.mxu0 %v4280
    %4693 = vmatpush1.bf16.msra.mxu0 %v4279
    %4694 = vmatprep.subr.bf16.mxu0 %v4284
    %4695 = vmatpush1.bf16.msra.mxu0 %v4283
    %4696 = vmatprep.subr.bf16.mxu0 %v4288
    %4697 = vmatpush1.bf16.msra.mxu0 %v4287
    %4698 = vmatprep.subr.bf16.mxu0 %v4292
    %4699 = vmatpush1.bf16.msra.mxu0 %v4291
    %4700 = vmatprep.subr.bf16.mxu0 %v4296
    %4701 = vmatpush1.bf16.msra.mxu0 %v4295
    %4702 = vmatprep.subr.bf16.mxu0 %v4300
    %4703 = vmatpush1.bf16.msra.mxu0 %v4299
    %4704 = vmatprep.subr.bf16.mxu0 %v4304
    %4705 = vmatpush1.bf16.msra.mxu0 %v4303
    %4706 = vmatprep.subr.bf16.mxu0 %v4308
    %4707 = vmatpush1.bf16.msra.mxu0 %v4307
    %4708 = vmatprep.subr.bf16.mxu0 %v4312
    %4709 = vmatpush1.bf16.msra.mxu0 %v4311
    %4710 = vmatprep.subr.bf16.mxu0 %v4316
    %4711 = vmatpush1.bf16.msra.mxu0 %v4315
    %4712 = vmatprep.mubr.bf16.mxu0 %v742
    %4713 = vmatmul.mubr.bf16.gmra.mrb[0].mxu0 %v741
    %v4714 = vpop.f32.mrb[0].mxu0
    %v4715 = vadd.f32 %v4674, %v4714
    %v4716 = vpop.f32.mrb[0].mxu0
    %v4717 = vadd.f32 %v4676, %v4716
    %v4718 = vpop.f32.mrb[0].mxu0
    %v4719 = vpop.f32.mrb[0].mxu0
    %4720 = vdwg.mxu0
    %4721 = vmatprep.subr.bf16.mxu0 %v4320
    %4722 = vmatpush1.bf16.msra.mxu0 %v4319
    %4723 = vmatprep.subr.bf16.mxu0 %v4324
    %4724 = vmatpush1.bf16.msra.mxu0 %v4323
    %4725 = vmatprep.subr.bf16.mxu0 %v4328
    %4726 = vmatpush1.bf16.msra.mxu0 %v4327
    %4727 = vmatprep.subr.bf16.mxu0 %v4332
    %4728 = vmatpush1.bf16.msra.mxu0 %v4331
    %4729 = vmatprep.subr.bf16.mxu0 %v4336
    %4730 = vmatpush1.bf16.msra.mxu0 %v4335
    %4731 = vmatprep.subr.bf16.mxu0 %v4340
    %4732 = vmatpush1.bf16.msra.mxu0 %v4339
    %4733 = vmatprep.subr.bf16.mxu0 %v4344
    %4734 = vmatpush1.bf16.msra.mxu0 %v4343
    %4735 = vmatprep.subr.bf16.mxu0 %v4348
    %4736 = vmatpush1.bf16.msra.mxu0 %v4347
    %4737 = vmatprep.subr.bf16.mxu0 %v4352
    %4738 = vmatpush1.bf16.msra.mxu0 %v4351
    %4739 = vmatprep.subr.bf16.mxu0 %v4356
    %4740 = vmatpush1.bf16.msra.mxu0 %v4355
    %4741 = vmatprep.subr.bf16.mxu0 %v4360
    %4742 = vmatpush1.bf16.msra.mxu0 %v4359
    %4743 = vmatprep.subr.bf16.mxu0 %v4364
    %4744 = vmatpush1.bf16.msra.mxu0 %v4363
    %4745 = vmatprep.subr.bf16.mxu0 %v4368
    %4746 = vmatpush1.bf16.msra.mxu0 %v4367
    %4747 = vmatprep.subr.bf16.mxu0 %v4372
    %4748 = vmatpush1.bf16.msra.mxu0 %v4371
    %4749 = vmatprep.subr.bf16.mxu0 %v4376
    %4750 = vmatpush1.bf16.msra.mxu0 %v4375
    %4751 = vmatprep.subr.bf16.mxu0 %v4380
    %4752 = vmatpush1.bf16.msra.mxu0 %v4379
    %4753 = vmatprep.mubr.bf16.mxu0 %v744
    %4754 = vmatmul.mubr.bf16.gmra.mrb[0].mxu0 %v743
    %v4755 = vpop.f32.mrb[0].mxu0
    %v4756 = vadd.f32 %v4715, %v4755
    %v4757 = vpop.f32.mrb[0].mxu0
    %v4758 = vadd.f32 %v4717, %v4757
    %v4759 = vpop.f32.mrb[0].mxu0
    %v4760 = vpop.f32.mrb[0].mxu0
    %4761 = vdwg.mxu0
    %4762 = vmatprep.subr.bf16.mxu0 %v4384
    %4763 = vmatpush1.bf16.msra.mxu0 %v4383
    %4764 = vmatprep.subr.bf16.mxu0 %v4388
    %4765 = vmatpush1.bf16.msra.mxu0 %v4387
    %4766 = vmatprep.subr.bf16.mxu0 %v4392
    %4767 = vmatpush1.bf16.msra.mxu0 %v4391
    %4768 = vmatprep.subr.bf16.mxu0 %v4396
    %4769 = vmatpush1.bf16.msra.mxu0 %v4395
    %4770 = vmatprep.subr.bf16.mxu0 %v4400
    %4771 = vmatpush1.bf16.msra.mxu0 %v4399
    %4772 = vmatprep.subr.bf16.mxu0 %v4404
    %4773 = vmatpush1.bf16.msra.mxu0 %v4403
    %4774 = vmatprep.subr.bf16.mxu0 %v4408
    %4775 = vmatpush1.bf16.msra.mxu0 %v4407
    %4776 = vmatprep.subr.bf16.mxu0 %v4412
    %4777 = vmatpush1.bf16.msra.mxu0 %v4411
    %4778 = vmatprep.subr.bf16.mxu0 0
    %4779 = vmatpush1.bf16.msra.mxu0 0
    %4780 = vmatprep.subr.bf16.mxu0 0
    %4781 = vmatpush1.bf16.msra.mxu0 0
    %4782 = vmatprep.subr.bf16.mxu0 0
    %4783 = vmatpush1.bf16.msra.mxu0 0
    %4784 = vmatprep.subr.bf16.mxu0 0
    %4785 = vmatpush1.bf16.msra.mxu0 0
    %4786 = vmatprep.subr.bf16.mxu0 0
    %4787 = vmatpush1.bf16.msra.mxu0 0
    %4788 = vmatprep.subr.bf16.mxu0 0
    %4789 = vmatpush1.bf16.msra.mxu0 0
    %4790 = vmatprep.subr.bf16.mxu0 0
    %4791 = vmatpush1.bf16.msra.mxu0 0
    %4792 = vmatprep.subr.bf16.mxu0 0
    %4793 = vmatpush1.bf16.msra.mxu0 0
    %4794 = vmatprep.mubr.bf16.mxu0 0
    %4795 = vmatmul.mubr.bf16.gmra.mrb[0].mxu0 %v745
    %v4796 = vpop.f32.mrb[0].mxu0
    %v4797 = vadd.f32 %v4756, %v4796
    %v4798 = vpop.f32.mrb[0].mxu0
    %v4799 = vadd.f32 %v4758, %v4798
    %v4800 = vpop.f32.mrb[0].mxu0
    %v4801 = vpop.f32.mrb[0].mxu0
    %4802 = vdwg.mxu0
    %4803 = vmatprep.subr.bf16.mxu0 %v4194
    %4804 = vmatpush1.bf16.msra.mxu0 %v4193
    %4805 = vmatprep.subr.bf16.mxu0 %v4198
    %4806 = vmatpush1.bf16.msra.mxu0 %v4197
    %4807 = vmatprep.subr.bf16.mxu0 %v4202
    %4808 = vmatpush1.bf16.msra.mxu0 %v4201
    %4809 = vmatprep.subr.bf16.mxu0 %v4206
    %4810 = vmatpush1.bf16.msra.mxu0 %v4205
    %4811 = vmatprep.subr.bf16.mxu0 %v4210
    %4812 = vmatpush1.bf16.msra.mxu0 %v4209
    %4813 = vmatprep.subr.bf16.mxu0 %v4214
    %4814 = vmatpush1.bf16.msra.mxu0 %v4213
    %4815 = vmatprep.subr.bf16.mxu0 %v4218
    %4816 = vmatpush1.bf16.msra.mxu0 %v4217
    %4817 = vmatprep.subr.bf16.mxu0 %v4222
    %4818 = vmatpush1.bf16.msra.mxu0 %v4221
    %4819 = vmatprep.subr.bf16.mxu0 %v4226
    %4820 = vmatpush1.bf16.msra.mxu0 %v4225
    %4821 = vmatprep.subr.bf16.mxu0 %v4230
    %4822 = vmatpush1.bf16.msra.mxu0 %v4229
    %4823 = vmatprep.subr.bf16.mxu0 %v4234
    %4824 = vmatpush1.bf16.msra.mxu0 %v4233
    %4825 = vmatprep.subr.bf16.mxu0 %v4238
    %4826 = vmatpush1.bf16.msra.mxu0 %v4237
    %4827 = vmatprep.subr.bf16.mxu0 %v4242
    %4828 = vmatpush1.bf16.msra.mxu0 %v4241
    %4829 = vmatprep.subr.bf16.mxu0 %v4246
    %4830 = vmatpush1.bf16.msra.mxu0 %v4245
    %4831 = vmatprep.subr.bf16.mxu0 %v4250
    %4832 = vmatpush1.bf16.msra.mxu0 %v4249
    %4833 = vmatprep.subr.bf16.mxu0 %v4254
    %4834 = vmatpush1.bf16.msra.mxu0 %v4253
    %4835 = vmatprep.mubr.bf16.mxu0 %v740
    %4836 = vmatmul.mubr.bf16.gmra.mrb[0].mxu0 %v739
    %v4837 = vpop.f32.mrb[0].mxu0
    %v4838 = vadd.f32 %v3510, %v4837
    %v4839 = vpop.f32.mrb[0].mxu0
    %v4840 = vadd.f32 %v3514, %v4839
    %v4841 = vpop.f32.mrb[0].mxu0
    %v4842 = vpop.f32.mrb[0].mxu0
    %4843 = vdwg.mxu0
    %4844 = vmatprep.subr.bf16.mxu0 %v4258
    %4845 = vmatpush1.bf16.msra.mxu0 %v4257
    %4846 = vmatprep.subr.bf16.mxu0 %v4262
    %4847 = vmatpush1.bf16.msra.mxu0 %v4261
    %4848 = vmatprep.subr.bf16.mxu0 %v4266
    %4849 = vmatpush1.bf16.msra.mxu0 %v4265
    %4850 = vmatprep.subr.bf16.mxu0 %v4270
    %4851 = vmatpush1.bf16.msra.mxu0 %v4269
    %4852 = vmatprep.subr.bf16.mxu0 %v4274
    %4853 = vmatpush1.bf16.msra.mxu0 %v4273
    %4854 = vmatprep.subr.bf16.mxu0 %v4278
    %4855 = vmatpush1.bf16.msra.mxu0 %v4277
    %4856 = vmatprep.subr.bf16.mxu0 %v4282
    %4857 = vmatpush1.bf16.msra.mxu0 %v4281
    %4858 = vmatprep.subr.bf16.mxu0 %v4286
    %4859 = vmatpush1.bf16.msra.mxu0 %v4285
    %4860 = vmatprep.subr.bf16.mxu0 %v4290
    %4861 = vmatpush1.bf16.msra.mxu0 %v4289
    %4862 = vmatprep.subr.bf16.mxu0 %v4294
    %4863 = vmatpush1.bf16.msra.mxu0 %v4293
    %4864 = vmatprep.subr.bf16.mxu0 %v4298
    %4865 = vmatpush1.bf16.msra.mxu0 %v4297
    %4866 = vmatprep.subr.bf16.mxu0 %v4302
    %4867 = vmatpush1.bf16.msra.mxu0 %v4301
    %4868 = vmatprep.subr.bf16.mxu0 %v4306
    %4869 = vmatpush1.bf16.msra.mxu0 %v4305
    %4870 = vmatprep.subr.bf16.mxu0 %v4310
    %4871 = vmatpush1.bf16.msra.mxu0 %v4309
    %4872 = vmatprep.subr.bf16.mxu0 %v4314
    %4873 = vmatpush1.bf16.msra.mxu0 %v4313
    %4874 = vmatprep.subr.bf16.mxu0 %v4318
    %4875 = vmatpush1.bf16.msra.mxu0 %v4317
    %4876 = vmatprep.mubr.bf16.mxu0 %v742
    %4877 = vmatmul.mubr.bf16.gmra.mrb[0].mxu0 %v741
    %v4878 = vpop.f32.mrb[0].mxu0
    %v4879 = vadd.f32 %v4838, %v4878
    %v4880 = vpop.f32.mrb[0].mxu0
    %v4881 = vadd.f32 %v4840, %v4880
    %v4882 = vpop.f32.mrb[0].mxu0
    %v4883 = vpop.f32.mrb[0].mxu0
    %4884 = vdwg.mxu0
    %4885 = vmatprep.subr.bf16.mxu0 %v4322
    %4886 = vmatpush1.bf16.msra.mxu0 %v4321
    %4887 = vmatprep.subr.bf16.mxu0 %v4326
    %4888 = vmatpush1.bf16.msra.mxu0 %v4325
    %4889 = vmatprep.subr.bf16.mxu0 %v4330
    %4890 = vmatpush1.bf16.msra.mxu0 %v4329
    %4891 = vmatprep.subr.bf16.mxu0 %v4334
    %4892 = vmatpush1.bf16.msra.mxu0 %v4333
    %4893 = vmatprep.subr.bf16.mxu0 %v4338
    %4894 = vmatpush1.bf16.msra.mxu0 %v4337
    %4895 = vmatprep.subr.bf16.mxu0 %v4342
    %4896 = vmatpush1.bf16.msra.mxu0 %v4341
    %4897 = vmatprep.subr.bf16.mxu0 %v4346
    %4898 = vmatpush1.bf16.msra.mxu0 %v4345
    %4899 = vmatprep.subr.bf16.mxu0 %v4350
    %4900 = vmatpush1.bf16.msra.mxu0 %v4349
    %4901 = vmatprep.subr.bf16.mxu0 %v4354
    %4902 = vmatpush1.bf16.msra.mxu0 %v4353
    %4903 = vmatprep.subr.bf16.mxu0 %v4358
    %4904 = vmatpush1.bf16.msra.mxu0 %v4357
    %4905 = vmatprep.subr.bf16.mxu0 %v4362
    %4906 = vmatpush1.bf16.msra.mxu0 %v4361
    %4907 = vmatprep.subr.bf16.mxu0 %v4366
    %4908 = vmatpush1.bf16.msra.mxu0 %v4365
    %4909 = vmatprep.subr.bf16.mxu0 %v4370
    %4910 = vmatpush1.bf16.msra.mxu0 %v4369
    %4911 = vmatprep.subr.bf16.mxu0 %v4374
    %4912 = vmatpush1.bf16.msra.mxu0 %v4373
    %4913 = vmatprep.subr.bf16.mxu0 %v4378
    %4914 = vmatpush1.bf16.msra.mxu0 %v4377
    %4915 = vmatprep.subr.bf16.mxu0 %v4382
    %4916 = vmatpush1.bf16.msra.mxu0 %v4381
    %4917 = vmatprep.mubr.bf16.mxu0 %v744
    %4918 = vmatmul.mubr.bf16.gmra.mrb[0].mxu0 %v743
    %v4919 = vpop.f32.mrb[0].mxu0
    %v4920 = vadd.f32 %v4879, %v4919
    %v4921 = vpop.f32.mrb[0].mxu0
    %v4922 = vadd.f32 %v4881, %v4921
    %v4923 = vpop.f32.mrb[0].mxu0
    %v4924 = vpop.f32.mrb[0].mxu0
    %4925 = vdwg.mxu0
    %4926 = vmatprep.subr.bf16.mxu0 %v4386
    %4927 = vmatpush1.bf16.msra.mxu0 %v4385
    %4928 = vmatprep.subr.bf16.mxu0 %v4390
    %4929 = vmatpush1.bf16.msra.mxu0 %v4389
    %4930 = vmatprep.subr.bf16.mxu0 %v4394
    %4931 = vmatpush1.bf16.msra.mxu0 %v4393
    %4932 = vmatprep.subr.bf16.mxu0 %v4398
    %4933 = vmatpush1.bf16.msra.mxu0 %v4397
    %4934 = vmatprep.subr.bf16.mxu0 %v4402
    %4935 = vmatpush1.bf16.msra.mxu0 %v4401
    %4936 = vmatprep.subr.bf16.mxu0 %v4406
    %4937 = vmatpush1.bf16.msra.mxu0 %v4405
    %4938 = vmatprep.subr.bf16.mxu0 %v4410
    %4939 = vmatpush1.bf16.msra.mxu0 %v4409
    %4940 = vmatprep.subr.bf16.mxu0 %v4414
    %4941 = vmatpush1.bf16.msra.mxu0 %v4413
    %4942 = vmatprep.subr.bf16.mxu0 0
    %4943 = vmatpush1.bf16.msra.mxu0 0
    %4944 = vmatprep.subr.bf16.mxu0 0
    %4945 = vmatpush1.bf16.msra.mxu0 0
    %4946 = vmatprep.subr.bf16.mxu0 0
    %4947 = vmatpush1.bf16.msra.mxu0 0
    %4948 = vmatprep.subr.bf16.mxu0 0
    %4949 = vmatpush1.bf16.msra.mxu0 0
    %4950 = vmatprep.subr.bf16.mxu0 0
    %4951 = vmatpush1.bf16.msra.mxu0 0
    %4952 = vmatprep.subr.bf16.mxu0 0
    %4953 = vmatpush1.bf16.msra.mxu0 0
    %4954 = vmatprep.subr.bf16.mxu0 0
    %4955 = vmatpush1.bf16.msra.mxu0 0
    %4956 = vmatprep.subr.bf16.mxu0 0
    %4957 = vmatpush1.bf16.msra.mxu0 0
    %4958 = vmatprep.mubr.bf16.mxu0 0
    %4959 = vmatmul.mubr.bf16.gmra.mrb[0].mxu0 %v745
    %v4960 = vpop.f32.mrb[0].mxu0
    %v4961 = vadd.f32 %v4920, %v4960
    %v4962 = vpop.f32.mrb[0].mxu0
    %v4963 = vadd.f32 %v4922, %v4962
    %v4964 = vpop.f32.mrb[0].mxu0
    %v4965 = vpop.f32.mrb[0].mxu0
    %4966 = vdwg.mxu0
    %v4967 = vmax.f32 %v4797, 0.0
    %v4968 = vmax.f32 %v4799, 0.0
    %v4969 = vmax.f32 %v4961, 0.0
    %v4970 = vmax.f32 %v4963, 0.0
    %v4971 = vpack.c.bf16 %v4967, %v4967
    %v4972 = vpack.c.bf16 %v4968, %v4968
    %v4973 = vpack.c.bf16 %v4969, %v4969
    %v4974 = vpack.c.bf16 %v4970, %v4970
    %v4975 = vld [vmem:[#allocation7] sm:$0xff]
    %v4976 = vld [vmem:[#allocation7 + $0x8] sm:$0xf]
    %v4977 = vld [vmem:[#allocation7 + $0xc] sm:$0xff]
    %v4978 = vld [vmem:[#allocation7 + $0x14] sm:$0xf]
    %v4979 = vld [vmem:[#allocation7 + $0x18] sm:$0xff]
    %v4980 = vld [vmem:[#allocation7 + $0x20] sm:$0xf]
    %v4981 = vld [vmem:[#allocation7 + $0x24] sm:$0xff]
    %v4982 = vld [vmem:[#allocation7 + $0x2c] sm:$0xf]
    %v4983 = vld [vmem:[#allocation7 + $0x30] sm:$0xff]
    %v4984 = vld [vmem:[#allocation7 + $0x38] sm:$0xf]
    %v4985 = vld [vmem:[#allocation7 + $0x3c] sm:$0xff]
    %v4986 = vld [vmem:[#allocation7 + $0x44] sm:$0xf]
    %v4987 = vld [vmem:[#allocation7 + $0x48] sm:$0xff]
    %v4988 = vld [vmem:[#allocation7 + $0x50] sm:$0xf]
    %v4989 = vld [vmem:[#allocation7 + $0x54] sm:$0xff]
    %v4990 = vld [vmem:[#allocation7 + $0x5c] sm:$0xf]
    %v4991 = vld [vmem:[#allocation7 + $0x60] sm:$0xff]
    %v4992 = vld [vmem:[#allocation7 + $0x68] sm:$0xf]
    %v4993 = vld [vmem:[#allocation7 + $0x6c] sm:$0xff]
    %v4994 = vld [vmem:[#allocation7 + $0x74] sm:$0xf]
    %v4995 = vld [vmem:[#allocation7 + $0x78] sm:$0xff]
    %v4996 = vld [vmem:[#allocation7 + $0x80] sm:$0xf]
    %v4997 = vld [vmem:[#allocation7 + $0x84] sm:$0xff]
    %v4998 = vld [vmem:[#allocation7 + $0x8c] sm:$0xf]
    %v4999 = vld [vmem:[#allocation7 + $0x90] sm:$0xff]
    %v5000 = vld [vmem:[#allocation7 + $0x98] sm:$0xf]
    %v5001 = vld [vmem:[#allocation7 + $0x9c] sm:$0xff]
    %v5002 = vld [vmem:[#allocation7 + $0xa4] sm:$0xf]
    %v5003 = vld [vmem:[#allocation7 + $0xa8] sm:$0xff]
    %v5004 = vld [vmem:[#allocation7 + $0xb0] sm:$0xf]
    %v5005 = vld [vmem:[#allocation7 + $0xb4] sm:$0xff]
    %v5006 = vld [vmem:[#allocation7 + $0xbc] sm:$0xf]
    %v5007 = vld [vmem:[#allocation7 + $0xc0] sm:$0xff]
    %v5008 = vld [vmem:[#allocation7 + $0xc8] sm:$0xf]
    %v5009 = vld [vmem:[#allocation7 + $0xcc] sm:$0xff]
    %v5010 = vld [vmem:[#allocation7 + $0xd4] sm:$0xf]
    %v5011 = vld [vmem:[#allocation7 + $0xd8] sm:$0xff]
    %v5012 = vld [vmem:[#allocation7 + $0xe0] sm:$0xf]
    %v5013 = vld [vmem:[#allocation7 + $0xe4] sm:$0xff]
    %v5014 = vld [vmem:[#allocation7 + $0xec] sm:$0xf]
    %v5015 = vld [vmem:[#allocation7 + $0xf0] sm:$0xff]
    %v5016 = vld [vmem:[#allocation7 + $0xf8] sm:$0xf]
    %v5017 = vld [vmem:[#allocation7 + $0xfc] sm:$0xff]
    %v5018 = vld [vmem:[#allocation7 + $0x104] sm:$0xf]
    %v5019 = vld [vmem:[#allocation7 + $0x108] sm:$0xff]
    %v5020 = vld [vmem:[#allocation7 + $0x110] sm:$0xf]
    %v5021 = vld [vmem:[#allocation7 + $0x114] sm:$0xff]
    %v5022 = vld [vmem:[#allocation7 + $0x11c] sm:$0xf]
    %v5023 = vld [vmem:[#allocation7 + $0x120] sm:$0xff]
    %v5024 = vld [vmem:[#allocation7 + $0x128] sm:$0xf]
    %v5025 = vld [vmem:[#allocation7 + $0x12c] sm:$0xff]
    %v5026 = vld [vmem:[#allocation7 + $0x134] sm:$0xf]
    %v5027 = vld [vmem:[#allocation7 + $0x138] sm:$0xff]
    %v5028 = vld [vmem:[#allocation7 + $0x140] sm:$0xf]
    %v5029 = vld [vmem:[#allocation7 + $0x144] sm:$0xff]
    %v5030 = vld [vmem:[#allocation7 + $0x14c] sm:$0xf]
    %v5031 = vld [vmem:[#allocation7 + $0x150] sm:$0xff]
    %v5032 = vld [vmem:[#allocation7 + $0x158] sm:$0xf]
    %v5033 = vld [vmem:[#allocation7 + $0x15c] sm:$0xff]
    %v5034 = vld [vmem:[#allocation7 + $0x164] sm:$0xf]
    %v5035 = vld [vmem:[#allocation7 + $0x168] sm:$0xff]
    %v5036 = vld [vmem:[#allocation7 + $0x170] sm:$0xf]
    %v5037 = vld [vmem:[#allocation7 + $0x174] sm:$0xff]
    %v5038 = vld [vmem:[#allocation7 + $0x17c] sm:$0xf]
    %v5039 = vld [vmem:[#allocation7 + $0x180] sm:$0xff]
    %v5040 = vld [vmem:[#allocation7 + $0x188] sm:$0xf]
    %v5041 = vld [vmem:[#allocation7 + $0x18c] sm:$0xff]
    %v5042 = vld [vmem:[#allocation7 + $0x194] sm:$0xf]
    %v5043 = vld [vmem:[#allocation7 + $0x198] sm:$0xff]
    %v5044 = vld [vmem:[#allocation7 + $0x1a0] sm:$0xf]
    %v5045 = vld [vmem:[#allocation7 + $0x1a4] sm:$0xff]
    %v5046 = vld [vmem:[#allocation7 + $0x1ac] sm:$0xf]
    %v5047 = vld [vmem:[#allocation7 + $0x1b0] sm:$0xff]
    %v5048 = vld [vmem:[#allocation7 + $0x1b8] sm:$0xf]
    %v5049 = vld [vmem:[#allocation7 + $0x1bc] sm:$0xff]
    %v5050 = vld [vmem:[#allocation7 + $0x1c4] sm:$0xf]
    %v5051 = vld [vmem:[#allocation7 + $0x1c8] sm:$0xff]
    %v5052 = vld [vmem:[#allocation7 + $0x1d0] sm:$0xf]
    %v5053 = vld [vmem:[#allocation7 + $0x1d4] sm:$0xff]
    %v5054 = vld [vmem:[#allocation7 + $0x1dc] sm:$0xf]
    %v5055 = vld [vmem:[#allocation7 + $0x1e0] sm:$0xff]
    %v5056 = vld [vmem:[#allocation7 + $0x1e8] sm:$0xf]
    %v5057 = vld [vmem:[#allocation7 + $0x1ec] sm:$0xff]
    %v5058 = vld [vmem:[#allocation7 + $0x1f4] sm:$0xf]
    %v5059 = vld [vmem:[#allocation7 + $0x1f8] sm:$0xff]
    %v5060 = vld [vmem:[#allocation7 + $0x200] sm:$0xf]
    %v5061 = vld [vmem:[#allocation7 + $0x204] sm:$0xff]
    %v5062 = vld [vmem:[#allocation7 + $0x20c] sm:$0xf]
    %v5063 = vld [vmem:[#allocation7 + $0x210] sm:$0xff]
    %v5064 = vld [vmem:[#allocation7 + $0x218] sm:$0xf]
    %v5065 = vld [vmem:[#allocation7 + $0x21c] sm:$0xff]
    %v5066 = vld [vmem:[#allocation7 + $0x224] sm:$0xf]
    %v5067 = vld [vmem:[#allocation7 + $0x228] sm:$0xff]
    %v5068 = vld [vmem:[#allocation7 + $0x230] sm:$0xf]
    %v5069 = vld [vmem:[#allocation7 + $0x234] sm:$0xff]
    %v5070 = vld [vmem:[#allocation7 + $0x23c] sm:$0xf]
    %v5071 = vld [vmem:[#allocation7 + $0x240] sm:$0xff]
    %v5072 = vld [vmem:[#allocation7 + $0x248] sm:$0xf]
    %v5073 = vld [vmem:[#allocation7 + $0x24c] sm:$0xff]
    %v5074 = vld [vmem:[#allocation7 + $0x254] sm:$0xf]
    %v5075 = vld [vmem:[#allocation7 + $0x258] sm:$0xff]
    %v5076 = vld [vmem:[#allocation7 + $0x260] sm:$0xf]
    %v5077 = vld [vmem:[#allocation7 + $0x264] sm:$0xff]
    %v5078 = vld [vmem:[#allocation7 + $0x26c] sm:$0xf]
    %v5079 = vld [vmem:[#allocation7 + $0x270] sm:$0xff]
    %v5080 = vld [vmem:[#allocation7 + $0x278] sm:$0xf]
    %v5081 = vld [vmem:[#allocation7 + $0x27c] sm:$0xff]
    %v5082 = vld [vmem:[#allocation7 + $0x284] sm:$0xf]
    %v5083 = vld [vmem:[#allocation7 + $0x288] sm:$0xff]
    %v5084 = vld [vmem:[#allocation7 + $0x290] sm:$0xf]
    %v5085 = vld [vmem:[#allocation7 + $0x294] sm:$0xff]
    %v5086 = vld [vmem:[#allocation7 + $0x29c] sm:$0xf]
    %v5087 = vld [vmem:[#allocation7 + $0x2a0] sm:$0xff]
    %v5088 = vld [vmem:[#allocation7 + $0x2a8] sm:$0xf]
    %v5089 = vld [vmem:[#allocation7 + $0x2ac] sm:$0xff]
    %v5090 = vld [vmem:[#allocation7 + $0x2b4] sm:$0xf]
    %v5091 = vld [vmem:[#allocation7 + $0x2b8] sm:$0xff]
    %v5092 = vld [vmem:[#allocation7 + $0x2c0] sm:$0xf]
    %v5093 = vld [vmem:[#allocation7 + $0x2c4] sm:$0xff]
    %v5094 = vld [vmem:[#allocation7 + $0x2cc] sm:$0xf]
    %v5095 = vld [vmem:[#allocation7 + $0x2d0] sm:$0xff]
    %v5096 = vld [vmem:[#allocation7 + $0x2d8] sm:$0xf]
    %v5097 = vld [vmem:[#allocation7 + $0x2dc] sm:$0xff]
    %v5098 = vld [vmem:[#allocation7 + $0x2e4] sm:$0xf]
    %v5099 = vld [vmem:[#allocation7 + $0x2e8] sm:$0xff]
    %v5100 = vld [vmem:[#allocation7 + $0x2f0] sm:$0xf]
    %v5101 = vld [vmem:[#allocation7 + $0x2f4] sm:$0xff]
    %v5102 = vld [vmem:[#allocation7 + $0x2fc] sm:$0xf]
    %v5103 = vld [vmem:[%s10] sm:$0x7]
    %v5105 = vlaneseq
    %v5106 = vshrl.u32 %v5105, 7
    %v5107 = vsub.s32 0, %v5106
    %v5108 = vrot.slane %v5103, %v5107
    %v5109 = vlaneseq
    %v5110 = vshrl.u32 %v5109, 7
    %v5111 = vsub.s32 1, %v5110
    %v5112 = vrot.slane %v5103, %v5111
    %v5113 = vlaneseq
    %v5114 = vshrl.u32 %v5113, 7
    %v5115 = vsub.s32 2, %v5114
    %v5116 = vrot.slane %v5103, %v5115
    %v5248 = vunpack.c.l.b16 %v4975
    %v5249 = vunpack.c.h.b16 %v4975
    %v5250 = vunpack.c.l.b16 %v4976
    %v5251 = vunpack.c.l.b16 %v4977
    %v5252 = vunpack.c.h.b16 %v4977
    %v5253 = vunpack.c.l.b16 %v4978
    %v5254 = vunpack.c.l.b16 %v4979
    %v5255 = vunpack.c.h.b16 %v4979
    %v5256 = vunpack.c.l.b16 %v4980
    %v5257 = vunpack.c.l.b16 %v4981
    %v5258 = vunpack.c.h.b16 %v4981
    %v5259 = vunpack.c.l.b16 %v4982
    %v5260 = vunpack.c.l.b16 %v4983
    %v5261 = vunpack.c.h.b16 %v4983
    %v5262 = vunpack.c.l.b16 %v4984
    %v5263 = vunpack.c.l.b16 %v4985
    %v5264 = vunpack.c.h.b16 %v4985
    %v5265 = vunpack.c.l.b16 %v4986
    %v5266 = vunpack.c.l.b16 %v4987
    %v5267 = vunpack.c.h.b16 %v4987
    %v5268 = vunpack.c.l.b16 %v4988
    %v5269 = vunpack.c.l.b16 %v4989
    %v5270 = vunpack.c.h.b16 %v4989
    %v5271 = vunpack.c.l.b16 %v4990
    %v5272 = vunpack.c.l.b16 %v4991
    %v5273 = vunpack.c.h.b16 %v4991
    %v5274 = vunpack.c.l.b16 %v4992
    %v5275 = vunpack.c.l.b16 %v4993
    %v5276 = vunpack.c.h.b16 %v4993
    %v5277 = vunpack.c.l.b16 %v4994
    %v5278 = vunpack.c.l.b16 %v4995
    %v5279 = vunpack.c.h.b16 %v4995
    %v5280 = vunpack.c.l.b16 %v4996
    %v5281 = vunpack.c.l.b16 %v4997
    %v5282 = vunpack.c.h.b16 %v4997
    %v5283 = vunpack.c.l.b16 %v4998
    %v5284 = vunpack.c.l.b16 %v4999
    %v5285 = vunpack.c.h.b16 %v4999
    %v5286 = vunpack.c.l.b16 %v5000
    %v5287 = vunpack.c.l.b16 %v5001
    %v5288 = vunpack.c.h.b16 %v5001
    %v5289 = vunpack.c.l.b16 %v5002
    %v5290 = vunpack.c.l.b16 %v5003
    %v5291 = vunpack.c.h.b16 %v5003
    %v5292 = vunpack.c.l.b16 %v5004
    %v5293 = vunpack.c.l.b16 %v5005
    %v5294 = vunpack.c.h.b16 %v5005
    %v5295 = vunpack.c.l.b16 %v5006
    %v5296 = vunpack.c.l.b16 %v5007
    %v5297 = vunpack.c.h.b16 %v5007
    %v5298 = vunpack.c.l.b16 %v5008
    %v5299 = vunpack.c.l.b16 %v5009
    %v5300 = vunpack.c.h.b16 %v5009
    %v5301 = vunpack.c.l.b16 %v5010
    %v5302 = vunpack.c.l.b16 %v5011
    %v5303 = vunpack.c.h.b16 %v5011
    %v5304 = vunpack.c.l.b16 %v5012
    %v5305 = vunpack.c.l.b16 %v5013
    %v5306 = vunpack.c.h.b16 %v5013
    %v5307 = vunpack.c.l.b16 %v5014
    %v5308 = vunpack.c.l.b16 %v5015
    %v5309 = vunpack.c.h.b16 %v5015
    %v5310 = vunpack.c.l.b16 %v5016
    %v5311 = vunpack.c.l.b16 %v5017
    %v5312 = vunpack.c.h.b16 %v5017
    %v5313 = vunpack.c.l.b16 %v5018
    %v5314 = vunpack.c.l.b16 %v5019
    %v5315 = vunpack.c.h.b16 %v5019
    %v5316 = vunpack.c.l.b16 %v5020
    %v5317 = vunpack.c.l.b16 %v5021
    %v5318 = vunpack.c.h.b16 %v5021
    %v5319 = vunpack.c.l.b16 %v5022
    %v5320 = vunpack.c.l.b16 %v5023
    %v5321 = vunpack.c.h.b16 %v5023
    %v5322 = vunpack.c.l.b16 %v5024
    %v5323 = vunpack.c.l.b16 %v5025
    %v5324 = vunpack.c.h.b16 %v5025
    %v5325 = vunpack.c.l.b16 %v5026
    %v5326 = vunpack.c.l.b16 %v5027
    %v5327 = vunpack.c.h.b16 %v5027
    %v5328 = vunpack.c.l.b16 %v5028
    %v5329 = vunpack.c.l.b16 %v5029
    %v5330 = vunpack.c.h.b16 %v5029
    %v5331 = vunpack.c.l.b16 %v5030
    %v5332 = vunpack.c.l.b16 %v5031
    %v5333 = vunpack.c.h.b16 %v5031
    %v5334 = vunpack.c.l.b16 %v5032
    %v5335 = vunpack.c.l.b16 %v5033
    %v5336 = vunpack.c.h.b16 %v5033
    %v5337 = vunpack.c.l.b16 %v5034
    %v5338 = vunpack.c.l.b16 %v5035
    %v5339 = vunpack.c.h.b16 %v5035
    %v5340 = vunpack.c.l.b16 %v5036
    %v5341 = vunpack.c.l.b16 %v5037
    %v5342 = vunpack.c.h.b16 %v5037
    %v5343 = vunpack.c.l.b16 %v5038
    %v5344 = vunpack.c.l.b16 %v5039
    %v5345 = vunpack.c.h.b16 %v5039
    %v5346 = vunpack.c.l.b16 %v5040
    %v5347 = vunpack.c.l.b16 %v5041
    %v5348 = vunpack.c.h.b16 %v5041
    %v5349 = vunpack.c.l.b16 %v5042
    %v5350 = vunpack.c.l.b16 %v5043
    %v5351 = vunpack.c.h.b16 %v5043
    %v5352 = vunpack.c.l.b16 %v5044
    %v5353 = vunpack.c.l.b16 %v5045
    %v5354 = vunpack.c.h.b16 %v5045
    %v5355 = vunpack.c.l.b16 %v5046
    %v5356 = vunpack.c.l.b16 %v5047
    %v5357 = vunpack.c.h.b16 %v5047
    %v5358 = vunpack.c.l.b16 %v5048
    %v5359 = vunpack.c.l.b16 %v5049
    %v5360 = vunpack.c.h.b16 %v5049
    %v5361 = vunpack.c.l.b16 %v5050
    %v5362 = vunpack.c.l.b16 %v5051
    %v5363 = vunpack.c.h.b16 %v5051
    %v5364 = vunpack.c.l.b16 %v5052
    %v5365 = vunpack.c.l.b16 %v5053
    %v5366 = vunpack.c.h.b16 %v5053
    %v5367 = vunpack.c.l.b16 %v5054
    %v5368 = vunpack.c.l.b16 %v5055
    %v5369 = vunpack.c.h.b16 %v5055
    %v5370 = vunpack.c.l.b16 %v5056
    %v5371 = vunpack.c.l.b16 %v5057
    %v5372 = vunpack.c.h.b16 %v5057
    %v5373 = vunpack.c.l.b16 %v5058
    %v5374 = vunpack.c.l.b16 %v5059
    %v5375 = vunpack.c.h.b16 %v5059
    %v5376 = vunpack.c.l.b16 %v5060
    %v5377 = vunpack.c.l.b16 %v5061
    %v5378 = vunpack.c.h.b16 %v5061
    %v5379 = vunpack.c.l.b16 %v5062
    %v5380 = vunpack.c.l.b16 %v5063
    %v5381 = vunpack.c.h.b16 %v5063
    %v5382 = vunpack.c.l.b16 %v5064
    %v5383 = vunpack.c.l.b16 %v5065
    %v5384 = vunpack.c.h.b16 %v5065
    %v5385 = vunpack.c.l.b16 %v5066
    %v5386 = vunpack.c.l.b16 %v5067
    %v5387 = vunpack.c.h.b16 %v5067
    %v5388 = vunpack.c.l.b16 %v5068
    %v5389 = vunpack.c.l.b16 %v5069
    %v5390 = vunpack.c.h.b16 %v5069
    %v5391 = vunpack.c.l.b16 %v5070
    %v5392 = vunpack.c.l.b16 %v5071
    %v5393 = vunpack.c.h.b16 %v5071
    %v5394 = vunpack.c.l.b16 %v5072
    %v5395 = vunpack.c.l.b16 %v5073
    %v5396 = vunpack.c.h.b16 %v5073
    %v5397 = vunpack.c.l.b16 %v5074
    %v5398 = vunpack.c.l.b16 %v5075
    %v5399 = vunpack.c.h.b16 %v5075
    %v5400 = vunpack.c.l.b16 %v5076
    %v5401 = vunpack.c.l.b16 %v5077
    %v5402 = vunpack.c.h.b16 %v5077
    %v5403 = vunpack.c.l.b16 %v5078
    %v5404 = vunpack.c.l.b16 %v5079
    %v5405 = vunpack.c.h.b16 %v5079
    %v5406 = vunpack.c.l.b16 %v5080
    %v5407 = vunpack.c.l.b16 %v5081
    %v5408 = vunpack.c.h.b16 %v5081
    %v5409 = vunpack.c.l.b16 %v5082
    %v5410 = vunpack.c.l.b16 %v5083
    %v5411 = vunpack.c.h.b16 %v5083
    %v5412 = vunpack.c.l.b16 %v5084
    %v5413 = vunpack.c.l.b16 %v5085
    %v5414 = vunpack.c.h.b16 %v5085
    %v5415 = vunpack.c.l.b16 %v5086
    %v5416 = vunpack.c.l.b16 %v5087
    %v5417 = vunpack.c.h.b16 %v5087
    %v5418 = vunpack.c.l.b16 %v5088
    %v5419 = vunpack.c.l.b16 %v5089
    %v5420 = vunpack.c.h.b16 %v5089
    %v5421 = vunpack.c.l.b16 %v5090
    %v5422 = vunpack.c.l.b16 %v5091
    %v5423 = vunpack.c.h.b16 %v5091
    %v5424 = vunpack.c.l.b16 %v5092
    %v5425 = vunpack.c.l.b16 %v5093
    %v5426 = vunpack.c.h.b16 %v5093
    %v5427 = vunpack.c.l.b16 %v5094
    %v5428 = vunpack.c.l.b16 %v5095
    %v5429 = vunpack.c.h.b16 %v5095
    %v5430 = vunpack.c.l.b16 %v5096
    %v5431 = vunpack.c.l.b16 %v5097
    %v5432 = vunpack.c.h.b16 %v5097
    %v5433 = vunpack.c.l.b16 %v5098
    %v5434 = vunpack.c.l.b16 %v5099
    %v5435 = vunpack.c.h.b16 %v5099
    %v5436 = vunpack.c.l.b16 %v5100
    %v5437 = vunpack.c.l.b16 %v5101
    %v5438 = vunpack.c.h.b16 %v5101
    %v5439 = vunpack.c.l.b16 %v5102
    %v5440 = vpack.c.b16 %v5251, %v5248
    %v5441 = vpack.c.b16 %v5252, %v5249
    %v5442 = vpack.c.b16 %v5253, %v5250
    %v5443 = vpack.c.b16 %v5257, %v5254
    %v5444 = vpack.c.b16 %v5258, %v5255
    %v5445 = vpack.c.b16 %v5259, %v5256
    %v5446 = vpack.c.b16 %v5263, %v5260
    %v5447 = vpack.c.b16 %v5264, %v5261
    %v5448 = vpack.c.b16 %v5265, %v5262
    %v5449 = vpack.c.b16 %v5269, %v5266
    %v5450 = vpack.c.b16 %v5270, %v5267
    %v5451 = vpack.c.b16 %v5271, %v5268
    %v5452 = vpack.c.b16 %v5275, %v5272
    %v5453 = vpack.c.b16 %v5276, %v5273
    %v5454 = vpack.c.b16 %v5277, %v5274
    %v5455 = vpack.c.b16 %v5281, %v5278
    %v5456 = vpack.c.b16 %v5282, %v5279
    %v5457 = vpack.c.b16 %v5283, %v5280
    %v5458 = vpack.c.b16 %v5287, %v5284
    %v5459 = vpack.c.b16 %v5288, %v5285
    %v5460 = vpack.c.b16 %v5289, %v5286
    %v5461 = vpack.c.b16 %v5293, %v5290
    %v5462 = vpack.c.b16 %v5294, %v5291
    %v5463 = vpack.c.b16 %v5295, %v5292
    %v5464 = vpack.c.b16 %v5299, %v5296
    %v5465 = vpack.c.b16 %v5300, %v5297
    %v5466 = vpack.c.b16 %v5301, %v5298
    %v5467 = vpack.c.b16 %v5305, %v5302
    %v5468 = vpack.c.b16 %v5306, %v5303
    %v5469 = vpack.c.b16 %v5307, %v5304
    %v5470 = vpack.c.b16 %v5311, %v5308
    %v5471 = vpack.c.b16 %v5312, %v5309
    %v5472 = vpack.c.b16 %v5313, %v5310
    %v5473 = vpack.c.b16 %v5317, %v5314
    %v5474 = vpack.c.b16 %v5318, %v5315
    %v5475 = vpack.c.b16 %v5319, %v5316
    %v5476 = vpack.c.b16 %v5323, %v5320
    %v5477 = vpack.c.b16 %v5324, %v5321
    %v5478 = vpack.c.b16 %v5325, %v5322
    %v5479 = vpack.c.b16 %v5329, %v5326
    %v5480 = vpack.c.b16 %v5330, %v5327
    %v5481 = vpack.c.b16 %v5331, %v5328
    %v5482 = vpack.c.b16 %v5335, %v5332
    %v5483 = vpack.c.b16 %v5336, %v5333
    %v5484 = vpack.c.b16 %v5337, %v5334
    %v5485 = vpack.c.b16 %v5341, %v5338
    %v5486 = vpack.c.b16 %v5342, %v5339
    %v5487 = vpack.c.b16 %v5343, %v5340
    %v5488 = vpack.c.b16 %v5347, %v5344
    %v5489 = vpack.c.b16 %v5348, %v5345
    %v5490 = vpack.c.b16 %v5349, %v5346
    %v5491 = vpack.c.b16 %v5353, %v5350
    %v5492 = vpack.c.b16 %v5354, %v5351
    %v5493 = vpack.c.b16 %v5355, %v5352
    %v5494 = vpack.c.b16 %v5359, %v5356
    %v5495 = vpack.c.b16 %v5360, %v5357
    %v5496 = vpack.c.b16 %v5361, %v5358
    %v5497 = vpack.c.b16 %v5365, %v5362
    %v5498 = vpack.c.b16 %v5366, %v5363
    %v5499 = vpack.c.b16 %v5367, %v5364
    %v5500 = vpack.c.b16 %v5371, %v5368
    %v5501 = vpack.c.b16 %v5372, %v5369
    %v5502 = vpack.c.b16 %v5373, %v5370
    %v5503 = vpack.c.b16 %v5377, %v5374
    %v5504 = vpack.c.b16 %v5378, %v5375
    %v5505 = vpack.c.b16 %v5379, %v5376
    %v5506 = vpack.c.b16 %v5383, %v5380
    %v5507 = vpack.c.b16 %v5384, %v5381
    %v5508 = vpack.c.b16 %v5385, %v5382
    %v5509 = vpack.c.b16 %v5389, %v5386
    %v5510 = vpack.c.b16 %v5390, %v5387
    %v5511 = vpack.c.b16 %v5391, %v5388
    %v5512 = vpack.c.b16 %v5395, %v5392
    %v5513 = vpack.c.b16 %v5396, %v5393
    %v5514 = vpack.c.b16 %v5397, %v5394
    %v5515 = vpack.c.b16 %v5401, %v5398
    %v5516 = vpack.c.b16 %v5402, %v5399
    %v5517 = vpack.c.b16 %v5403, %v5400
    %v5518 = vpack.c.b16 %v5407, %v5404
    %v5519 = vpack.c.b16 %v5408, %v5405
    %v5520 = vpack.c.b16 %v5409, %v5406
    %v5521 = vpack.c.b16 %v5413, %v5410
    %v5522 = vpack.c.b16 %v5414, %v5411
    %v5523 = vpack.c.b16 %v5415, %v5412
    %v5524 = vpack.c.b16 %v5419, %v5416
    %v5525 = vpack.c.b16 %v5420, %v5417
    %v5526 = vpack.c.b16 %v5421, %v5418
    %v5527 = vpack.c.b16 %v5425, %v5422
    %v5528 = vpack.c.b16 %v5426, %v5423
    %v5529 = vpack.c.b16 %v5427, %v5424
    %v5530 = vpack.c.b16 %v5431, %v5428
    %v5531 = vpack.c.b16 %v5432, %v5429
    %v5532 = vpack.c.b16 %v5433, %v5430
    %v5533 = vpack.c.b16 %v5437, %v5434
    %v5534 = vpack.c.b16 %v5438, %v5435
    %v5535 = vpack.c.b16 %v5439, %v5436
    %5632 = vmatprep.subr.bf16.mxu0 %v5441
    %5633 = vmatpush1.bf16.msra.mxu0 %v5440
    %5634 = vmatprep.subr.bf16.mxu0 %v5444
    %5635 = vmatpush1.bf16.msra.mxu0 %v5443
    %5636 = vmatprep.subr.bf16.mxu0 %v5447
    %5637 = vmatpush1.bf16.msra.mxu0 %v5446
    %5638 = vmatprep.subr.bf16.mxu0 %v5450
    %5639 = vmatpush1.bf16.msra.mxu0 %v5449
    %5640 = vmatprep.subr.bf16.mxu0 %v5453
    %5641 = vmatpush1.bf16.msra.mxu0 %v5452
    %5642 = vmatprep.subr.bf16.mxu0 %v5456
    %5643 = vmatpush1.bf16.msra.mxu0 %v5455
    %5644 = vmatprep.subr.bf16.mxu0 %v5459
    %5645 = vmatpush1.bf16.msra.mxu0 %v5458
    %5646 = vmatprep.subr.bf16.mxu0 %v5462
    %5647 = vmatpush1.bf16.msra.mxu0 %v5461
    %5648 = vmatprep.subr.bf16.mxu0 %v5465
    %5649 = vmatpush1.bf16.msra.mxu0 %v5464
    %5650 = vmatprep.subr.bf16.mxu0 %v5468
    %5651 = vmatpush1.bf16.msra.mxu0 %v5467
    %5652 = vmatprep.subr.bf16.mxu0 %v5471
    %5653 = vmatpush1.bf16.msra.mxu0 %v5470
    %5654 = vmatprep.subr.bf16.mxu0 %v5474
    %5655 = vmatpush1.bf16.msra.mxu0 %v5473
    %5656 = vmatprep.subr.bf16.mxu0 %v5477
    %5657 = vmatpush1.bf16.msra.mxu0 %v5476
    %5658 = vmatprep.subr.bf16.mxu0 %v5480
    %5659 = vmatpush1.bf16.msra.mxu0 %v5479
    %5660 = vmatprep.subr.bf16.mxu0 %v5483
    %5661 = vmatpush1.bf16.msra.mxu0 %v5482
    %5662 = vmatprep.subr.bf16.mxu0 %v5486
    %5663 = vmatpush1.bf16.msra.mxu0 %v5485
    %5664 = vmatprep.mubr.bf16.mxu0 %v4972
    %5665 = vmatmul.mubr.bf16.gmra.mrb[0].mxu0 %v4971
    %v5666 = vpop.f32.mrb[0].mxu0
    %v5667 = vadd.f32 %v5108, %v5666
    %v5668 = vpop.f32.mrb[0].mxu0
    %v5669 = vadd.f32 %v5112, %v5668
    %v5670 = vpop.f32.mrb[0].mxu0
    %v5671 = vpop.f32.mrb[0].mxu0
    %5672 = vdwg.mxu0
    %5673 = vmatprep.subr.bf16.mxu0 %v5489
    %5674 = vmatpush1.bf16.msra.mxu0 %v5488
    %5675 = vmatprep.subr.bf16.mxu0 %v5492
    %5676 = vmatpush1.bf16.msra.mxu0 %v5491
    %5677 = vmatprep.subr.bf16.mxu0 %v5495
    %5678 = vmatpush1.bf16.msra.mxu0 %v5494
    %5679 = vmatprep.subr.bf16.mxu0 %v5498
    %5680 = vmatpush1.bf16.msra.mxu0 %v5497
    %5681 = vmatprep.subr.bf16.mxu0 %v5501
    %5682 = vmatpush1.bf16.msra.mxu0 %v5500
    %5683 = vmatprep.subr.bf16.mxu0 %v5504
    %5684 = vmatpush1.bf16.msra.mxu0 %v5503
    %5685 = vmatprep.subr.bf16.mxu0 %v5507
    %5686 = vmatpush1.bf16.msra.mxu0 %v5506
    %5687 = vmatprep.subr.bf16.mxu0 %v5510
    %5688 = vmatpush1.bf16.msra.mxu0 %v5509
    %5689 = vmatprep.subr.bf16.mxu0 %v5513
    %5690 = vmatpush1.bf16.msra.mxu0 %v5512
    %5691 = vmatprep.subr.bf16.mxu0 %v5516
    %5692 = vmatpush1.bf16.msra.mxu0 %v5515
    %5693 = vmatprep.subr.bf16.mxu0 %v5519
    %5694 = vmatpush1.bf16.msra.mxu0 %v5518
    %5695 = vmatprep.subr.bf16.mxu0 %v5522
    %5696 = vmatpush1.bf16.msra.mxu0 %v5521
    %5697 = vmatprep.subr.bf16.mxu0 %v5525
    %5698 = vmatpush1.bf16.msra.mxu0 %v5524
    %5699 = vmatprep.subr.bf16.mxu0 %v5528
    %5700 = vmatpush1.bf16.msra.mxu0 %v5527
    %5701 = vmatprep.subr.bf16.mxu0 %v5531
    %5702 = vmatpush1.bf16.msra.mxu0 %v5530
    %5703 = vmatprep.subr.bf16.mxu0 %v5534
    %5704 = vmatpush1.bf16.msra.mxu0 %v5533
    %5705 = vmatprep.mubr.bf16.mxu0 %v4974
    %5706 = vmatmul.mubr.bf16.gmra.mrb[0].mxu0 %v4973
    %v5707 = vpop.f32.mrb[0].mxu0
    %v5708 = vadd.f32 %v5667, %v5707
    %v5709 = vpop.f32.mrb[0].mxu0
    %v5710 = vadd.f32 %v5669, %v5709
    %v5711 = vpop.f32.mrb[0].mxu0
    %v5712 = vpop.f32.mrb[0].mxu0
    %5713 = vdwg.mxu0
    %5714 = vmatprep.subr.bf16.mxu0 0
    %5715 = vmatpush1.bf16.msra.mxu0 %v5442
    %5716 = vmatprep.subr.bf16.mxu0 0
    %5717 = vmatpush1.bf16.msra.mxu0 %v5445
    %5718 = vmatprep.subr.bf16.mxu0 0
    %5719 = vmatpush1.bf16.msra.mxu0 %v5448
    %5720 = vmatprep.subr.bf16.mxu0 0
    %5721 = vmatpush1.bf16.msra.mxu0 %v5451
    %5722 = vmatprep.subr.bf16.mxu0 0
    %5723 = vmatpush1.bf16.msra.mxu0 %v5454
    %5724 = vmatprep.subr.bf16.mxu0 0
    %5725 = vmatpush1.bf16.msra.mxu0 %v5457
    %5726 = vmatprep.subr.bf16.mxu0 0
    %5727 = vmatpush1.bf16.msra.mxu0 %v5460
    %5728 = vmatprep.subr.bf16.mxu0 0
    %5729 = vmatpush1.bf16.msra.mxu0 %v5463
    %5730 = vmatprep.subr.bf16.mxu0 0
    %5731 = vmatpush1.bf16.msra.mxu0 %v5466
    %5732 = vmatprep.subr.bf16.mxu0 0
    %5733 = vmatpush1.bf16.msra.mxu0 %v5469
    %5734 = vmatprep.subr.bf16.mxu0 0
    %5735 = vmatpush1.bf16.msra.mxu0 %v5472
    %5736 = vmatprep.subr.bf16.mxu0 0
    %5737 = vmatpush1.bf16.msra.mxu0 %v5475
    %5738 = vmatprep.subr.bf16.mxu0 0
    %5739 = vmatpush1.bf16.msra.mxu0 %v5478
    %5740 = vmatprep.subr.bf16.mxu0 0
    %5741 = vmatpush1.bf16.msra.mxu0 %v5481
    %5742 = vmatprep.subr.bf16.mxu0 0
    %5743 = vmatpush1.bf16.msra.mxu0 %v5484
    %5744 = vmatprep.subr.bf16.mxu0 0
    %5745 = vmatpush1.bf16.msra.mxu0 %v5487
    %5746 = vmatprep.mubr.bf16.mxu0 %v4972
    %5747 = vmatmul.mubr.bf16.gmra.mrb[0].mxu0 %v4971
    %v5748 = vpop.f32.mrb[0].mxu0
    %v5749 = vadd.f32 %v5116, %v5748
    %v5750 = vpop.f32.mrb[0].mxu0
    %v5751 = vpop.f32.mrb[0].mxu0
    %v5752 = vpop.f32.mrb[0].mxu0
    %5753 = vdwg.mxu0
    %5754 = vmatprep.subr.bf16.mxu0 0
    %5755 = vmatpush1.bf16.msra.mxu0 %v5490
    %5756 = vmatprep.subr.bf16.mxu0 0
    %5757 = vmatpush1.bf16.msra.mxu0 %v5493
    %5758 = vmatprep.subr.bf16.mxu0 0
    %5759 = vmatpush1.bf16.msra.mxu0 %v5496
    %5760 = vmatprep.subr.bf16.mxu0 0
    %5761 = vmatpush1.bf16.msra.mxu0 %v5499
    %5762 = vmatprep.subr.bf16.mxu0 0
    %5763 = vmatpush1.bf16.msra.mxu0 %v5502
    %5764 = vmatprep.subr.bf16.mxu0 0
    %5765 = vmatpush1.bf16.msra.mxu0 %v5505
    %5766 = vmatprep.subr.bf16.mxu0 0
    %5767 = vmatpush1.bf16.msra.mxu0 %v5508
    %5768 = vmatprep.subr.bf16.mxu0 0
    %5769 = vmatpush1.bf16.msra.mxu0 %v5511
    %5770 = vmatprep.subr.bf16.mxu0 0
    %5771 = vmatpush1.bf16.msra.mxu0 %v5514
    %5772 = vmatprep.subr.bf16.mxu0 0
    %5773 = vmatpush1.bf16.msra.mxu0 %v5517
    %5774 = vmatprep.subr.bf16.mxu0 0
    %5775 = vmatpush1.bf16.msra.mxu0 %v5520
    %5776 = vmatprep.subr.bf16.mxu0 0
    %5777 = vmatpush1.bf16.msra.mxu0 %v5523
    %5778 = vmatprep.subr.bf16.mxu0 0
    %5779 = vmatpush1.bf16.msra.mxu0 %v5526
    %5780 = vmatprep.subr.bf16.mxu0 0
    %5781 = vmatpush1.bf16.msra.mxu0 %v5529
    %5782 = vmatprep.subr.bf16.mxu0 0
    %5783 = vmatpush1.bf16.msra.mxu0 %v5532
    %5784 = vmatprep.subr.bf16.mxu0 0
    %5785 = vmatpush1.bf16.msra.mxu0 %v5535
    %5786 = vmatprep.mubr.bf16.mxu0 %v4974
    %5787 = vmatmul.mubr.bf16.gmra.mrb[0].mxu0 %v4973
    %v5788 = vpop.f32.mrb[0].mxu0
    %v5789 = vadd.f32 %v5749, %v5788
    %v5790 = vpop.f32.mrb[0].mxu0
    %v5791 = vpop.f32.mrb[0].mxu0
    %v5792 = vpop.f32.mrb[0].mxu0
    %5793 = vdwg.mxu0
    %v5794 = vmax.f32 %v5708, 0.0
    %v5795 = vmax.f32 %v5710, 0.0
    %v5796 = vmax.f32 %v5789, 0.0
    %v5797 = vpack.c.bf16 %v5794, %v5794
    %v5798 = vpack.c.bf16 %v5795, %v5795
    %v5799 = vpack.c.bf16 %v5796, %v5796
    %v5800 = vld [vmem:[%s11] sm:$0xf]
    %v5801 = vld [vmem:[%s11 + $0x4] sm:$0xf]
    %v5802 = vld [vmem:[%s11 + $0x8] sm:$0xf]
    %v5803 = vld [vmem:[%s11 + $0xc] sm:$0xf]
    %v5804 = vld [vmem:[%s11 + $0x10] sm:$0xf]
    %v5805 = vld [vmem:[%s11 + $0x14] sm:$0xf]
    %v5806 = vld [vmem:[%s11 + $0x18] sm:$0xf]
    %v5807 = vld [vmem:[%s11 + $0x1c] sm:$0xf]
    %v5808 = vld [vmem:[%s11 + $0x20] sm:$0xf]
    %v5809 = vld [vmem:[%s11 + $0x24] sm:$0xf]
    %v5810 = vld [vmem:[%s11 + $0x28] sm:$0xf]
    %v5811 = vld [vmem:[%s11 + $0x2c] sm:$0xf]
    %v5812 = vld [vmem:[%s11 + $0x30] sm:$0xf]
    %v5813 = vld [vmem:[%s11 + $0x34] sm:$0xf]
    %v5814 = vld [vmem:[%s11 + $0x38] sm:$0xf]
    %v5815 = vld [vmem:[%s11 + $0x3c] sm:$0xf]
    %v5816 = vld [vmem:[%s11 + $0x40] sm:$0xf]
    %v5817 = vld [vmem:[%s11 + $0x44] sm:$0xf]
    %v5818 = vld [vmem:[%s11 + $0x48] sm:$0xf]
    %v5819 = vld [vmem:[%s11 + $0x4c] sm:$0xf]
    %v5820 = vld [vmem:[%s11 + $0x50] sm:$0xf]
    %v5821 = vld [vmem:[%s11 + $0x54] sm:$0xf]
    %v5822 = vld [vmem:[%s11 + $0x58] sm:$0xf]
    %v5823 = vld [vmem:[%s11 + $0x5c] sm:$0xf]
    %v5824 = vld [vmem:[%s11 + $0x60] sm:$0xf]
    %v5825 = vld [vmem:[%s11 + $0x64] sm:$0xf]
    %v5826 = vld [vmem:[%s11 + $0x68] sm:$0xf]
    %v5827 = vld [vmem:[%s11 + $0x6c] sm:$0xf]
    %v5828 = vld [vmem:[%s11 + $0x70] sm:$0xf]
    %v5829 = vld [vmem:[%s11 + $0x74] sm:$0xf]
    %v5830 = vld [vmem:[%s11 + $0x78] sm:$0xf]
    %v5831 = vld [vmem:[%s11 + $0x7c] sm:$0xf]
    %v5832 = vld [vmem:[%s11 + $0x80] sm:$0xf]
    %v5833 = vld [vmem:[%s11 + $0x84] sm:$0xf]
    %v5834 = vld [vmem:[%s11 + $0x88] sm:$0xf]
    %v5835 = vld [vmem:[%s11 + $0x8c] sm:$0xf]
    %v5836 = vld [vmem:[%s11 + $0x90] sm:$0xf]
    %v5837 = vld [vmem:[%s11 + $0x94] sm:$0xf]
    %v5838 = vld [vmem:[%s11 + $0x98] sm:$0xf]
    %v5839 = vld [vmem:[%s11 + $0x9c] sm:$0xf]
    %v5840 = vld [vmem:[%s11 + $0xa0] sm:$0xf]
    %v5841 = vld [vmem:[%s11 + $0xa4] sm:$0xf]
    %v5842 = vld [vmem:[%s11 + $0xa8] sm:$0xf]
    %v5843 = vld [vmem:[%s11 + $0xac] sm:$0xf]
    %v5844 = vld [vmem:[%s11 + $0xb0] sm:$0xf]
    %v5845 = vld [vmem:[%s11 + $0xb4] sm:$0xf]
    %v5846 = vld [vmem:[%s11 + $0xb8] sm:$0xf]
    %v5847 = vld [vmem:[%s11 + $0xbc] sm:$0xf]
    %v5848 = vld [vmem:[%s11 + $0xc0] sm:$0xf]
    %v5849 = vld [vmem:[%s11 + $0xc4] sm:$0xf]
    %v5850 = vld [vmem:[%s11 + $0xc8] sm:$0xf]
    %v5851 = vld [vmem:[%s11 + $0xcc] sm:$0xf]
    %v5852 = vld [vmem:[%s11 + $0xd0] sm:$0xf]
    %v5853 = vld [vmem:[%s11 + $0xd4] sm:$0xf]
    %v5854 = vld [vmem:[%s11 + $0xd8] sm:$0xf]
    %v5855 = vld [vmem:[%s11 + $0xdc] sm:$0xf]
    %v5856 = vld [vmem:[%s11 + $0xe0] sm:$0xf]
    %v5857 = vld [vmem:[%s11 + $0xe4] sm:$0xf]
    %v5858 = vld [vmem:[%s11 + $0xe8] sm:$0xf]
    %v5859 = vld [vmem:[%s11 + $0xec] sm:$0xf]
    %v5860 = vld [vmem:[%s11 + $0xf0] sm:$0xf]
    %v5861 = vld [vmem:[%s11 + $0xf4] sm:$0xf]
    %v5862 = vld [vmem:[%s11 + $0xf8] sm:$0xf]
    %v5863 = vld [vmem:[%s11 + $0xfc] sm:$0xf]
    %v5864 = vld [vmem:[%s11 + $0x100] sm:$0xf]
    %v5865 = vld [vmem:[%s11 + $0x104] sm:$0xf]
    %v5866 = vld [vmem:[%s11 + $0x108] sm:$0xf]
    %v5867 = vld [vmem:[%s11 + $0x10c] sm:$0xf]
    %v5868 = vld [vmem:[%s11 + $0x110] sm:$0xf]
    %v5869 = vld [vmem:[%s11 + $0x114] sm:$0xf]
    %v5870 = vld [vmem:[%s11 + $0x118] sm:$0xf]
    %v5871 = vld [vmem:[%s11 + $0x11c] sm:$0xf]
    %v5872 = vld [vmem:[%s11 + $0x120] sm:$0xf]
    %v5873 = vld [vmem:[%s11 + $0x124] sm:$0xf]
    %v5874 = vld [vmem:[%s11 + $0x128] sm:$0xf]
    %v5875 = vld [vmem:[%s11 + $0x12c] sm:$0xf]
    %v5876 = vld [vmem:[%s11 + $0x130] sm:$0xf]
    %v5877 = vld [vmem:[%s11 + $0x134] sm:$0xf]
    %v5878 = vld [vmem:[%s11 + $0x138] sm:$0xf]
    %v5879 = vld [vmem:[%s11 + $0x13c] sm:$0xf]
    %v5880 = vld [vmem:[%s11 + $0x140] sm:$0xf]
    %v5881 = vld [vmem:[%s11 + $0x144] sm:$0xf]
    %v5882 = vld [vmem:[%s11 + $0x148] sm:$0xf]
    %v5883 = vld [vmem:[%s11 + $0x14c] sm:$0xf]
    %v5884 = vld [vmem:[%s11 + $0x150] sm:$0xf]
    %v5885 = vld [vmem:[%s11 + $0x154] sm:$0xf]
    %v5886 = vld [vmem:[%s11 + $0x158] sm:$0xf]
    %v5887 = vld [vmem:[%s11 + $0x15c] sm:$0xf]
    %v5888 = vld [vmem:[%s11 + $0x160] sm:$0xf]
    %v5889 = vld [vmem:[%s11 + $0x164] sm:$0xf]
    %v5890 = vld [vmem:[%s11 + $0x168] sm:$0xf]
    %v5891 = vld [vmem:[%s11 + $0x16c] sm:$0xf]
    %v5892 = vld [vmem:[%s11 + $0x170] sm:$0xf]
    %v5893 = vld [vmem:[%s11 + $0x174] sm:$0xf]
    %v5894 = vld [vmem:[%s11 + $0x178] sm:$0xf]
    %v5895 = vld [vmem:[%s11 + $0x17c] sm:$0xf]
    %v5896 = vld [vmem:[%s12] sm:$0x1]
    %v5898 = vlaneseq
    %v5899 = vshrl.u32 %v5898, 7
    %v5900 = vsub.s32 0, %v5899
    %v5901 = vrot.slane %v5896, %v5900
    %v5999 = vunpack.c.l.b16 %v5800
    %v6000 = vunpack.c.l.b16 %v5801
    %v6001 = vunpack.c.l.b16 %v5802
    %v6002 = vunpack.c.l.b16 %v5803
    %v6003 = vunpack.c.l.b16 %v5804
    %v6004 = vunpack.c.l.b16 %v5805
    %v6005 = vunpack.c.l.b16 %v5806
    %v6006 = vunpack.c.l.b16 %v5807
    %v6007 = vunpack.c.l.b16 %v5808
    %v6008 = vunpack.c.l.b16 %v5809
    %v6009 = vunpack.c.l.b16 %v5810
    %v6010 = vunpack.c.l.b16 %v5811
    %v6011 = vunpack.c.l.b16 %v5812
    %v6012 = vunpack.c.l.b16 %v5813
    %v6013 = vunpack.c.l.b16 %v5814
    %v6014 = vunpack.c.l.b16 %v5815
    %v6015 = vunpack.c.l.b16 %v5816
    %v6016 = vunpack.c.l.b16 %v5817
    %v6017 = vunpack.c.l.b16 %v5818
    %v6018 = vunpack.c.l.b16 %v5819
    %v6019 = vunpack.c.l.b16 %v5820
    %v6020 = vunpack.c.l.b16 %v5821
    %v6021 = vunpack.c.l.b16 %v5822
    %v6022 = vunpack.c.l.b16 %v5823
    %v6023 = vunpack.c.l.b16 %v5824
    %v6024 = vunpack.c.l.b16 %v5825
    %v6025 = vunpack.c.l.b16 %v5826
    %v6026 = vunpack.c.l.b16 %v5827
    %v6027 = vunpack.c.l.b16 %v5828
    %v6028 = vunpack.c.l.b16 %v5829
    %v6029 = vunpack.c.l.b16 %v5830
    %v6030 = vunpack.c.l.b16 %v5831
    %v6031 = vunpack.c.l.b16 %v5832
    %v6032 = vunpack.c.l.b16 %v5833
    %v6033 = vunpack.c.l.b16 %v5834
    %v6034 = vunpack.c.l.b16 %v5835
    %v6035 = vunpack.c.l.b16 %v5836
    %v6036 = vunpack.c.l.b16 %v5837
    %v6037 = vunpack.c.l.b16 %v5838
    %v6038 = vunpack.c.l.b16 %v5839
    %v6039 = vunpack.c.l.b16 %v5840
    %v6040 = vunpack.c.l.b16 %v5841
    %v6041 = vunpack.c.l.b16 %v5842
    %v6042 = vunpack.c.l.b16 %v5843
    %v6043 = vunpack.c.l.b16 %v5844
    %v6044 = vunpack.c.l.b16 %v5845
    %v6045 = vunpack.c.l.b16 %v5846
    %v6046 = vunpack.c.l.b16 %v5847
    %v6047 = vunpack.c.l.b16 %v5848
    %v6048 = vunpack.c.l.b16 %v5849
    %v6049 = vunpack.c.l.b16 %v5850
    %v6050 = vunpack.c.l.b16 %v5851
    %v6051 = vunpack.c.l.b16 %v5852
    %v6052 = vunpack.c.l.b16 %v5853
    %v6053 = vunpack.c.l.b16 %v5854
    %v6054 = vunpack.c.l.b16 %v5855
    %v6055 = vunpack.c.l.b16 %v5856
    %v6056 = vunpack.c.l.b16 %v5857
    %v6057 = vunpack.c.l.b16 %v5858
    %v6058 = vunpack.c.l.b16 %v5859
    %v6059 = vunpack.c.l.b16 %v5860
    %v6060 = vunpack.c.l.b16 %v5861
    %v6061 = vunpack.c.l.b16 %v5862
    %v6062 = vunpack.c.l.b16 %v5863
    %v6063 = vunpack.c.l.b16 %v5864
    %v6064 = vunpack.c.l.b16 %v5865
    %v6065 = vunpack.c.l.b16 %v5866
    %v6066 = vunpack.c.l.b16 %v5867
    %v6067 = vunpack.c.l.b16 %v5868
    %v6068 = vunpack.c.l.b16 %v5869
    %v6069 = vunpack.c.l.b16 %v5870
    %v6070 = vunpack.c.l.b16 %v5871
    %v6071 = vunpack.c.l.b16 %v5872
    %v6072 = vunpack.c.l.b16 %v5873
    %v6073 = vunpack.c.l.b16 %v5874
    %v6074 = vunpack.c.l.b16 %v5875
    %v6075 = vunpack.c.l.b16 %v5876
    %v6076 = vunpack.c.l.b16 %v5877
    %v6077 = vunpack.c.l.b16 %v5878
    %v6078 = vunpack.c.l.b16 %v5879
    %v6079 = vunpack.c.l.b16 %v5880
    %v6080 = vunpack.c.l.b16 %v5881
    %v6081 = vunpack.c.l.b16 %v5882
    %v6082 = vunpack.c.l.b16 %v5883
    %v6083 = vunpack.c.l.b16 %v5884
    %v6084 = vunpack.c.l.b16 %v5885
    %v6085 = vunpack.c.l.b16 %v5886
    %v6086 = vunpack.c.l.b16 %v5887
    %v6087 = vunpack.c.l.b16 %v5888
    %v6088 = vunpack.c.l.b16 %v5889
    %v6089 = vunpack.c.l.b16 %v5890
    %v6090 = vunpack.c.l.b16 %v5891
    %v6091 = vunpack.c.l.b16 %v5892
    %v6092 = vunpack.c.l.b16 %v5893
    %v6093 = vunpack.c.l.b16 %v5894
    %v6094 = vunpack.c.l.b16 %v5895
    %v6095 = vpack.c.b16 %v6000, %v5999
    %v6096 = vpack.c.b16 %v6002, %v6001
    %v6097 = vpack.c.b16 %v6004, %v6003
    %v6098 = vpack.c.b16 %v6006, %v6005
    %v6099 = vpack.c.b16 %v6008, %v6007
    %v6100 = vpack.c.b16 %v6010, %v6009
    %v6101 = vpack.c.b16 %v6012, %v6011
    %v6102 = vpack.c.b16 %v6014, %v6013
    %v6103 = vpack.c.b16 %v6016, %v6015
    %v6104 = vpack.c.b16 %v6018, %v6017
    %v6105 = vpack.c.b16 %v6020, %v6019
    %v6106 = vpack.c.b16 %v6022, %v6021
    %v6107 = vpack.c.b16 %v6024, %v6023
    %v6108 = vpack.c.b16 %v6026, %v6025
    %v6109 = vpack.c.b16 %v6028, %v6027
    %v6110 = vpack.c.b16 %v6030, %v6029
    %v6111 = vpack.c.b16 %v6032, %v6031
    %v6112 = vpack.c.b16 %v6034, %v6033
    %v6113 = vpack.c.b16 %v6036, %v6035
    %v6114 = vpack.c.b16 %v6038, %v6037
    %v6115 = vpack.c.b16 %v6040, %v6039
    %v6116 = vpack.c.b16 %v6042, %v6041
    %v6117 = vpack.c.b16 %v6044, %v6043
    %v6118 = vpack.c.b16 %v6046, %v6045
    %v6119 = vpack.c.b16 %v6048, %v6047
    %v6120 = vpack.c.b16 %v6050, %v6049
    %v6121 = vpack.c.b16 %v6052, %v6051
    %v6122 = vpack.c.b16 %v6054, %v6053
    %v6123 = vpack.c.b16 %v6056, %v6055
    %v6124 = vpack.c.b16 %v6058, %v6057
    %v6125 = vpack.c.b16 %v6060, %v6059
    %v6126 = vpack.c.b16 %v6062, %v6061
    %v6127 = vpack.c.b16 %v6064, %v6063
    %v6128 = vpack.c.b16 %v6066, %v6065
    %v6129 = vpack.c.b16 %v6068, %v6067
    %v6130 = vpack.c.b16 %v6070, %v6069
    %v6131 = vpack.c.b16 %v6072, %v6071
    %v6132 = vpack.c.b16 %v6074, %v6073
    %v6133 = vpack.c.b16 %v6076, %v6075
    %v6134 = vpack.c.b16 %v6078, %v6077
    %v6135 = vpack.c.b16 %v6080, %v6079
    %v6136 = vpack.c.b16 %v6082, %v6081
    %v6137 = vpack.c.b16 %v6084, %v6083
    %v6138 = vpack.c.b16 %v6086, %v6085
    %v6139 = vpack.c.b16 %v6088, %v6087
    %v6140 = vpack.c.b16 %v6090, %v6089
    %v6141 = vpack.c.b16 %v6092, %v6091
    %v6142 = vpack.c.b16 %v6094, %v6093
    %6191 = vmatprep.subr.bf16.mxu0 0
    %6192 = vmatpush1.bf16.msra.mxu0 %v6095
    %6193 = vmatprep.subr.bf16.mxu0 0
    %6194 = vmatpush1.bf16.msra.mxu0 %v6096
    %6195 = vmatprep.subr.bf16.mxu0 0
    %6196 = vmatpush1.bf16.msra.mxu0 %v6097
    %6197 = vmatprep.subr.bf16.mxu0 0
    %6198 = vmatpush1.bf16.msra.mxu0 %v6098
    %6199 = vmatprep.subr.bf16.mxu0 0
    %6200 = vmatpush1.bf16.msra.mxu0 %v6099
    %6201 = vmatprep.subr.bf16.mxu0 0
    %6202 = vmatpush1.bf16.msra.mxu0 %v6100
    %6203 = vmatprep.subr.bf16.mxu0 0
    %6204 = vmatpush1.bf16.msra.mxu0 %v6101
    %6205 = vmatprep.subr.bf16.mxu0 0
    %6206 = vmatpush1.bf16.msra.mxu0 %v6102
    %6207 = vmatprep.subr.bf16.mxu0 0
    %6208 = vmatpush1.bf16.msra.mxu0 %v6103
    %6209 = vmatprep.subr.bf16.mxu0 0
    %6210 = vmatpush1.bf16.msra.mxu0 %v6104
    %6211 = vmatprep.subr.bf16.mxu0 0
    %6212 = vmatpush1.bf16.msra.mxu0 %v6105
    %6213 = vmatprep.subr.bf16.mxu0 0
    %6214 = vmatpush1.bf16.msra.mxu0 %v6106
    %6215 = vmatprep.subr.bf16.mxu0 0
    %6216 = vmatpush1.bf16.msra.mxu0 %v6107
    %6217 = vmatprep.subr.bf16.mxu0 0
    %6218 = vmatpush1.bf16.msra.mxu0 %v6108
    %6219 = vmatprep.subr.bf16.mxu0 0
    %6220 = vmatpush1.bf16.msra.mxu0 %v6109
    %6221 = vmatprep.subr.bf16.mxu0 0
    %6222 = vmatpush1.bf16.msra.mxu0 %v6110
    %6223 = vmatprep.mubr.bf16.mxu0 %v3271
    %6224 = vmatmul.mubr.bf16.gmra.mrb[0].mxu0 %v3270
    %v6225 = vpop.f32.mrb[0].mxu0
    %v6226 = vadd.f32 %v5901, %v6225
    %v6227 = vpop.f32.mrb[0].mxu0
    %v6228 = vpop.f32.mrb[0].mxu0
    %v6229 = vpop.f32.mrb[0].mxu0
    %6230 = vdwg.mxu0
    %6231 = vmatprep.subr.bf16.mxu0 0
    %6232 = vmatpush1.bf16.msra.mxu0 %v6111
    %6233 = vmatprep.subr.bf16.mxu0 0
    %6234 = vmatpush1.bf16.msra.mxu0 %v6112
    %6235 = vmatprep.subr.bf16.mxu0 0
    %6236 = vmatpush1.bf16.msra.mxu0 %v6113
    %6237 = vmatprep.subr.bf16.mxu0 0
    %6238 = vmatpush1.bf16.msra.mxu0 %v6114
    %6239 = vmatprep.subr.bf16.mxu0 0
    %6240 = vmatpush1.bf16.msra.mxu0 %v6115
    %6241 = vmatprep.subr.bf16.mxu0 0
    %6242 = vmatpush1.bf16.msra.mxu0 %v6116
    %6243 = vmatprep.subr.bf16.mxu0 0
    %6244 = vmatpush1.bf16.msra.mxu0 %v6117
    %6245 = vmatprep.subr.bf16.mxu0 0
    %6246 = vmatpush1.bf16.msra.mxu0 %v6118
    %6247 = vmatprep.subr.bf16.mxu0 0
    %6248 = vmatpush1.bf16.msra.mxu0 %v6119
    %6249 = vmatprep.subr.bf16.mxu0 0
    %6250 = vmatpush1.bf16.msra.mxu0 %v6120
    %6251 = vmatprep.subr.bf16.mxu0 0
    %6252 = vmatpush1.bf16.msra.mxu0 %v6121
    %6253 = vmatprep.subr.bf16.mxu0 0
    %6254 = vmatpush1.bf16.msra.mxu0 %v6122
    %6255 = vmatprep.subr.bf16.mxu0 0
    %6256 = vmatpush1.bf16.msra.mxu0 %v6123
    %6257 = vmatprep.subr.bf16.mxu0 0
    %6258 = vmatpush1.bf16.msra.mxu0 %v6124
    %6259 = vmatprep.subr.bf16.mxu0 0
    %6260 = vmatpush1.bf16.msra.mxu0 %v6125
    %6261 = vmatprep.subr.bf16.mxu0 0
    %6262 = vmatpush1.bf16.msra.mxu0 %v6126
    %6263 = vmatprep.mubr.bf16.mxu0 %v5797
    %6264 = vmatmul.mubr.bf16.gmra.mrb[0].mxu0 %v3272
    %v6265 = vpop.f32.mrb[0].mxu0
    %v6266 = vadd.f32 %v6226, %v6265
    %v6267 = vpop.f32.mrb[0].mxu0
    %v6268 = vpop.f32.mrb[0].mxu0
    %v6269 = vpop.f32.mrb[0].mxu0
    %6270 = vdwg.mxu0
    %6271 = vmatprep.subr.bf16.mxu0 0
    %6272 = vmatpush1.bf16.msra.mxu0 %v6127
    %6273 = vmatprep.subr.bf16.mxu0 0
    %6274 = vmatpush1.bf16.msra.mxu0 %v6128
    %6275 = vmatprep.subr.bf16.mxu0 0
    %6276 = vmatpush1.bf16.msra.mxu0 %v6129
    %6277 = vmatprep.subr.bf16.mxu0 0
    %6278 = vmatpush1.bf16.msra.mxu0 %v6130
    %6279 = vmatprep.subr.bf16.mxu0 0
    %6280 = vmatpush1.bf16.msra.mxu0 %v6131
    %6281 = vmatprep.subr.bf16.mxu0 0
    %6282 = vmatpush1.bf16.msra.mxu0 %v6132
    %6283 = vmatprep.subr.bf16.mxu0 0
    %6284 = vmatpush1.bf16.msra.mxu0 %v6133
    %6285 = vmatprep.subr.bf16.mxu0 0
    %6286 = vmatpush1.bf16.msra.mxu0 %v6134
    %6287 = vmatprep.subr.bf16.mxu0 0
    %6288 = vmatpush1.bf16.msra.mxu0 %v6135
    %6289 = vmatprep.subr.bf16.mxu0 0
    %6290 = vmatpush1.bf16.msra.mxu0 %v6136
    %6291 = vmatprep.subr.bf16.mxu0 0
    %6292 = vmatpush1.bf16.msra.mxu0 %v6137
    %6293 = vmatprep.subr.bf16.mxu0 0
    %6294 = vmatpush1.bf16.msra.mxu0 %v6138
    %6295 = vmatprep.subr.bf16.mxu0 0
    %6296 = vmatpush1.bf16.msra.mxu0 %v6139
    %6297 = vmatprep.subr.bf16.mxu0 0
    %6298 = vmatpush1.bf16.msra.mxu0 %v6140
    %6299 = vmatprep.subr.bf16.mxu0 0
    %6300 = vmatpush1.bf16.msra.mxu0 %v6141
    %6301 = vmatprep.subr.bf16.mxu0 0
    %6302 = vmatpush1.bf16.msra.mxu0 %v6142
    %6303 = vmatprep.mubr.bf16.mxu0 %v5799
    %6304 = vmatmul.mubr.bf16.gmra.mrb[0].mxu0 %v5798
    %v6305 = vpop.f32.mrb[0].mxu0
    %v6306 = vadd.f32 %v6266, %v6305
    %v6307 = vpop.f32.mrb[0].mxu0
    %v6308 = vpop.f32.mrb[0].mxu0
    %v6309 = vpop.f32.mrb[0].mxu0
    %6310 = vdwg.mxu0
    %vm6311 = vcmask 15360
    %6312 = vst.msk [vmem:[%s13] sm:$0xff] %vm6311, %v6306
    // Predicated region
    $region70: #{critic_forward.1} parent=1 // pred_check
      _
    $region71: #{critic_forward.1} parent=1 // pred_check_branch
      %6314 = sbr.rel (0) target = $region73
    $region72: #{critic_forward.1} parent=1 // pred_region
      _
    $region73: #{critic_forward.1} parent=1 // pred_fallthru
      _
    // Predicated region
    $region74: #{critic_forward.1} parent=1 // pred_check
      _
    $region75: #{critic_forward.1} parent=1 // pred_check_branch
      %6316 = sbr.rel (0) target = $region77
    $region76: #{critic_forward.1} parent=1 // pred_region
      _
    $region77: #{critic_forward.1} parent=1 // pred_fallthru
      _
    %6317 = vsyncpa [#allocation3], 1
    %6318 = vsyncpa [#allocation5], 1
    %6319 = vsyncpa [#allocation8], 1

</llo_original>
